<compile_context>
chip_gen: v7x
topology: tpu7x:2x2x1
jax: 0.10.0
libtpu: 0.0.40
codegen_flags: <defaults>
</compile_context>

<pallas_src>
import jax
import jax.numpy as jnp
from jax.experimental import pallas as pl
from jax.experimental.pallas import tpu as pltpu

# ----------------------------------------------------------------------------
# Model dimensions (fixed by the PyTorch module) and packed-buffer layout.
# ----------------------------------------------------------------------------
T = 5                      # sequence length (forced by Flatten -> Linear(16*5))
F_IN = 15                  # LSTM1 input features
F_PAD = 16                 # x lanes padded 15 -> 16
H1, H2, H3 = 64, 32, 16    # hidden sizes
FC = 80                    # 16 * 5
GP = 128                   # per-gate lane padding (vreg aligned)
G4 = 4 * GP                # 512: padded gate-vector width

# Row offsets inside the packed recurrent-weight buffer (512 lanes wide).
R_WIH1 = 0                       # 16 rows : x -> gates, layer 1
R_WHH1 = R_WIH1 + F_PAD          # 128 rows: h1 -> gates, layer 1
R_W2 = R_WHH1 + GP               # 256 rows: [tanh(h1) | h2] -> gates, layer 2
R_W3 = R_W2 + 2 * GP             # 256 rows: [tanh(h2) | h3] -> gates, layer 3
R_B = R_W3 + 2 * GP              # 3 rows  : b1, b2, b3 (gate-padded)
REC_ROWS = R_B + 8               # 664 (8-sublane aligned)

# Row offsets inside the packed FC-head buffer (80 lanes wide).
RFC_W1 = 0                       # 80 rows : Linear(80,80) weight^T  (in, out)
RFC_B1 = 80                      # 1 row   : Linear(80,80) bias
RFC_W2 = 81                      # 1 row   : Linear(80,1) weight (in-dim on lanes)
RFC_B2 = 82                      # 1 row   : Linear(80,1) bias (lane 0)
FC_ROWS = 88


# ----------------------------------------------------------------------------
# Fused kernel
# ----------------------------------------------------------------------------
def _lstm_model_kernel(x_ref, wrec_ref, wfc_ref, out_ref):
    B = out_ref.shape[0]

    # --- packed weights (static ref slices -> plain aligned VMEM loads) ----
    wih1 = wrec_ref[R_WIH1:R_WIH1 + F_PAD, :]        # (16, 512)
    whh1 = wrec_ref[R_WHH1:R_WHH1 + GP, :]           # (128, 512)
    w2 = wrec_ref[R_W2:R_W2 + 2 * GP, :]             # (256, 512) stacked
    w3 = wrec_ref[R_W3:R_W3 + 2 * GP, :]             # (256, 512) stacked
    b1 = wrec_ref[R_B + 0:R_B + 1, :]                # (1, 512)
    b2 = jnp.broadcast_to(wrec_ref[R_B + 1:R_B + 2, :], (B, G4))   # hoisted
    b3 = jnp.broadcast_to(wrec_ref[R_B + 2:R_B + 3, :], (B, G4))   # hoisted

    # --- hoisted per-lane activation constants ------------------------------
    # Gate k (PyTorch order i,f,g,o) occupies lanes [k*GP, k*GP + H).
    # sigmoid(y) = 0.5*tanh(0.5*y) + 0.5, so one tanh over all 512 lanes with
    # per-lane scale/offset covers sigmoid(i,f,o) and tanh(g) together.
    lane = jax.lax.broadcasted_iota(jnp.int32, (B, G4), 1)
    is_g = (lane >= 2 * GP) & (lane < 3 * GP)
    sc = jnp.where(is_g, 1.0, 0.5).astype(jnp.float32)
    off = jnp.where(is_g, 0.0, 0.5).astype(jnp.float32)

    def gates(pre_act):                               # (B,512) -> i, f, g, o
        a = sc * jnp.tanh(sc * pre_act) + off
        return (a[:, 0:GP], a[:, GP:2 * GP],
                a[:, 2 * GP:3 * GP], a[:, 3 * GP:4 * GP])

    # --- layer-1 input projection for all timesteps, off the recurrence ----
    # bias b1 folded in once here instead of once per step.
    xw1 = (jnp.dot(x_ref[...], wih1, preferred_element_type=jnp.float32)
           + jnp.broadcast_to(b1, (T * B, G4)))       # (T*B, 512)

    zeros_h = jnp.zeros((B, GP), jnp.float32)         # padded (B, 128) states
    h1 = zeros_h; c1 = zeros_h
    h2 = zeros_h; c2 = zeros_h
    h3 = zeros_h; c3 = zeros_h
    fc1_acc = jnp.zeros((B, FC), jnp.float32)

    for t in range(T):            # T = 5: static unroll; time is the serial path
        # ---- layer 1: only h1 @ Whh1 sits on the recurrence critical path --
        g1 = xw1[t * B:(t + 1) * B, :] + jnp.dot(
            h1, whh1, preferred_element_type=jnp.float32)
        i1, f1, gg1, o1 = gates(g1)
        c1 = f1 * c1 + i1 * gg1
        h1 = o1 * jnp.tanh(c1)

        # ---- layer 2: single stacked matmul over [tanh(h1) | h2] -----------
        g2 = jnp.dot(jnp.concatenate([jnp.tanh(h1), h2], axis=-1), w2,
                     preferred_element_type=jnp.float32) + b2
        i2, f2, gg2, o2 = gates(g2)
        c2 = f2 * c2 + i2 * gg2
        h2 = o2 * jnp.tanh(c2)

        # ---- layer 3: single stacked matmul over [tanh(h2) | h3] -----------
        g3 = jnp.dot(jnp.concatenate([jnp.tanh(h2), h3], axis=-1), w3,
                     preferred_element_type=jnp.float32) + b3
        i3, f3, gg3, o3 = gates(g3)
        c3 = f3 * c3 + i3 * gg3
        h3 = o3 * jnp.tanh(c3)

        # ---- Flatten + Linear(80,80) fused:
        #      z @ Wfc1 = sum_t h3_t @ Wfc1[t*16:(t+1)*16, :]  (off the path)
        fc1_acc = fc1_acc + jnp.dot(
            h3[:, :H3], wfc_ref[RFC_W1 + t * H3:RFC_W1 + (t + 1) * H3, :],
            preferred_element_type=jnp.float32)

    z1 = jnp.maximum(fc1_acc + wfc_ref[RFC_B1:RFC_B1 + 1, :], 0.0)   # ReLU
    out = jnp.sum(z1 * wfc_ref[RFC_W2:RFC_W2 + 1, :], axis=-1, keepdims=True)
    out_ref[...] = out + wfc_ref[RFC_B2:RFC_B2 + 1, 0:1]


# ----------------------------------------------------------------------------
# Wrapper: wrapper-side weight packing + single pallas_call
# ----------------------------------------------------------------------------
def pack_params(p):
    """Pack PyTorch-layout weights into the two padded kernel buffers."""
    f32 = jnp.float32

    def pad_gates(w_t, hid):
        # w_t: (rows, 4*hid), gate-major (i,f,g,o)
        # -> (rows, 512) with gate k at lanes [k*GP, k*GP + hid); rest zero.
        rows = w_t.shape[0]
        out = jnp.zeros((rows, G4), f32)
        for k in range(4):
            out = out.at[:, k * GP:k * GP + hid].set(w_t[:, k * hid:(k + 1) * hid])
        return out

    def pad_rows(w, rows):
        return jnp.zeros((rows, w.shape[1]), f32).at[:w.shape[0], :].set(w)

    def lstm_blocks(wih, whh, bih, bhh, hid, in_rows):
        # PyTorch layout: wih (4H, F_in), whh (4H, H), biases (4H,)
        wih_p = pad_rows(pad_gates(wih.T.astype(f32), hid), in_rows)
        whh_p = pad_rows(pad_gates(whh.T.astype(f32), hid), GP)
        b_p = pad_gates((bih + bhh).astype(f32).reshape(1, 4 * hid), hid)
        return wih_p, whh_p, b_p

    wih1_p, whh1_p, b1_p = lstm_blocks(p["wih1"], p["whh1"], p["bih1"], p["bhh1"], H1, F_PAD)
    wih2_p, whh2_p, b2_p = lstm_blocks(p["wih2"], p["whh2"], p["bih2"], p["bhh2"], H2, GP)
    wih3_p, whh3_p, b3_p = lstm_blocks(p["wih3"], p["whh3"], p["bih3"], p["bhh3"], H3, GP)

    w_rec = jnp.concatenate([
        wih1_p,                          # rows [  0: 16)
        whh1_p,                          # rows [ 16:144)
        wih2_p, whh2_p,                  # rows [144:400)  stacked layer-2 weight
        wih3_p, whh3_p,                  # rows [400:656)  stacked layer-3 weight
        b1_p, b2_p, b3_p,                # rows [656:659)
        jnp.zeros((REC_ROWS - (R_B + 3), G4), f32),
    ], axis=0)
    assert w_rec.shape == (REC_ROWS, G4)

    w_fc = jnp.zeros((FC_ROWS, FC), f32)
    w_fc = w_fc.at[RFC_W1:RFC_W1 + FC, :].set(p["wfc1"].T.astype(f32))  # (in, out)
    w_fc = w_fc.at[RFC_B1, :].set(p["bfc1"].astype(f32))
    w_fc = w_fc.at[RFC_W2, :].set(p["wfc2"].reshape(FC).astype(f32))    # in on lanes
    w_fc = w_fc.at[RFC_B2, 0].set(p["bfc2"].reshape(()).astype(f32))
    return w_rec, w_fc


def lstm_forward(x, w_rec, w_fc):
    """x: (B, T, F) batch_first, exactly like the PyTorch module's input."""
    B = x.shape[0]
    assert x.shape[1] == T and x.shape[2] == F_IN
    # Time-major rows (t, b), lanes padded 15 -> 16 so the hoisted layer-1
    # projection is a single aligned (T*B, 16) x (16, 512) matmul.
    x_rows = jnp.transpose(x, (1, 0, 2)).reshape(T * B, F_IN)
    x_rows = jnp.pad(x_rows.astype(jnp.float32), ((0, 0), (0, F_PAD - F_IN)))

    vmem = pl.BlockSpec(memory_space=pltpu.MemorySpace.VMEM)
    return pl.pallas_call(
        _lstm_model_kernel,
        out_shape=jax.ShapeDtypeStruct((B, 1), jnp.float32),
        in_specs=[vmem, vmem, vmem],
        out_specs=vmem,
    )(x_rows, w_rec, w_fc)


# ----------------------------------------------------------------------------
# Deterministic synthetic parameters (PyTorch layout) + pure-JAX reference
# ----------------------------------------------------------------------------
def init_params(key):
    keys = iter(jax.random.split(key, 20))

    def nrm(shape, scale=0.1):
        return (scale * jax.random.normal(next(keys), shape)).astype(jnp.float32)

    p = {}
    for idx, (fin, hid) in enumerate([(F_IN, H1), (H1, H2), (H2, H3)], start=1):
        p[f"wih{idx}"] = nrm((4 * hid, fin))     # PyTorch weight_ih_l0
        p[f"whh{idx}"] = nrm((4 * hid, hid))     # PyTorch weight_hh_l0
        p[f"bih{idx}"] = nrm((4 * hid,))
        p[f"bhh{idx}"] = nrm((4 * hid,))
    p["wfc1"] = nrm((FC, FC)); p["bfc1"] = nrm((FC,))    # Linear(80, 80)
    p["wfc2"] = nrm((1, FC));  p["bfc2"] = nrm((1,))     # Linear(80, 1)
    return p


def lstm_reference(x, p):
    """Pure-JAX reference matching the PyTorch module (f32, HIGHEST precision)."""
    hp = jax.lax.Precision.HIGHEST

    def cell(x_t, h, c, wih, whh, bih, bhh):
        hid = h.shape[1]
        g = (jnp.dot(x_t, wih.T, precision=hp)
             + jnp.dot(h, whh.T, precision=hp) + bih + bhh)
        i = jax.nn.sigmoid(g[:, 0:hid])
        f = jax.nn.sigmoid(g[:, hid:2 * hid])
        gg = jnp.tanh(g[:, 2 * hid:3 * hid])
        o = jax.nn.sigmoid(g[:, 3 * hid:4 * hid])
        c = f * c + i * gg
        h = o * jnp.tanh(c)
        return h, c

    def run_layer(seq, idx, hid):
        bsz = seq.shape[0]
        h = jnp.zeros((bsz, hid), jnp.float32)
        c = jnp.zeros((bsz, hid), jnp.float32)
        outs = []
        for t in range(seq.shape[1]):
            h, c = cell(seq[:, t, :], h, c, p[f"wih{idx}"], p[f"whh{idx}"],
                        p[f"bih{idx}"], p[f"bhh{idx}"])
            outs.append(h)
        return jnp.stack(outs, axis=1)

    y1 = jnp.tanh(run_layer(x, 1, H1))
    y2 = jnp.tanh(run_layer(y1, 2, H2))
    y3 = run_layer(y2, 3, H3)                                  # (B, T, 16)
    flat = y3.reshape(x.shape[0], T * H3)                      # nn.Flatten order
    z = jnp.maximum(jnp.dot(flat, p["wfc1"].T, precision=hp) + p["bfc1"], 0.0)
    return jnp.dot(z, p["wfc2"].T, precision=hp) + p["bfc2"]


if __name__ == "__main__":
    key = jax.random.PRNGKey(0)
    kx, kp = jax.random.split(key)

    B = 2
    x = jax.random.normal(kx, (B, T, F_IN), dtype=jnp.float32)
    params = init_params(kp)
    w_rec, w_fc = pack_params(params)

    out = jax.block_until_ready(lstm_forward(x, w_rec, w_fc))
    ref = jax.block_until_ready(lstm_reference(x, params))

    assert out.shape == (B, 1)
    assert bool(jnp.all(jnp.isfinite(out)))
    assert float(jnp.max(jnp.abs(out - ref))) < 1e-3, (out, ref)
    print("KERNEL_OK")
</pallas_src>

<mosaic_0001>
module attributes {stable_mosaic.version = 11 : i64} {
  func.func @_lstm_model_kernel(%arg0: memref<10x16xf32, #tpu.memory_space<vmem>>, %arg1: memref<664x512xf32, #tpu.memory_space<vmem>>, %arg2: memref<88x80xf32, #tpu.memory_space<vmem>>, %arg3: memref<2x1xf32, #tpu.memory_space<vmem>>) attributes {dimension_semantics = [], scalar_prefetch = 0 : i64, scratch_operands = 0 : i64, tpu.core_type = #tpu.core_type<tc>} {
    %c0 = arith.constant 0 : index
    %c0_0 = arith.constant 0 : index
    %0 = vector.load %arg1[%c0, %c0_0] : memref<664x512xf32, #tpu.memory_space<vmem>>, vector<16x512xf32>
    %c16 = arith.constant 16 : index
    %c0_1 = arith.constant 0 : index
    %1 = vector.load %arg1[%c16, %c0_1] : memref<664x512xf32, #tpu.memory_space<vmem>>, vector<128x512xf32>
    %c144 = arith.constant 144 : index
    %c0_2 = arith.constant 0 : index
    %2 = vector.load %arg1[%c144, %c0_2] : memref<664x512xf32, #tpu.memory_space<vmem>>, vector<256x512xf32>
    %c400 = arith.constant 400 : index
    %c0_3 = arith.constant 0 : index
    %3 = vector.load %arg1[%c400, %c0_3] : memref<664x512xf32, #tpu.memory_space<vmem>>, vector<256x512xf32>
    %c656 = arith.constant 656 : index
    %c0_4 = arith.constant 0 : index
    %4 = vector.load %arg1[%c656, %c0_4] : memref<664x512xf32, #tpu.memory_space<vmem>>, vector<1x512xf32>
    %c657 = arith.constant 657 : index
    %c0_5 = arith.constant 0 : index
    %5 = vector.load %arg1[%c657, %c0_5] : memref<664x512xf32, #tpu.memory_space<vmem>>, vector<1x512xf32>
    %6 = vector.shape_cast %5 : vector<1x512xf32> to vector<1x512xf32>
    %7 = vector.broadcast %6 : vector<1x512xf32> to vector<2x512xf32>
    %c658 = arith.constant 658 : index
    %c0_6 = arith.constant 0 : index
    %8 = vector.load %arg1[%c658, %c0_6] : memref<664x512xf32, #tpu.memory_space<vmem>>, vector<1x512xf32>
    %9 = vector.shape_cast %8 : vector<1x512xf32> to vector<1x512xf32>
    %10 = vector.broadcast %9 : vector<1x512xf32> to vector<2x512xf32>
    %11 = tpu.iota {dimensions = array<i32: 1>} : vector<2x512xi32>
    %c256_i32 = arith.constant 256 : i32
    %12 = vector.broadcast %c256_i32 : i32 to vector<2x512xi32>
    %13 = arith.cmpi sge, %11, %12 : vector<2x512xi32>
    %c384_i32 = arith.constant 384 : i32
    %14 = vector.broadcast %c384_i32 : i32 to vector<2x512xi32>
    %15 = arith.cmpi slt, %11, %14 : vector<2x512xi32>
    %16 = arith.andi %13, %15 : vector<2x512xi1>
    %cst = arith.constant 1.000000e+00 : f32
    %cst_7 = arith.constant 5.000000e-01 : f32
    %17 = vector.broadcast %cst : f32 to vector<2x512xf32>
    %18 = vector.broadcast %cst_7 : f32 to vector<2x512xf32>
    %19 = arith.select %16, %17, %18 : vector<2x512xi1>, vector<2x512xf32>
    %cst_8 = arith.constant 0.000000e+00 : f32
    %cst_9 = arith.constant 5.000000e-01 : f32
    %20 = vector.broadcast %cst_8 : f32 to vector<2x512xf32>
    %21 = vector.broadcast %cst_9 : f32 to vector<2x512xf32>
    %22 = arith.select %16, %20, %21 : vector<2x512xi1>, vector<2x512xf32>
    %c0_10 = arith.constant 0 : index
    %c0_11 = arith.constant 0 : index
    %23 = vector.load %arg0[%c0_10, %c0_11] : memref<10x16xf32, #tpu.memory_space<vmem>>, vector<10x16xf32>
    %cst_12 = arith.constant dense<0.000000e+00> : vector<10x512xf32>
    %24 = tpu.matmul %23, %0, %cst_12 {dimension_numbers = #tpu.dot_dimension_numbers<[1], [0], [0], [1], [0, 0, 1, 1], [], []>} : vector<10x16xf32>, vector<16x512xf32>, vector<10x512xf32> -> vector<10x512xf32>
    %25 = vector.shape_cast %4 : vector<1x512xf32> to vector<1x512xf32>
    %26 = vector.broadcast %25 : vector<1x512xf32> to vector<10x512xf32>
    %27 = arith.addf %24, %26 : vector<10x512xf32>
    %cst_13 = arith.constant 0.000000e+00 : f32
    %28 = vector.broadcast %cst_13 : f32 to vector<2x128xf32>
    %cst_14 = arith.constant 0.000000e+00 : f32
    %29 = vector.broadcast %cst_14 : f32 to vector<2x80xf32>
    %30 = vector.extract_strided_slice %27 {offsets = [0, 0], sizes = [2, 512], strides = [1, 1]} : vector<10x512xf32> to vector<2x512xf32>
    %cst_15 = arith.constant dense<0.000000e+00> : vector<2x512xf32>
    %31 = tpu.matmul %28, %1, %cst_15 {dimension_numbers = #tpu.dot_dimension_numbers<[1], [0], [0], [1], [0, 0, 1, 1], [], []>} : vector<2x128xf32>, vector<128x512xf32>, vector<2x512xf32> -> vector<2x512xf32>
    %32 = arith.addf %30, %31 : vector<2x512xf32>
    %33 = arith.mulf %19, %32 : vector<2x512xf32>
    %34 = math.tanh %33 : vector<2x512xf32>
    %35 = arith.mulf %19, %34 : vector<2x512xf32>
    %36 = arith.addf %35, %22 : vector<2x512xf32>
    %37 = vector.extract_strided_slice %36 {offsets = [0, 0], sizes = [2, 128], strides = [1, 1]} : vector<2x512xf32> to vector<2x128xf32>
    %38 = vector.extract_strided_slice %36 {offsets = [0, 128], sizes = [2, 128], strides = [1, 1]} : vector<2x512xf32> to vector<2x128xf32>
    %39 = vector.extract_strided_slice %36 {offsets = [0, 256], sizes = [2, 128], strides = [1, 1]} : vector<2x512xf32> to vector<2x128xf32>
    %40 = vector.extract_strided_slice %36 {offsets = [0, 384], sizes = [2, 128], strides = [1, 1]} : vector<2x512xf32> to vector<2x128xf32>
    %41 = arith.mulf %38, %28 : vector<2x128xf32>
    %42 = arith.mulf %37, %39 : vector<2x128xf32>
    %43 = arith.addf %41, %42 : vector<2x128xf32>
    %44 = math.tanh %43 : vector<2x128xf32>
    %45 = arith.mulf %40, %44 : vector<2x128xf32>
    %46 = math.tanh %45 : vector<2x128xf32>
    %47 = tpu.concatenate %46, %28 in 1 : vector<2x128xf32>, vector<2x128xf32> -> vector<2x256xf32>
    %cst_16 = arith.constant dense<0.000000e+00> : vector<2x512xf32>
    %48 = tpu.matmul %47, %2, %cst_16 {dimension_numbers = #tpu.dot_dimension_numbers<[1], [0], [0], [1], [0, 0, 1, 1], [], []>} : vector<2x256xf32>, vector<256x512xf32>, vector<2x512xf32> -> vector<2x512xf32>
    %49 = arith.addf %48, %7 : vector<2x512xf32>
    %50 = arith.mulf %19, %49 : vector<2x512xf32>
    %51 = math.tanh %50 : vector<2x512xf32>
    %52 = arith.mulf %19, %51 : vector<2x512xf32>
    %53 = arith.addf %52, %22 : vector<2x512xf32>
    %54 = vector.extract_strided_slice %53 {offsets = [0, 0], sizes = [2, 128], strides = [1, 1]} : vector<2x512xf32> to vector<2x128xf32>
    %55 = vector.extract_strided_slice %53 {offsets = [0, 128], sizes = [2, 128], strides = [1, 1]} : vector<2x512xf32> to vector<2x128xf32>
    %56 = vector.extract_strided_slice %53 {offsets = [0, 256], sizes = [2, 128], strides = [1, 1]} : vector<2x512xf32> to vector<2x128xf32>
    %57 = vector.extract_strided_slice %53 {offsets = [0, 384], sizes = [2, 128], strides = [1, 1]} : vector<2x512xf32> to vector<2x128xf32>
    %58 = arith.mulf %55, %28 : vector<2x128xf32>
    %59 = arith.mulf %54, %56 : vector<2x128xf32>
    %60 = arith.addf %58, %59 : vector<2x128xf32>
    %61 = math.tanh %60 : vector<2x128xf32>
    %62 = arith.mulf %57, %61 : vector<2x128xf32>
    %63 = math.tanh %62 : vector<2x128xf32>
    %64 = tpu.concatenate %63, %28 in 1 : vector<2x128xf32>, vector<2x128xf32> -> vector<2x256xf32>
    %cst_17 = arith.constant dense<0.000000e+00> : vector<2x512xf32>
    %65 = tpu.matmul %64, %3, %cst_17 {dimension_numbers = #tpu.dot_dimension_numbers<[1], [0], [0], [1], [0, 0, 1, 1], [], []>} : vector<2x256xf32>, vector<256x512xf32>, vector<2x512xf32> -> vector<2x512xf32>
    %66 = arith.addf %65, %10 : vector<2x512xf32>
    %67 = arith.mulf %19, %66 : vector<2x512xf32>
    %68 = math.tanh %67 : vector<2x512xf32>
    %69 = arith.mulf %19, %68 : vector<2x512xf32>
    %70 = arith.addf %69, %22 : vector<2x512xf32>
    %71 = vector.extract_strided_slice %70 {offsets = [0, 0], sizes = [2, 128], strides = [1, 1]} : vector<2x512xf32> to vector<2x128xf32>
    %72 = vector.extract_strided_slice %70 {offsets = [0, 128], sizes = [2, 128], strides = [1, 1]} : vector<2x512xf32> to vector<2x128xf32>
    %73 = vector.extract_strided_slice %70 {offsets = [0, 256], sizes = [2, 128], strides = [1, 1]} : vector<2x512xf32> to vector<2x128xf32>
    %74 = vector.extract_strided_slice %70 {offsets = [0, 384], sizes = [2, 128], strides = [1, 1]} : vector<2x512xf32> to vector<2x128xf32>
    %75 = arith.mulf %72, %28 : vector<2x128xf32>
    %76 = arith.mulf %71, %73 : vector<2x128xf32>
    %77 = arith.addf %75, %76 : vector<2x128xf32>
    %78 = math.tanh %77 : vector<2x128xf32>
    %79 = arith.mulf %74, %78 : vector<2x128xf32>
    %80 = vector.extract_strided_slice %79 {offsets = [0, 0], sizes = [2, 16], strides = [1, 1]} : vector<2x128xf32> to vector<2x16xf32>
    %c0_18 = arith.constant 0 : index
    %c0_19 = arith.constant 0 : index
    %81 = vector.load %arg2[%c0_18, %c0_19] : memref<88x80xf32, #tpu.memory_space<vmem>>, vector<16x80xf32>
    %cst_20 = arith.constant dense<0.000000e+00> : vector<2x80xf32>
    %82 = tpu.matmul %80, %81, %cst_20 {dimension_numbers = #tpu.dot_dimension_numbers<[1], [0], [0], [1], [0, 0, 1, 1], [], []>} : vector<2x16xf32>, vector<16x80xf32>, vector<2x80xf32> -> vector<2x80xf32>
    %83 = arith.addf %29, %82 : vector<2x80xf32>
    %84 = vector.extract_strided_slice %27 {offsets = [2, 0], sizes = [2, 512], strides = [1, 1]} : vector<10x512xf32> to vector<2x512xf32>
    %cst_21 = arith.constant dense<0.000000e+00> : vector<2x512xf32>
    %85 = tpu.matmul %45, %1, %cst_21 {dimension_numbers = #tpu.dot_dimension_numbers<[1], [0], [0], [1], [0, 0, 1, 1], [], []>} : vector<2x128xf32>, vector<128x512xf32>, vector<2x512xf32> -> vector<2x512xf32>
    %86 = arith.addf %84, %85 : vector<2x512xf32>
    %87 = arith.mulf %19, %86 : vector<2x512xf32>
    %88 = math.tanh %87 : vector<2x512xf32>
    %89 = arith.mulf %19, %88 : vector<2x512xf32>
    %90 = arith.addf %89, %22 : vector<2x512xf32>
    %91 = vector.extract_strided_slice %90 {offsets = [0, 0], sizes = [2, 128], strides = [1, 1]} : vector<2x512xf32> to vector<2x128xf32>
    %92 = vector.extract_strided_slice %90 {offsets = [0, 128], sizes = [2, 128], strides = [1, 1]} : vector<2x512xf32> to vector<2x128xf32>
    %93 = vector.extract_strided_slice %90 {offsets = [0, 256], sizes = [2, 128], strides = [1, 1]} : vector<2x512xf32> to vector<2x128xf32>
    %94 = vector.extract_strided_slice %90 {offsets = [0, 384], sizes = [2, 128], strides = [1, 1]} : vector<2x512xf32> to vector<2x128xf32>
    %95 = arith.mulf %92, %43 : vector<2x128xf32>
    %96 = arith.mulf %91, %93 : vector<2x128xf32>
    %97 = arith.addf %95, %96 : vector<2x128xf32>
    %98 = math.tanh %97 : vector<2x128xf32>
    %99 = arith.mulf %94, %98 : vector<2x128xf32>
    %100 = math.tanh %99 : vector<2x128xf32>
    %101 = tpu.concatenate %100, %62 in 1 : vector<2x128xf32>, vector<2x128xf32> -> vector<2x256xf32>
    %cst_22 = arith.constant dense<0.000000e+00> : vector<2x512xf32>
    %102 = tpu.matmul %101, %2, %cst_22 {dimension_numbers = #tpu.dot_dimension_numbers<[1], [0], [0], [1], [0, 0, 1, 1], [], []>} : vector<2x256xf32>, vector<256x512xf32>, vector<2x512xf32> -> vector<2x512xf32>
    %103 = arith.addf %102, %7 : vector<2x512xf32>
    %104 = arith.mulf %19, %103 : vector<2x512xf32>
    %105 = math.tanh %104 : vector<2x512xf32>
    %106 = arith.mulf %19, %105 : vector<2x512xf32>
    %107 = arith.addf %106, %22 : vector<2x512xf32>
    %108 = vector.extract_strided_slice %107 {offsets = [0, 0], sizes = [2, 128], strides = [1, 1]} : vector<2x512xf32> to vector<2x128xf32>
    %109 = vector.extract_strided_slice %107 {offsets = [0, 128], sizes = [2, 128], strides = [1, 1]} : vector<2x512xf32> to vector<2x128xf32>
    %110 = vector.extract_strided_slice %107 {offsets = [0, 256], sizes = [2, 128], strides = [1, 1]} : vector<2x512xf32> to vector<2x128xf32>
    %111 = vector.extract_strided_slice %107 {offsets = [0, 384], sizes = [2, 128], strides = [1, 1]} : vector<2x512xf32> to vector<2x128xf32>
    %112 = arith.mulf %109, %60 : vector<2x128xf32>
    %113 = arith.mulf %108, %110 : vector<2x128xf32>
    %114 = arith.addf %112, %113 : vector<2x128xf32>
    %115 = math.tanh %114 : vector<2x128xf32>
    %116 = arith.mulf %111, %115 : vector<2x128xf32>
    %117 = math.tanh %116 : vector<2x128xf32>
    %118 = tpu.concatenate %117, %79 in 1 : vector<2x128xf32>, vector<2x128xf32> -> vector<2x256xf32>
    %cst_23 = arith.constant dense<0.000000e+00> : vector<2x512xf32>
    %119 = tpu.matmul %118, %3, %cst_23 {dimension_numbers = #tpu.dot_dimension_numbers<[1], [0], [0], [1], [0, 0, 1, 1], [], []>} : vector<2x256xf32>, vector<256x512xf32>, vector<2x512xf32> -> vector<2x512xf32>
    %120 = arith.addf %119, %10 : vector<2x512xf32>
    %121 = arith.mulf %19, %120 : vector<2x512xf32>
    %122 = math.tanh %121 : vector<2x512xf32>
    %123 = arith.mulf %19, %122 : vector<2x512xf32>
    %124 = arith.addf %123, %22 : vector<2x512xf32>
    %125 = vector.extract_strided_slice %124 {offsets = [0, 0], sizes = [2, 128], strides = [1, 1]} : vector<2x512xf32> to vector<2x128xf32>
    %126 = vector.extract_strided_slice %124 {offsets = [0, 128], sizes = [2, 128], strides = [1, 1]} : vector<2x512xf32> to vector<2x128xf32>
    %127 = vector.extract_strided_slice %124 {offsets = [0, 256], sizes = [2, 128], strides = [1, 1]} : vector<2x512xf32> to vector<2x128xf32>
    %128 = vector.extract_strided_slice %124 {offsets = [0, 384], sizes = [2, 128], strides = [1, 1]} : vector<2x512xf32> to vector<2x128xf32>
    %129 = arith.mulf %126, %77 : vector<2x128xf32>
    %130 = arith.mulf %125, %127 : vector<2x128xf32>
    %131 = arith.addf %129, %130 : vector<2x128xf32>
    %132 = math.tanh %131 : vector<2x128xf32>
    %133 = arith.mulf %128, %132 : vector<2x128xf32>
    %134 = vector.extract_strided_slice %133 {offsets = [0, 0], sizes = [2, 16], strides = [1, 1]} : vector<2x128xf32> to vector<2x16xf32>
    %c16_24 = arith.constant 16 : index
    %c0_25 = arith.constant 0 : index
    %135 = vector.load %arg2[%c16_24, %c0_25] : memref<88x80xf32, #tpu.memory_space<vmem>>, vector<16x80xf32>
    %cst_26 = arith.constant dense<0.000000e+00> : vector<2x80xf32>
    %136 = tpu.matmul %134, %135, %cst_26 {dimension_numbers = #tpu.dot_dimension_numbers<[1], [0], [0], [1], [0, 0, 1, 1], [], []>} : vector<2x16xf32>, vector<16x80xf32>, vector<2x80xf32> -> vector<2x80xf32>
    %137 = arith.addf %83, %136 : vector<2x80xf32>
    %138 = vector.extract_strided_slice %27 {offsets = [4, 0], sizes = [2, 512], strides = [1, 1]} : vector<10x512xf32> to vector<2x512xf32>
    %cst_27 = arith.constant dense<0.000000e+00> : vector<2x512xf32>
    %139 = tpu.matmul %99, %1, %cst_27 {dimension_numbers = #tpu.dot_dimension_numbers<[1], [0], [0], [1], [0, 0, 1, 1], [], []>} : vector<2x128xf32>, vector<128x512xf32>, vector<2x512xf32> -> vector<2x512xf32>
    %140 = arith.addf %138, %139 : vector<2x512xf32>
    %141 = arith.mulf %19, %140 : vector<2x512xf32>
    %142 = math.tanh %141 : vector<2x512xf32>
    %143 = arith.mulf %19, %142 : vector<2x512xf32>
    %144 = arith.addf %143, %22 : vector<2x512xf32>
    %145 = vector.extract_strided_slice %144 {offsets = [0, 0], sizes = [2, 128], strides = [1, 1]} : vector<2x512xf32> to vector<2x128xf32>
    %146 = vector.extract_strided_slice %144 {offsets = [0, 128], sizes = [2, 128], strides = [1, 1]} : vector<2x512xf32> to vector<2x128xf32>
    %147 = vector.extract_strided_slice %144 {offsets = [0, 256], sizes = [2, 128], strides = [1, 1]} : vector<2x512xf32> to vector<2x128xf32>
    %148 = vector.extract_strided_slice %144 {offsets = [0, 384], sizes = [2, 128], strides = [1, 1]} : vector<2x512xf32> to vector<2x128xf32>
    %149 = arith.mulf %146, %97 : vector<2x128xf32>
    %150 = arith.mulf %145, %147 : vector<2x128xf32>
    %151 = arith.addf %149, %150 : vector<2x128xf32>
    %152 = math.tanh %151 : vector<2x128xf32>
    %153 = arith.mulf %148, %152 : vector<2x128xf32>
    %154 = math.tanh %153 : vector<2x128xf32>
    %155 = tpu.concatenate %154, %116 in 1 : vector<2x128xf32>, vector<2x128xf32> -> vector<2x256xf32>
    %cst_28 = arith.constant dense<0.000000e+00> : vector<2x512xf32>
    %156 = tpu.matmul %155, %2, %cst_28 {dimension_numbers = #tpu.dot_dimension_numbers<[1], [0], [0], [1], [0, 0, 1, 1], [], []>} : vector<2x256xf32>, vector<256x512xf32>, vector<2x512xf32> -> vector<2x512xf32>
    %157 = arith.addf %156, %7 : vector<2x512xf32>
    %158 = arith.mulf %19, %157 : vector<2x512xf32>
    %159 = math.tanh %158 : vector<2x512xf32>
    %160 = arith.mulf %19, %159 : vector<2x512xf32>
    %161 = arith.addf %160, %22 : vector<2x512xf32>
    %162 = vector.extract_strided_slice %161 {offsets = [0, 0], sizes = [2, 128], strides = [1, 1]} : vector<2x512xf32> to vector<2x128xf32>
    %163 = vector.extract_strided_slice %161 {offsets = [0, 128], sizes = [2, 128], strides = [1, 1]} : vector<2x512xf32> to vector<2x128xf32>
    %164 = vector.extract_strided_slice %161 {offsets = [0, 256], sizes = [2, 128], strides = [1, 1]} : vector<2x512xf32> to vector<2x128xf32>
    %165 = vector.extract_strided_slice %161 {offsets = [0, 384], sizes = [2, 128], strides = [1, 1]} : vector<2x512xf32> to vector<2x128xf32>
    %166 = arith.mulf %163, %114 : vector<2x128xf32>
    %167 = arith.mulf %162, %164 : vector<2x128xf32>
    %168 = arith.addf %166, %167 : vector<2x128xf32>
    %169 = math.tanh %168 : vector<2x128xf32>
    %170 = arith.mulf %165, %169 : vector<2x128xf32>
    %171 = math.tanh %170 : vector<2x128xf32>
    %172 = tpu.concatenate %171, %133 in 1 : vector<2x128xf32>, vector<2x128xf32> -> vector<2x256xf32>
    %cst_29 = arith.constant dense<0.000000e+00> : vector<2x512xf32>
    %173 = tpu.matmul %172, %3, %cst_29 {dimension_numbers = #tpu.dot_dimension_numbers<[1], [0], [0], [1], [0, 0, 1, 1], [], []>} : vector<2x256xf32>, vector<256x512xf32>, vector<2x512xf32> -> vector<2x512xf32>
    %174 = arith.addf %173, %10 : vector<2x512xf32>
    %175 = arith.mulf %19, %174 : vector<2x512xf32>
    %176 = math.tanh %175 : vector<2x512xf32>
    %177 = arith.mulf %19, %176 : vector<2x512xf32>
    %178 = arith.addf %177, %22 : vector<2x512xf32>
    %179 = vector.extract_strided_slice %178 {offsets = [0, 0], sizes = [2, 128], strides = [1, 1]} : vector<2x512xf32> to vector<2x128xf32>
    %180 = vector.extract_strided_slice %178 {offsets = [0, 128], sizes = [2, 128], strides = [1, 1]} : vector<2x512xf32> to vector<2x128xf32>
    %181 = vector.extract_strided_slice %178 {offsets = [0, 256], sizes = [2, 128], strides = [1, 1]} : vector<2x512xf32> to vector<2x128xf32>
    %182 = vector.extract_strided_slice %178 {offsets = [0, 384], sizes = [2, 128], strides = [1, 1]} : vector<2x512xf32> to vector<2x128xf32>
    %183 = arith.mulf %180, %131 : vector<2x128xf32>
    %184 = arith.mulf %179, %181 : vector<2x128xf32>
    %185 = arith.addf %183, %184 : vector<2x128xf32>
    %186 = math.tanh %185 : vector<2x128xf32>
    %187 = arith.mulf %182, %186 : vector<2x128xf32>
    %188 = vector.extract_strided_slice %187 {offsets = [0, 0], sizes = [2, 16], strides = [1, 1]} : vector<2x128xf32> to vector<2x16xf32>
    %c32 = arith.constant 32 : index
    %c0_30 = arith.constant 0 : index
    %189 = vector.load %arg2[%c32, %c0_30] : memref<88x80xf32, #tpu.memory_space<vmem>>, vector<16x80xf32>
    %cst_31 = arith.constant dense<0.000000e+00> : vector<2x80xf32>
    %190 = tpu.matmul %188, %189, %cst_31 {dimension_numbers = #tpu.dot_dimension_numbers<[1], [0], [0], [1], [0, 0, 1, 1], [], []>} : vector<2x16xf32>, vector<16x80xf32>, vector<2x80xf32> -> vector<2x80xf32>
    %191 = arith.addf %137, %190 : vector<2x80xf32>
    %192 = vector.extract_strided_slice %27 {offsets = [6, 0], sizes = [2, 512], strides = [1, 1]} : vector<10x512xf32> to vector<2x512xf32>
    %cst_32 = arith.constant dense<0.000000e+00> : vector<2x512xf32>
    %193 = tpu.matmul %153, %1, %cst_32 {dimension_numbers = #tpu.dot_dimension_numbers<[1], [0], [0], [1], [0, 0, 1, 1], [], []>} : vector<2x128xf32>, vector<128x512xf32>, vector<2x512xf32> -> vector<2x512xf32>
    %194 = arith.addf %192, %193 : vector<2x512xf32>
    %195 = arith.mulf %19, %194 : vector<2x512xf32>
    %196 = math.tanh %195 : vector<2x512xf32>
    %197 = arith.mulf %19, %196 : vector<2x512xf32>
    %198 = arith.addf %197, %22 : vector<2x512xf32>
    %199 = vector.extract_strided_slice %198 {offsets = [0, 0], sizes = [2, 128], strides = [1, 1]} : vector<2x512xf32> to vector<2x128xf32>
    %200 = vector.extract_strided_slice %198 {offsets = [0, 128], sizes = [2, 128], strides = [1, 1]} : vector<2x512xf32> to vector<2x128xf32>
    %201 = vector.extract_strided_slice %198 {offsets = [0, 256], sizes = [2, 128], strides = [1, 1]} : vector<2x512xf32> to vector<2x128xf32>
    %202 = vector.extract_strided_slice %198 {offsets = [0, 384], sizes = [2, 128], strides = [1, 1]} : vector<2x512xf32> to vector<2x128xf32>
    %203 = arith.mulf %200, %151 : vector<2x128xf32>
    %204 = arith.mulf %199, %201 : vector<2x128xf32>
    %205 = arith.addf %203, %204 : vector<2x128xf32>
    %206 = math.tanh %205 : vector<2x128xf32>
    %207 = arith.mulf %202, %206 : vector<2x128xf32>
    %208 = math.tanh %207 : vector<2x128xf32>
    %209 = tpu.concatenate %208, %170 in 1 : vector<2x128xf32>, vector<2x128xf32> -> vector<2x256xf32>
    %cst_33 = arith.constant dense<0.000000e+00> : vector<2x512xf32>
    %210 = tpu.matmul %209, %2, %cst_33 {dimension_numbers = #tpu.dot_dimension_numbers<[1], [0], [0], [1], [0, 0, 1, 1], [], []>} : vector<2x256xf32>, vector<256x512xf32>, vector<2x512xf32> -> vector<2x512xf32>
    %211 = arith.addf %210, %7 : vector<2x512xf32>
    %212 = arith.mulf %19, %211 : vector<2x512xf32>
    %213 = math.tanh %212 : vector<2x512xf32>
    %214 = arith.mulf %19, %213 : vector<2x512xf32>
    %215 = arith.addf %214, %22 : vector<2x512xf32>
    %216 = vector.extract_strided_slice %215 {offsets = [0, 0], sizes = [2, 128], strides = [1, 1]} : vector<2x512xf32> to vector<2x128xf32>
    %217 = vector.extract_strided_slice %215 {offsets = [0, 128], sizes = [2, 128], strides = [1, 1]} : vector<2x512xf32> to vector<2x128xf32>
    %218 = vector.extract_strided_slice %215 {offsets = [0, 256], sizes = [2, 128], strides = [1, 1]} : vector<2x512xf32> to vector<2x128xf32>
    %219 = vector.extract_strided_slice %215 {offsets = [0, 384], sizes = [2, 128], strides = [1, 1]} : vector<2x512xf32> to vector<2x128xf32>
    %220 = arith.mulf %217, %168 : vector<2x128xf32>
    %221 = arith.mulf %216, %218 : vector<2x128xf32>
    %222 = arith.addf %220, %221 : vector<2x128xf32>
    %223 = math.tanh %222 : vector<2x128xf32>
    %224 = arith.mulf %219, %223 : vector<2x128xf32>
    %225 = math.tanh %224 : vector<2x128xf32>
    %226 = tpu.concatenate %225, %187 in 1 : vector<2x128xf32>, vector<2x128xf32> -> vector<2x256xf32>
    %cst_34 = arith.constant dense<0.000000e+00> : vector<2x512xf32>
    %227 = tpu.matmul %226, %3, %cst_34 {dimension_numbers = #tpu.dot_dimension_numbers<[1], [0], [0], [1], [0, 0, 1, 1], [], []>} : vector<2x256xf32>, vector<256x512xf32>, vector<2x512xf32> -> vector<2x512xf32>
    %228 = arith.addf %227, %10 : vector<2x512xf32>
    %229 = arith.mulf %19, %228 : vector<2x512xf32>
    %230 = math.tanh %229 : vector<2x512xf32>
    %231 = arith.mulf %19, %230 : vector<2x512xf32>
    %232 = arith.addf %231, %22 : vector<2x512xf32>
    %233 = vector.extract_strided_slice %232 {offsets = [0, 0], sizes = [2, 128], strides = [1, 1]} : vector<2x512xf32> to vector<2x128xf32>
    %234 = vector.extract_strided_slice %232 {offsets = [0, 128], sizes = [2, 128], strides = [1, 1]} : vector<2x512xf32> to vector<2x128xf32>
    %235 = vector.extract_strided_slice %232 {offsets = [0, 256], sizes = [2, 128], strides = [1, 1]} : vector<2x512xf32> to vector<2x128xf32>
    %236 = vector.extract_strided_slice %232 {offsets = [0, 384], sizes = [2, 128], strides = [1, 1]} : vector<2x512xf32> to vector<2x128xf32>
    %237 = arith.mulf %234, %185 : vector<2x128xf32>
    %238 = arith.mulf %233, %235 : vector<2x128xf32>
    %239 = arith.addf %237, %238 : vector<2x128xf32>
    %240 = math.tanh %239 : vector<2x128xf32>
    %241 = arith.mulf %236, %240 : vector<2x128xf32>
    %242 = vector.extract_strided_slice %241 {offsets = [0, 0], sizes = [2, 16], strides = [1, 1]} : vector<2x128xf32> to vector<2x16xf32>
    %c48 = arith.constant 48 : index
    %c0_35 = arith.constant 0 : index
    %243 = vector.load %arg2[%c48, %c0_35] : memref<88x80xf32, #tpu.memory_space<vmem>>, vector<16x80xf32>
    %cst_36 = arith.constant dense<0.000000e+00> : vector<2x80xf32>
    %244 = tpu.matmul %242, %243, %cst_36 {dimension_numbers = #tpu.dot_dimension_numbers<[1], [0], [0], [1], [0, 0, 1, 1], [], []>} : vector<2x16xf32>, vector<16x80xf32>, vector<2x80xf32> -> vector<2x80xf32>
    %245 = arith.addf %191, %244 : vector<2x80xf32>
    %246 = vector.extract_strided_slice %27 {offsets = [8, 0], sizes = [2, 512], strides = [1, 1]} : vector<10x512xf32> to vector<2x512xf32>
    %cst_37 = arith.constant dense<0.000000e+00> : vector<2x512xf32>
    %247 = tpu.matmul %207, %1, %cst_37 {dimension_numbers = #tpu.dot_dimension_numbers<[1], [0], [0], [1], [0, 0, 1, 1], [], []>} : vector<2x128xf32>, vector<128x512xf32>, vector<2x512xf32> -> vector<2x512xf32>
    %248 = arith.addf %246, %247 : vector<2x512xf32>
    %249 = arith.mulf %19, %248 : vector<2x512xf32>
    %250 = math.tanh %249 : vector<2x512xf32>
    %251 = arith.mulf %19, %250 : vector<2x512xf32>
    %252 = arith.addf %251, %22 : vector<2x512xf32>
    %253 = vector.extract_strided_slice %252 {offsets = [0, 0], sizes = [2, 128], strides = [1, 1]} : vector<2x512xf32> to vector<2x128xf32>
    %254 = vector.extract_strided_slice %252 {offsets = [0, 128], sizes = [2, 128], strides = [1, 1]} : vector<2x512xf32> to vector<2x128xf32>
    %255 = vector.extract_strided_slice %252 {offsets = [0, 256], sizes = [2, 128], strides = [1, 1]} : vector<2x512xf32> to vector<2x128xf32>
    %256 = vector.extract_strided_slice %252 {offsets = [0, 384], sizes = [2, 128], strides = [1, 1]} : vector<2x512xf32> to vector<2x128xf32>
    %257 = arith.mulf %254, %205 : vector<2x128xf32>
    %258 = arith.mulf %253, %255 : vector<2x128xf32>
    %259 = arith.addf %257, %258 : vector<2x128xf32>
    %260 = math.tanh %259 : vector<2x128xf32>
    %261 = arith.mulf %256, %260 : vector<2x128xf32>
    %262 = math.tanh %261 : vector<2x128xf32>
    %263 = tpu.concatenate %262, %224 in 1 : vector<2x128xf32>, vector<2x128xf32> -> vector<2x256xf32>
    %cst_38 = arith.constant dense<0.000000e+00> : vector<2x512xf32>
    %264 = tpu.matmul %263, %2, %cst_38 {dimension_numbers = #tpu.dot_dimension_numbers<[1], [0], [0], [1], [0, 0, 1, 1], [], []>} : vector<2x256xf32>, vector<256x512xf32>, vector<2x512xf32> -> vector<2x512xf32>
    %265 = arith.addf %264, %7 : vector<2x512xf32>
    %266 = arith.mulf %19, %265 : vector<2x512xf32>
    %267 = math.tanh %266 : vector<2x512xf32>
    %268 = arith.mulf %19, %267 : vector<2x512xf32>
    %269 = arith.addf %268, %22 : vector<2x512xf32>
    %270 = vector.extract_strided_slice %269 {offsets = [0, 0], sizes = [2, 128], strides = [1, 1]} : vector<2x512xf32> to vector<2x128xf32>
    %271 = vector.extract_strided_slice %269 {offsets = [0, 128], sizes = [2, 128], strides = [1, 1]} : vector<2x512xf32> to vector<2x128xf32>
    %272 = vector.extract_strided_slice %269 {offsets = [0, 256], sizes = [2, 128], strides = [1, 1]} : vector<2x512xf32> to vector<2x128xf32>
    %273 = vector.extract_strided_slice %269 {offsets = [0, 384], sizes = [2, 128], strides = [1, 1]} : vector<2x512xf32> to vector<2x128xf32>
    %274 = arith.mulf %271, %222 : vector<2x128xf32>
    %275 = arith.mulf %270, %272 : vector<2x128xf32>
    %276 = arith.addf %274, %275 : vector<2x128xf32>
    %277 = math.tanh %276 : vector<2x128xf32>
    %278 = arith.mulf %273, %277 : vector<2x128xf32>
    %279 = math.tanh %278 : vector<2x128xf32>
    %280 = tpu.concatenate %279, %241 in 1 : vector<2x128xf32>, vector<2x128xf32> -> vector<2x256xf32>
    %cst_39 = arith.constant dense<0.000000e+00> : vector<2x512xf32>
    %281 = tpu.matmul %280, %3, %cst_39 {dimension_numbers = #tpu.dot_dimension_numbers<[1], [0], [0], [1], [0, 0, 1, 1], [], []>} : vector<2x256xf32>, vector<256x512xf32>, vector<2x512xf32> -> vector<2x512xf32>
    %282 = arith.addf %281, %10 : vector<2x512xf32>
    %283 = arith.mulf %19, %282 : vector<2x512xf32>
    %284 = math.tanh %283 : vector<2x512xf32>
    %285 = arith.mulf %19, %284 : vector<2x512xf32>
    %286 = arith.addf %285, %22 : vector<2x512xf32>
    %287 = vector.extract_strided_slice %286 {offsets = [0, 0], sizes = [2, 128], strides = [1, 1]} : vector<2x512xf32> to vector<2x128xf32>
    %288 = vector.extract_strided_slice %286 {offsets = [0, 128], sizes = [2, 128], strides = [1, 1]} : vector<2x512xf32> to vector<2x128xf32>
    %289 = vector.extract_strided_slice %286 {offsets = [0, 256], sizes = [2, 128], strides = [1, 1]} : vector<2x512xf32> to vector<2x128xf32>
    %290 = vector.extract_strided_slice %286 {offsets = [0, 384], sizes = [2, 128], strides = [1, 1]} : vector<2x512xf32> to vector<2x128xf32>
    %291 = arith.mulf %288, %239 : vector<2x128xf32>
    %292 = arith.mulf %287, %289 : vector<2x128xf32>
    %293 = arith.addf %291, %292 : vector<2x128xf32>
    %294 = math.tanh %293 : vector<2x128xf32>
    %295 = arith.mulf %290, %294 : vector<2x128xf32>
    %296 = vector.extract_strided_slice %295 {offsets = [0, 0], sizes = [2, 16], strides = [1, 1]} : vector<2x128xf32> to vector<2x16xf32>
    %c64 = arith.constant 64 : index
    %c0_40 = arith.constant 0 : index
    %297 = vector.load %arg2[%c64, %c0_40] : memref<88x80xf32, #tpu.memory_space<vmem>>, vector<16x80xf32>
    %cst_41 = arith.constant dense<0.000000e+00> : vector<2x80xf32>
    %298 = tpu.matmul %296, %297, %cst_41 {dimension_numbers = #tpu.dot_dimension_numbers<[1], [0], [0], [1], [0, 0, 1, 1], [], []>} : vector<2x16xf32>, vector<16x80xf32>, vector<2x80xf32> -> vector<2x80xf32>
    %299 = arith.addf %245, %298 : vector<2x80xf32>
    %c80 = arith.constant 80 : index
    %c0_42 = arith.constant 0 : index
    %300 = vector.load %arg2[%c80, %c0_42] : memref<88x80xf32, #tpu.memory_space<vmem>>, vector<1x80xf32>
    %301 = vector.broadcast %300 : vector<1x80xf32> to vector<2x80xf32>
    %302 = arith.addf %299, %301 : vector<2x80xf32>
    %cst_43 = arith.constant 0.000000e+00 : f32
    %303 = vector.broadcast %cst_43 : f32 to vector<2x80xf32>
    %304 = arith.maximumf %302, %303 : vector<2x80xf32>
    %c81 = arith.constant 81 : index
    %c0_44 = arith.constant 0 : index
    %305 = vector.load %arg2[%c81, %c0_44] : memref<88x80xf32, #tpu.memory_space<vmem>>, vector<1x80xf32>
    %306 = vector.broadcast %305 : vector<1x80xf32> to vector<2x80xf32>
    %307 = arith.mulf %304, %306 : vector<2x80xf32>
    %cst_45 = arith.constant dense<0.000000e+00> : vector<2xf32>
    %308 = vector.multi_reduction <add>, %307, %cst_45 [1] : vector<2x80xf32> to vector<2xf32>
    %309 = vector.shape_cast %308 : vector<2xf32> to vector<2x1xf32>
    %c82 = arith.constant 82 : index
    %c0_46 = arith.constant 0 : index
    %310 = vector.load %arg2[%c82, %c0_46] : memref<88x80xf32, #tpu.memory_space<vmem>>, vector<1x1xf32>
    %311 = vector.broadcast %310 : vector<1x1xf32> to vector<2x1xf32>
    %312 = arith.addf %309, %311 : vector<2x1xf32>
    %c0_47 = arith.constant 0 : index
    %c0_48 = arith.constant 0 : index
    %313 = vector.load %arg3[%c0_47, %c0_48] : memref<2x1xf32, #tpu.memory_space<vmem>>, vector<2x1xf32>
    tpu.vector_store %arg3[%c0_47, %c0_48], %312 {strides = array<i32>} : memref<2x1xf32, #tpu.memory_space<vmem>>, vector<2x1xf32>,
    return
  }
}

</mosaic_0001>

<llo_original>
// kernel: tpu_custom_call.1
$region0: #{tpu_custom_call.1}
  #allocation0 [shape = 'u32[]', space=smem, size = 0x4, offset = 0x4, fixed_abs, tag = 'smem constant byte address 0x4 - core index']
  #allocation1 [shape = 'u32[144,128]{1,0:T(1,128)}', space=vmem, size = 0x12000, scoped, tag = 'internal scratch']
  %s0 = inlined_call_operand.hbm [shape: f32[10,16], index: 0, kind: input, shape index: {}]
  %s1 = inlined_call_operand.hbm [shape: f32[664,512], index: 1, kind: input, shape index: {}]
  %s2 = inlined_call_operand.vmem [shape: f32[88,80], index: 2, kind: input, shape index: {}]
  %s3 = inlined_call_operand.vmem [shape: f32[2,1], index: 3, kind: output, shape index: {}]
  %s4 = sld [smem:[#allocation0]]
  $region30: #{tpu_custom_call.1} parent=0
    _
  %s6 = ssub.s32 1, %s4
  %s7 = scalar_select 0, %s6, %s4
  $region1: #{tpu_custom_call.1} parent=0
    #allocation2 [shape = 'u8[8192]{0}', space=vmem, size = 0x2000, scoped, tag = 'input window, operand 0, single buffered']
    #allocation3 [shape = 's32[1]{0}', space=sflag, size = 0x4, scoped, tag = 'scoped memory for tpu_custom_call.1']
    #allocation4 [shape = 'u8[1359872]{0}', space=vmem, size = 0x14c000, scoped, tag = 'input window, operand 1, single buffered']
    #allocation5 [shape = 's32[1]{0}', space=sflag, size = 0x4, scoped, tag = 'scoped memory for tpu_custom_call.1']
    %8 = vsyncpa [#allocation3], 0
    %9 = vsyncpa [#allocation5], 0
    // Predicated region
    $region2: #{tpu_custom_call.1} parent=1 // pred_check
      _
    $region3: #{tpu_custom_call.1} parent=1 // pred_check_branch
      %11 = sbr.rel (0) target = $region5
    $region4: #{tpu_custom_call.1} parent=1 // pred_region
      %s13 = ssub.s32 256, 256
      %14 = vsyncadd [#allocation3], %s13
      %s15 = sshll.u32 [#allocation2], 4
      %s16 = int_to_ptr.vmem [resolvable:$true] %s15
      %21 = dma.hbm_to_vmem [thread:$0]  %s0, 256, %s16, [#allocation3], 128, 128, 8
    $region5: #{tpu_custom_call.1} parent=1 // pred_fallthru
      _
    // Predicated region
    $region6: #{tpu_custom_call.1} parent=1 // pred_check
      _
    $region7: #{tpu_custom_call.1} parent=1 // pred_check_branch
      %23 = sbr.rel (0) target = $region9
    $region8: #{tpu_custom_call.1} parent=1 // pred_region
      %s25 = ssub.s32 42496, 42496
      %26 = vsyncadd [#allocation5], %s25
      %s27 = sshll.u32 [#allocation4], 4
      %s28 = int_to_ptr.vmem [resolvable:$true] %s27
      %33 = dma.hbm_to_vmem [thread:$0]  %s1, 42496, %s28, [#allocation5], 512, 512, 32
    $region9: #{tpu_custom_call.1} parent=1 // pred_fallthru
      _
    // Predicated region
    $region10: #{tpu_custom_call.1} parent=1 // pred_check
      _
    $region11: #{tpu_custom_call.1} parent=1 // pred_check_branch
      %35 = sbr.rel (0) target = $region13
    $region12: #{tpu_custom_call.1} parent=1 // pred_region
      _
    $region13: #{tpu_custom_call.1} parent=1 // pred_fallthru
      _
    // Predicated region
    $region14: #{tpu_custom_call.1} parent=1 // pred_check
      _
    $region15: #{tpu_custom_call.1} parent=1 // pred_check_branch
      %37 = sbr.rel (0) target = $region17
    $region16: #{tpu_custom_call.1} parent=1 // pred_region
      %38 = dma.done [#allocation3], 256
    $region17: #{tpu_custom_call.1} parent=1 // pred_fallthru
      _
    // Predicated region
    $region18: #{tpu_custom_call.1} parent=1 // pred_check
      _
    $region19: #{tpu_custom_call.1} parent=1 // pred_check_branch
      %40 = sbr.rel (0) target = $region21
    $region20: #{tpu_custom_call.1} parent=1 // pred_region
      %41 = dma.done [#allocation5], 42496
    $region21: #{tpu_custom_call.1} parent=1 // pred_fallthru
      _
    %v42 = vld [vmem:[#allocation4] sm:$0xff]
    %v43 = vld [vmem:[#allocation4 + $0x8] sm:$0xff]
    %v44 = vld [vmem:[#allocation4 + $0x10] sm:$0xff]
    %v45 = vld [vmem:[#allocation4 + $0x18] sm:$0xff]
    %v46 = vld [vmem:[#allocation4 + $0x20] sm:$0xff]
    %v47 = vld [vmem:[#allocation4 + $0x28] sm:$0xff]
    %v48 = vld [vmem:[#allocation4 + $0x30] sm:$0xff]
    %v49 = vld [vmem:[#allocation4 + $0x38] sm:$0xff]
    %v50 = vld [vmem:[#allocation4 + $0x40] sm:$0xff]
    %v51 = vld [vmem:[#allocation4 + $0x48] sm:$0xff]
    %v52 = vld [vmem:[#allocation4 + $0x50] sm:$0xff]
    %v53 = vld [vmem:[#allocation4 + $0x58] sm:$0xff]
    %v54 = vld [vmem:[#allocation4 + $0x60] sm:$0xff]
    %v55 = vld [vmem:[#allocation4 + $0x68] sm:$0xff]
    %v56 = vld [vmem:[#allocation4 + $0x70] sm:$0xff]
    %v57 = vld [vmem:[#allocation4 + $0x78] sm:$0xff]
    %v58 = vld [vmem:[#allocation4 + $0x80] sm:$0xff]
    %v59 = vld [vmem:[#allocation4 + $0x88] sm:$0xff]
    %v60 = vld [vmem:[#allocation4 + $0x90] sm:$0xff]
    %v61 = vld [vmem:[#allocation4 + $0x98] sm:$0xff]
    %v62 = vld [vmem:[#allocation4 + $0xa0] sm:$0xff]
    %v63 = vld [vmem:[#allocation4 + $0xa8] sm:$0xff]
    %v64 = vld [vmem:[#allocation4 + $0xb0] sm:$0xff]
    %v65 = vld [vmem:[#allocation4 + $0xb8] sm:$0xff]
    %v66 = vld [vmem:[#allocation4 + $0xc0] sm:$0xff]
    %v67 = vld [vmem:[#allocation4 + $0xc8] sm:$0xff]
    %v68 = vld [vmem:[#allocation4 + $0xd0] sm:$0xff]
    %v69 = vld [vmem:[#allocation4 + $0xd8] sm:$0xff]
    %v70 = vld [vmem:[#allocation4 + $0xe0] sm:$0xff]
    %v71 = vld [vmem:[#allocation4 + $0xe8] sm:$0xff]
    %v72 = vld [vmem:[#allocation4 + $0xf0] sm:$0xff]
    %v73 = vld [vmem:[#allocation4 + $0xf8] sm:$0xff]
    %v74 = vld [vmem:[#allocation4 + $0x100] sm:$0xff]
    %v75 = vld [vmem:[#allocation4 + $0x108] sm:$0xff]
    %v76 = vld [vmem:[#allocation4 + $0x110] sm:$0xff]
    %v77 = vld [vmem:[#allocation4 + $0x118] sm:$0xff]
    %v78 = vld [vmem:[#allocation4 + $0x120] sm:$0xff]
    %v79 = vld [vmem:[#allocation4 + $0x128] sm:$0xff]
    %v80 = vld [vmem:[#allocation4 + $0x130] sm:$0xff]
    %v81 = vld [vmem:[#allocation4 + $0x138] sm:$0xff]
    %v82 = vld [vmem:[#allocation4 + $0x140] sm:$0xff]
    %v83 = vld [vmem:[#allocation4 + $0x148] sm:$0xff]
    %v84 = vld [vmem:[#allocation4 + $0x150] sm:$0xff]
    %v85 = vld [vmem:[#allocation4 + $0x158] sm:$0xff]
    %v86 = vld [vmem:[#allocation4 + $0x160] sm:$0xff]
    %v87 = vld [vmem:[#allocation4 + $0x168] sm:$0xff]
    %v88 = vld [vmem:[#allocation4 + $0x170] sm:$0xff]
    %v89 = vld [vmem:[#allocation4 + $0x178] sm:$0xff]
    %v90 = vld [vmem:[#allocation4 + $0x180] sm:$0xff]
    %v91 = vld [vmem:[#allocation4 + $0x188] sm:$0xff]
    %v92 = vld [vmem:[#allocation4 + $0x190] sm:$0xff]
    %v93 = vld [vmem:[#allocation4 + $0x198] sm:$0xff]
    %v94 = vld [vmem:[#allocation4 + $0x1a0] sm:$0xff]
    %v95 = vld [vmem:[#allocation4 + $0x1a8] sm:$0xff]
    %v96 = vld [vmem:[#allocation4 + $0x1b0] sm:$0xff]
    %v97 = vld [vmem:[#allocation4 + $0x1b8] sm:$0xff]
    %v98 = vld [vmem:[#allocation4 + $0x1c0] sm:$0xff]
    %v99 = vld [vmem:[#allocation4 + $0x1c8] sm:$0xff]
    %v100 = vld [vmem:[#allocation4 + $0x1d0] sm:$0xff]
    %v101 = vld [vmem:[#allocation4 + $0x1d8] sm:$0xff]
    %v102 = vld [vmem:[#allocation4 + $0x1e0] sm:$0xff]
    %v103 = vld [vmem:[#allocation4 + $0x1e8] sm:$0xff]
    %v104 = vld [vmem:[#allocation4 + $0x1f0] sm:$0xff]
    %v105 = vld [vmem:[#allocation4 + $0x1f8] sm:$0xff]
    %v106 = vld [vmem:[#allocation4 + $0x200] sm:$0xff]
    %v107 = vld [vmem:[#allocation4 + $0x208] sm:$0xff]
    %v108 = vld [vmem:[#allocation4 + $0x210] sm:$0xff]
    %v109 = vld [vmem:[#allocation4 + $0x218] sm:$0xff]
    %v110 = vld [vmem:[#allocation4 + $0x220] sm:$0xff]
    %v111 = vld [vmem:[#allocation4 + $0x228] sm:$0xff]
    %v112 = vld [vmem:[#allocation4 + $0x230] sm:$0xff]
    %v113 = vld [vmem:[#allocation4 + $0x238] sm:$0xff]
    %v114 = vld [vmem:[#allocation4 + $0x240] sm:$0xff]
    %v115 = vld [vmem:[#allocation4 + $0x248] sm:$0xff]
    %v116 = vld [vmem:[#allocation4 + $0x250] sm:$0xff]
    %v117 = vld [vmem:[#allocation4 + $0x258] sm:$0xff]
    %v118 = vld [vmem:[#allocation4 + $0x260] sm:$0xff]
    %v119 = vld [vmem:[#allocation4 + $0x268] sm:$0xff]
    %v120 = vld [vmem:[#allocation4 + $0x270] sm:$0xff]
    %v121 = vld [vmem:[#allocation4 + $0x278] sm:$0xff]
    %v122 = vld [vmem:[#allocation4 + $0x280] sm:$0xff]
    %v123 = vld [vmem:[#allocation4 + $0x288] sm:$0xff]
    %v124 = vld [vmem:[#allocation4 + $0x290] sm:$0xff]
    %v125 = vld [vmem:[#allocation4 + $0x298] sm:$0xff]
    %v126 = vld [vmem:[#allocation4 + $0x2a0] sm:$0xff]
    %v127 = vld [vmem:[#allocation4 + $0x2a8] sm:$0xff]
    %v128 = vld [vmem:[#allocation4 + $0x2b0] sm:$0xff]
    %v129 = vld [vmem:[#allocation4 + $0x2b8] sm:$0xff]
    %v130 = vld [vmem:[#allocation4 + $0x2c0] sm:$0xff]
    %v131 = vld [vmem:[#allocation4 + $0x2c8] sm:$0xff]
    %v132 = vld [vmem:[#allocation4 + $0x2d0] sm:$0xff]
    %v133 = vld [vmem:[#allocation4 + $0x2d8] sm:$0xff]
    %v134 = vld [vmem:[#allocation4 + $0x2e0] sm:$0xff]
    %v135 = vld [vmem:[#allocation4 + $0x2e8] sm:$0xff]
    %v136 = vld [vmem:[#allocation4 + $0x2f0] sm:$0xff]
    %v137 = vld [vmem:[#allocation4 + $0x2f8] sm:$0xff]
    %v138 = vld [vmem:[#allocation4 + $0x300] sm:$0xff]
    %v139 = vld [vmem:[#allocation4 + $0x308] sm:$0xff]
    %v140 = vld [vmem:[#allocation4 + $0x310] sm:$0xff]
    %v141 = vld [vmem:[#allocation4 + $0x318] sm:$0xff]
    %v142 = vld [vmem:[#allocation4 + $0x320] sm:$0xff]
    %v143 = vld [vmem:[#allocation4 + $0x328] sm:$0xff]
    %v144 = vld [vmem:[#allocation4 + $0x330] sm:$0xff]
    %v145 = vld [vmem:[#allocation4 + $0x338] sm:$0xff]
    %v146 = vld [vmem:[#allocation4 + $0x340] sm:$0xff]
    %v147 = vld [vmem:[#allocation4 + $0x348] sm:$0xff]
    %v148 = vld [vmem:[#allocation4 + $0x350] sm:$0xff]
    %v149 = vld [vmem:[#allocation4 + $0x358] sm:$0xff]
    %v150 = vld [vmem:[#allocation4 + $0x360] sm:$0xff]
    %v151 = vld [vmem:[#allocation4 + $0x368] sm:$0xff]
    %v152 = vld [vmem:[#allocation4 + $0x370] sm:$0xff]
    %v153 = vld [vmem:[#allocation4 + $0x378] sm:$0xff]
    %v154 = vld [vmem:[#allocation4 + $0x380] sm:$0xff]
    %v155 = vld [vmem:[#allocation4 + $0x388] sm:$0xff]
    %v156 = vld [vmem:[#allocation4 + $0x390] sm:$0xff]
    %v157 = vld [vmem:[#allocation4 + $0x398] sm:$0xff]
    %v158 = vld [vmem:[#allocation4 + $0x3a0] sm:$0xff]
    %v159 = vld [vmem:[#allocation4 + $0x3a8] sm:$0xff]
    %v160 = vld [vmem:[#allocation4 + $0x3b0] sm:$0xff]
    %v161 = vld [vmem:[#allocation4 + $0x3b8] sm:$0xff]
    %v162 = vld [vmem:[#allocation4 + $0x3c0] sm:$0xff]
    %v163 = vld [vmem:[#allocation4 + $0x3c8] sm:$0xff]
    %v164 = vld [vmem:[#allocation4 + $0x3d0] sm:$0xff]
    %v165 = vld [vmem:[#allocation4 + $0x3d8] sm:$0xff]
    %v166 = vld [vmem:[#allocation4 + $0x3e0] sm:$0xff]
    %v167 = vld [vmem:[#allocation4 + $0x3e8] sm:$0xff]
    %v168 = vld [vmem:[#allocation4 + $0x3f0] sm:$0xff]
    %v169 = vld [vmem:[#allocation4 + $0x3f8] sm:$0xff]
    %v170 = vld [vmem:[#allocation4 + $0x400] sm:$0xff]
    %v171 = vld [vmem:[#allocation4 + $0x408] sm:$0xff]
    %v172 = vld [vmem:[#allocation4 + $0x410] sm:$0xff]
    %v173 = vld [vmem:[#allocation4 + $0x418] sm:$0xff]
    %v174 = vld [vmem:[#allocation4 + $0x420] sm:$0xff]
    %v175 = vld [vmem:[#allocation4 + $0x428] sm:$0xff]
    %v176 = vld [vmem:[#allocation4 + $0x430] sm:$0xff]
    %v177 = vld [vmem:[#allocation4 + $0x438] sm:$0xff]
    %v178 = vld [vmem:[#allocation4 + $0x440] sm:$0xff]
    %v179 = vld [vmem:[#allocation4 + $0x448] sm:$0xff]
    %v180 = vld [vmem:[#allocation4 + $0x450] sm:$0xff]
    %v181 = vld [vmem:[#allocation4 + $0x458] sm:$0xff]
    %v182 = vld [vmem:[#allocation4 + $0x460] sm:$0xff]
    %v183 = vld [vmem:[#allocation4 + $0x468] sm:$0xff]
    %v184 = vld [vmem:[#allocation4 + $0x470] sm:$0xff]
    %v185 = vld [vmem:[#allocation4 + $0x478] sm:$0xff]
    %v186 = vld [vmem:[#allocation4 + $0x480] sm:$0xff]
    %v187 = vld [vmem:[#allocation4 + $0x488] sm:$0xff]
    %v188 = vld [vmem:[#allocation4 + $0x490] sm:$0xff]
    %v189 = vld [vmem:[#allocation4 + $0x498] sm:$0xff]
    %v190 = vld [vmem:[#allocation4 + $0x4a0] sm:$0xff]
    %v191 = vld [vmem:[#allocation4 + $0x4a8] sm:$0xff]
    %v192 = vld [vmem:[#allocation4 + $0x4b0] sm:$0xff]
    %v193 = vld [vmem:[#allocation4 + $0x4b8] sm:$0xff]
    %v194 = vld [vmem:[#allocation4 + $0x4c0] sm:$0xff]
    %v195 = vld [vmem:[#allocation4 + $0x4c8] sm:$0xff]
    %v196 = vld [vmem:[#allocation4 + $0x4d0] sm:$0xff]
    %v197 = vld [vmem:[#allocation4 + $0x4d8] sm:$0xff]
    %v198 = vld [vmem:[#allocation4 + $0x4e0] sm:$0xff]
    %v199 = vld [vmem:[#allocation4 + $0x4e8] sm:$0xff]
    %v200 = vld [vmem:[#allocation4 + $0x4f0] sm:$0xff]
    %v201 = vld [vmem:[#allocation4 + $0x4f8] sm:$0xff]
    %v202 = vld [vmem:[#allocation4 + $0x500] sm:$0xff]
    %v203 = vld [vmem:[#allocation4 + $0x508] sm:$0xff]
    %v204 = vld [vmem:[#allocation4 + $0x510] sm:$0xff]
    %v205 = vld [vmem:[#allocation4 + $0x518] sm:$0xff]
    %v206 = vld [vmem:[#allocation4 + $0x520] sm:$0xff]
    %v207 = vld [vmem:[#allocation4 + $0x528] sm:$0xff]
    %v208 = vld [vmem:[#allocation4 + $0x530] sm:$0xff]
    %v209 = vld [vmem:[#allocation4 + $0x538] sm:$0xff]
    %v210 = vld [vmem:[#allocation4 + $0x540] sm:$0xff]
    %v211 = vld [vmem:[#allocation4 + $0x548] sm:$0xff]
    %v212 = vld [vmem:[#allocation4 + $0x550] sm:$0xff]
    %v213 = vld [vmem:[#allocation4 + $0x558] sm:$0xff]
    %v214 = vld [vmem:[#allocation4 + $0x560] sm:$0xff]
    %v215 = vld [vmem:[#allocation4 + $0x568] sm:$0xff]
    %v216 = vld [vmem:[#allocation4 + $0x570] sm:$0xff]
    %v217 = vld [vmem:[#allocation4 + $0x578] sm:$0xff]
    %v218 = vld [vmem:[#allocation4 + $0x580] sm:$0xff]
    %v219 = vld [vmem:[#allocation4 + $0x588] sm:$0xff]
    %v220 = vld [vmem:[#allocation4 + $0x590] sm:$0xff]
    %v221 = vld [vmem:[#allocation4 + $0x598] sm:$0xff]
    %v222 = vld [vmem:[#allocation4 + $0x5a0] sm:$0xff]
    %v223 = vld [vmem:[#allocation4 + $0x5a8] sm:$0xff]
    %v224 = vld [vmem:[#allocation4 + $0x5b0] sm:$0xff]
    %v225 = vld [vmem:[#allocation4 + $0x5b8] sm:$0xff]
    %v226 = vld [vmem:[#allocation4 + $0x5c0] sm:$0xff]
    %v227 = vld [vmem:[#allocation4 + $0x5c8] sm:$0xff]
    %v228 = vld [vmem:[#allocation4 + $0x5d0] sm:$0xff]
    %v229 = vld [vmem:[#allocation4 + $0x5d8] sm:$0xff]
    %v230 = vld [vmem:[#allocation4 + $0x5e0] sm:$0xff]
    %v231 = vld [vmem:[#allocation4 + $0x5e8] sm:$0xff]
    %v232 = vld [vmem:[#allocation4 + $0x5f0] sm:$0xff]
    %v233 = vld [vmem:[#allocation4 + $0x5f8] sm:$0xff]
    %v234 = vld [vmem:[#allocation4 + $0x600] sm:$0xff]
    %v235 = vld [vmem:[#allocation4 + $0x608] sm:$0xff]
    %v236 = vld [vmem:[#allocation4 + $0x610] sm:$0xff]
    %v237 = vld [vmem:[#allocation4 + $0x618] sm:$0xff]
    %v238 = vld [vmem:[#allocation4 + $0x620] sm:$0xff]
    %v239 = vld [vmem:[#allocation4 + $0x628] sm:$0xff]
    %v240 = vld [vmem:[#allocation4 + $0x630] sm:$0xff]
    %v241 = vld [vmem:[#allocation4 + $0x638] sm:$0xff]
    %v242 = vld [vmem:[#allocation4 + $0x640] sm:$0xff]
    %v243 = vld [vmem:[#allocation4 + $0x648] sm:$0xff]
    %v244 = vld [vmem:[#allocation4 + $0x650] sm:$0xff]
    %v245 = vld [vmem:[#allocation4 + $0x658] sm:$0xff]
    %v246 = vld [vmem:[#allocation4 + $0x660] sm:$0xff]
    %v247 = vld [vmem:[#allocation4 + $0x668] sm:$0xff]
    %v248 = vld [vmem:[#allocation4 + $0x670] sm:$0xff]
    %v249 = vld [vmem:[#allocation4 + $0x678] sm:$0xff]
    %v250 = vld [vmem:[#allocation4 + $0x680] sm:$0xff]
    %v251 = vld [vmem:[#allocation4 + $0x688] sm:$0xff]
    %v252 = vld [vmem:[#allocation4 + $0x690] sm:$0xff]
    %v253 = vld [vmem:[#allocation4 + $0x698] sm:$0xff]
    %v254 = vld [vmem:[#allocation4 + $0x6a0] sm:$0xff]
    %v255 = vld [vmem:[#allocation4 + $0x6a8] sm:$0xff]
    %v256 = vld [vmem:[#allocation4 + $0x6b0] sm:$0xff]
    %v257 = vld [vmem:[#allocation4 + $0x6b8] sm:$0xff]
    %v258 = vld [vmem:[#allocation4 + $0x6c0] sm:$0xff]
    %v259 = vld [vmem:[#allocation4 + $0x6c8] sm:$0xff]
    %v260 = vld [vmem:[#allocation4 + $0x6d0] sm:$0xff]
    %v261 = vld [vmem:[#allocation4 + $0x6d8] sm:$0xff]
    %v262 = vld [vmem:[#allocation4 + $0x6e0] sm:$0xff]
    %v263 = vld [vmem:[#allocation4 + $0x6e8] sm:$0xff]
    %v264 = vld [vmem:[#allocation4 + $0x6f0] sm:$0xff]
    %v265 = vld [vmem:[#allocation4 + $0x6f8] sm:$0xff]
    %v266 = vld [vmem:[#allocation4 + $0x700] sm:$0xff]
    %v267 = vld [vmem:[#allocation4 + $0x708] sm:$0xff]
    %v268 = vld [vmem:[#allocation4 + $0x710] sm:$0xff]
    %v269 = vld [vmem:[#allocation4 + $0x718] sm:$0xff]
    %v270 = vld [vmem:[#allocation4 + $0x720] sm:$0xff]
    %v271 = vld [vmem:[#allocation4 + $0x728] sm:$0xff]
    %v272 = vld [vmem:[#allocation4 + $0x730] sm:$0xff]
    %v273 = vld [vmem:[#allocation4 + $0x738] sm:$0xff]
    %v274 = vld [vmem:[#allocation4 + $0x740] sm:$0xff]
    %v275 = vld [vmem:[#allocation4 + $0x748] sm:$0xff]
    %v276 = vld [vmem:[#allocation4 + $0x750] sm:$0xff]
    %v277 = vld [vmem:[#allocation4 + $0x758] sm:$0xff]
    %v278 = vld [vmem:[#allocation4 + $0x760] sm:$0xff]
    %v279 = vld [vmem:[#allocation4 + $0x768] sm:$0xff]
    %v280 = vld [vmem:[#allocation4 + $0x770] sm:$0xff]
    %v281 = vld [vmem:[#allocation4 + $0x778] sm:$0xff]
    %v282 = vld [vmem:[#allocation4 + $0x780] sm:$0xff]
    %v283 = vld [vmem:[#allocation4 + $0x788] sm:$0xff]
    %v284 = vld [vmem:[#allocation4 + $0x790] sm:$0xff]
    %v285 = vld [vmem:[#allocation4 + $0x798] sm:$0xff]
    %v286 = vld [vmem:[#allocation4 + $0x7a0] sm:$0xff]
    %v287 = vld [vmem:[#allocation4 + $0x7a8] sm:$0xff]
    %v288 = vld [vmem:[#allocation4 + $0x7b0] sm:$0xff]
    %v289 = vld [vmem:[#allocation4 + $0x7b8] sm:$0xff]
    %v290 = vld [vmem:[#allocation4 + $0x7c0] sm:$0xff]
    %v291 = vld [vmem:[#allocation4 + $0x7c8] sm:$0xff]
    %v292 = vld [vmem:[#allocation4 + $0x7d0] sm:$0xff]
    %v293 = vld [vmem:[#allocation4 + $0x7d8] sm:$0xff]
    %v294 = vld [vmem:[#allocation4 + $0x7e0] sm:$0xff]
    %v295 = vld [vmem:[#allocation4 + $0x7e8] sm:$0xff]
    %v296 = vld [vmem:[#allocation4 + $0x7f0] sm:$0xff]
    %v297 = vld [vmem:[#allocation4 + $0x7f8] sm:$0xff]
    %v298 = vld [vmem:[#allocation4 + $0x800] sm:$0xff]
    %v299 = vld [vmem:[#allocation4 + $0x808] sm:$0xff]
    %v300 = vld [vmem:[#allocation4 + $0x810] sm:$0xff]
    %v301 = vld [vmem:[#allocation4 + $0x818] sm:$0xff]
    %v302 = vld [vmem:[#allocation4 + $0x820] sm:$0xff]
    %v303 = vld [vmem:[#allocation4 + $0x828] sm:$0xff]
    %v304 = vld [vmem:[#allocation4 + $0x830] sm:$0xff]
    %v305 = vld [vmem:[#allocation4 + $0x838] sm:$0xff]
    %v306 = vld [vmem:[#allocation4 + $0x840] sm:$0xff]
    %v307 = vld [vmem:[#allocation4 + $0x848] sm:$0xff]
    %v308 = vld [vmem:[#allocation4 + $0x850] sm:$0xff]
    %v309 = vld [vmem:[#allocation4 + $0x858] sm:$0xff]
    %v310 = vld [vmem:[#allocation4 + $0x860] sm:$0xff]
    %v311 = vld [vmem:[#allocation4 + $0x868] sm:$0xff]
    %v312 = vld [vmem:[#allocation4 + $0x870] sm:$0xff]
    %v313 = vld [vmem:[#allocation4 + $0x878] sm:$0xff]
    %v314 = vld [vmem:[#allocation4 + $0x880] sm:$0xff]
    %v315 = vld [vmem:[#allocation4 + $0x888] sm:$0xff]
    %v316 = vld [vmem:[#allocation4 + $0x890] sm:$0xff]
    %v317 = vld [vmem:[#allocation4 + $0x898] sm:$0xff]
    %v318 = vld [vmem:[#allocation4 + $0x8a0] sm:$0xff]
    %v319 = vld [vmem:[#allocation4 + $0x8a8] sm:$0xff]
    %v320 = vld [vmem:[#allocation4 + $0x8b0] sm:$0xff]
    %v321 = vld [vmem:[#allocation4 + $0x8b8] sm:$0xff]
    %v322 = vld [vmem:[#allocation4 + $0x8c0] sm:$0xff]
    %v323 = vld [vmem:[#allocation4 + $0x8c8] sm:$0xff]
    %v324 = vld [vmem:[#allocation4 + $0x8d0] sm:$0xff]
    %v325 = vld [vmem:[#allocation4 + $0x8d8] sm:$0xff]
    %v326 = vld [vmem:[#allocation4 + $0x8e0] sm:$0xff]
    %v327 = vld [vmem:[#allocation4 + $0x8e8] sm:$0xff]
    %v328 = vld [vmem:[#allocation4 + $0x8f0] sm:$0xff]
    %v329 = vld [vmem:[#allocation4 + $0x8f8] sm:$0xff]
    %v330 = vld [vmem:[#allocation4 + $0x900] sm:$0xff]
    %v331 = vld [vmem:[#allocation4 + $0x908] sm:$0xff]
    %v332 = vld [vmem:[#allocation4 + $0x910] sm:$0xff]
    %v333 = vld [vmem:[#allocation4 + $0x918] sm:$0xff]
    %v334 = vld [vmem:[#allocation4 + $0x920] sm:$0xff]
    %v335 = vld [vmem:[#allocation4 + $0x928] sm:$0xff]
    %v336 = vld [vmem:[#allocation4 + $0x930] sm:$0xff]
    %v337 = vld [vmem:[#allocation4 + $0x938] sm:$0xff]
    %v338 = vld [vmem:[#allocation4 + $0x940] sm:$0xff]
    %v339 = vld [vmem:[#allocation4 + $0x948] sm:$0xff]
    %v340 = vld [vmem:[#allocation4 + $0x950] sm:$0xff]
    %v341 = vld [vmem:[#allocation4 + $0x958] sm:$0xff]
    %v342 = vld [vmem:[#allocation4 + $0x960] sm:$0xff]
    %v343 = vld [vmem:[#allocation4 + $0x968] sm:$0xff]
    %v344 = vld [vmem:[#allocation4 + $0x970] sm:$0xff]
    %v345 = vld [vmem:[#allocation4 + $0x978] sm:$0xff]
    %v346 = vld [vmem:[#allocation4 + $0x980] sm:$0xff]
    %v347 = vld [vmem:[#allocation4 + $0x988] sm:$0xff]
    %v348 = vld [vmem:[#allocation4 + $0x990] sm:$0xff]
    %v349 = vld [vmem:[#allocation4 + $0x998] sm:$0xff]
    %v350 = vld [vmem:[#allocation4 + $0x9a0] sm:$0xff]
    %v351 = vld [vmem:[#allocation4 + $0x9a8] sm:$0xff]
    %v352 = vld [vmem:[#allocation4 + $0x9b0] sm:$0xff]
    %v353 = vld [vmem:[#allocation4 + $0x9b8] sm:$0xff]
    %v354 = vld [vmem:[#allocation4 + $0x9c0] sm:$0xff]
    %v355 = vld [vmem:[#allocation4 + $0x9c8] sm:$0xff]
    %v356 = vld [vmem:[#allocation4 + $0x9d0] sm:$0xff]
    %v357 = vld [vmem:[#allocation4 + $0x9d8] sm:$0xff]
    %v358 = vld [vmem:[#allocation4 + $0x9e0] sm:$0xff]
    %v359 = vld [vmem:[#allocation4 + $0x9e8] sm:$0xff]
    %v360 = vld [vmem:[#allocation4 + $0x9f0] sm:$0xff]
    %v361 = vld [vmem:[#allocation4 + $0x9f8] sm:$0xff]
    %v362 = vld [vmem:[#allocation4 + $0xa00] sm:$0xff]
    %v363 = vld [vmem:[#allocation4 + $0xa08] sm:$0xff]
    %v364 = vld [vmem:[#allocation4 + $0xa10] sm:$0xff]
    %v365 = vld [vmem:[#allocation4 + $0xa18] sm:$0xff]
    %v366 = vld [vmem:[#allocation4 + $0xa20] sm:$0xff]
    %v367 = vld [vmem:[#allocation4 + $0xa28] sm:$0xff]
    %v368 = vld [vmem:[#allocation4 + $0xa30] sm:$0xff]
    %v369 = vld [vmem:[#allocation4 + $0xa38] sm:$0xff]
    %s370 = scalar_lea.vmem [#allocation4], 2624
    %v371 = vld [vmem:[%s370] ss:$8 sm:$0xf]
    %s372 = scalar_lea.vmem [#allocation4], 2625
    %v373 = vld [vmem:[%s372] ss:$8 sm:$0xf]
    %v375 = vlaneseq
    %v376 = vshrl.u32 %v375, 7
    %v377 = vsub.s32 0, %v376
    %v378 = vrot.slane %v373, %v377
    %v379 = vlaneseq
    %v380 = vshrl.u32 %v379, 7
    %v381 = vsub.s32 1, %v380
    %v382 = vrot.slane %v373, %v381
    %v383 = vlaneseq
    %v384 = vshrl.u32 %v383, 7
    %v385 = vsub.s32 2, %v384
    %v386 = vrot.slane %v373, %v385
    %v387 = vlaneseq
    %v388 = vshrl.u32 %v387, 7
    %v389 = vsub.s32 3, %v388
    %v390 = vrot.slane %v373, %v389
    %s395 = scalar_lea.vmem [#allocation4], 2626
    %v396 = vld [vmem:[%s395] ss:$8 sm:$0xf]
    %v398 = vlaneseq
    %v399 = vshrl.u32 %v398, 7
    %v400 = vsub.s32 0, %v399
    %v401 = vrot.slane %v396, %v400
    %v402 = vlaneseq
    %v403 = vshrl.u32 %v402, 7
    %v404 = vsub.s32 1, %v403
    %v405 = vrot.slane %v396, %v404
    %v406 = vlaneseq
    %v407 = vshrl.u32 %v406, 7
    %v408 = vsub.s32 2, %v407
    %v409 = vrot.slane %v396, %v408
    %v410 = vlaneseq
    %v411 = vshrl.u32 %v410, 7
    %v412 = vsub.s32 3, %v411
    %v413 = vrot.slane %v396, %v412
    %v418 = vlaneseq
    %v419 = vand.u32 %v418, 127
    %v420 = vadd.s32 %v419, 128
    %v421 = vadd.s32 %v419, 256
    %v422 = vadd.s32 %v419, 384
    %vm423 = vcmp.ge.s32.totalorder %v419, 256
    %vm424 = vcmp.ge.s32.totalorder %v420, 256
    %vm425 = vcmp.ge.s32.totalorder %v421, 256
    %vm426 = vcmp.ge.s32.totalorder %v422, 256
    %vm427 = vcmp.lt.s32.totalorder %v419, 384
    %vm428 = vcmp.lt.s32.totalorder %v420, 384
    %vm429 = vcmp.lt.s32.totalorder %v421, 384
    %vm430 = vcmp.lt.s32.totalorder %v422, 384
    %vm431 = vmand %vm423, %vm427
    %vm432 = vmand %vm424, %vm428
    %vm433 = vmand %vm425, %vm429
    %vm434 = vmand %vm426, %vm430
    %v435 = vsel %vm431, 1.0, 0.5
    %v436 = vsel %vm432, 1.0, 0.5
    %v437 = vsel %vm433, 1.0, 0.5
    %v438 = vsel %vm434, 1.0, 0.5
    %v439 = vsel %vm431, 0.0, 0.5
    %v440 = vsel %vm432, 0.0, 0.5
    %v441 = vsel %vm433, 0.0, 0.5
    %v442 = vsel %vm434, 0.0, 0.5
    %v443 = vld [vmem:[#allocation2] sm:$0xff]
    %v444 = vld [vmem:[#allocation2 + $0x8] sm:$0x3]
    %v446 = vlaneseq
    %v447 = vshrl.u32 %v446, 7
    %v448 = vsub.s32 0, %v447
    %v449 = vrot.slane %v371, %v448
    %v450 = vlaneseq
    %v451 = vshrl.u32 %v450, 7
    %v452 = vsub.s32 1, %v451
    %v453 = vrot.slane %v371, %v452
    %v454 = vlaneseq
    %v455 = vshrl.u32 %v454, 7
    %v456 = vsub.s32 2, %v455
    %v457 = vrot.slane %v371, %v456
    %v458 = vlaneseq
    %v459 = vshrl.u32 %v458, 7
    %v460 = vsub.s32 3, %v459
    %v461 = vrot.slane %v371, %v460
    %vm466 = vcmask 130048
    %v468 = vsel %vm466, %v443, 0
    %v471 = vsel %vm466, %v444, 0
    %473 = vmatprep.subr.mxu0 %v43
    %474 = vmatpush1.msra.mxu0 %v42
    %475 = vmatprep.subr.mxu0 %v47
    %476 = vmatpush1.msra.mxu0 %v46
    %477 = vmatprep.subr.mxu0 0.0
    %478 = vmatpush1.msra.mxu0 0.0
    %479 = vmatprep.subr.mxu0 0.0
    %480 = vmatpush1.msra.mxu0 0.0
    %481 = vmatprep.subr.mxu0 0.0
    %482 = vmatpush1.msra.mxu0 0.0
    %483 = vmatprep.subr.mxu0 0.0
    %484 = vmatpush1.msra.mxu0 0.0
    %485 = vmatprep.subr.mxu0 0.0
    %486 = vmatpush1.msra.mxu0 0.0
    %487 = vmatprep.subr.mxu0 0.0
    %488 = vmatpush1.msra.mxu0 0.0
    %489 = vmatprep.subr.mxu0 0.0
    %490 = vmatpush1.msra.mxu0 0.0
    %491 = vmatprep.subr.mxu0 0.0
    %492 = vmatpush1.msra.mxu0 0.0
    %493 = vmatprep.subr.mxu0 0.0
    %494 = vmatpush1.msra.mxu0 0.0
    %495 = vmatprep.subr.mxu0 0.0
    %496 = vmatpush1.msra.mxu0 0.0
    %497 = vmatprep.subr.mxu0 0.0
    %498 = vmatpush1.msra.mxu0 0.0
    %499 = vmatprep.subr.mxu0 0.0
    %500 = vmatpush1.msra.mxu0 0.0
    %501 = vmatprep.subr.mxu0 0.0
    %502 = vmatpush1.msra.mxu0 0.0
    %503 = vmatprep.subr.mxu0 0.0
    %504 = vmatpush1.msra.mxu0 0.0
    %505 = vmatprep.subr.mxu0 0.0
    %506 = vmatpush1.msra.mxu0 0.0
    %507 = vmatprep.subr.mxu0 0.0
    %508 = vmatpush1.msra.mxu0 0.0
    %509 = vmatprep.subr.mxu0 0.0
    %510 = vmatpush1.msra.mxu0 0.0
    %511 = vmatprep.subr.mxu0 0.0
    %512 = vmatpush1.msra.mxu0 0.0
    %513 = vmatprep.subr.mxu0 0.0
    %514 = vmatpush1.msra.mxu0 0.0
    %515 = vmatprep.subr.mxu0 0.0
    %516 = vmatpush1.msra.mxu0 0.0
    %517 = vmatprep.subr.mxu0 0.0
    %518 = vmatpush1.msra.mxu0 0.0
    %519 = vmatprep.subr.mxu0 0.0
    %520 = vmatpush1.msra.mxu0 0.0
    %521 = vmatprep.subr.mxu0 0.0
    %522 = vmatpush1.msra.mxu0 0.0
    %523 = vmatprep.subr.mxu0 0.0
    %524 = vmatpush1.msra.mxu0 0.0
    %525 = vmatprep.subr.mxu0 0.0
    %526 = vmatpush1.msra.mxu0 0.0
    %527 = vmatprep.subr.mxu0 0.0
    %528 = vmatpush1.msra.mxu0 0.0
    %529 = vmatprep.subr.mxu0 0.0
    %530 = vmatpush1.msra.mxu0 0.0
    %531 = vmatprep.subr.mxu0 0.0
    %532 = vmatpush1.msra.mxu0 0.0
    %533 = vmatprep.subr.mxu0 0.0
    %534 = vmatpush1.msra.mxu0 0.0
    %535 = vmatprep.subr.mxu0 0.0
    %536 = vmatpush1.msra.mxu0 0.0
    %537 = vmatprep.mubr.f32.mxu0 0.0
    %538 = vmatmul.mubr.f32.gmra.mrb[0].mxu0 %v468
    %v539 = vpop.f32.mrb[0].mxu0
    %v540 = vadd.f32 %v449, %v539
    %v541 = vpop.f32.mrb[0].mxu0
    %v542 = vadd.f32 %v453, %v541
    %543 = vmatprep.mubr.f32.mxu0 0.0
    %544 = vmatmul.mubr.f32.gmra.mrb[0].mxu0 %v471
    %v545 = vpop.f32.mrb[0].mxu0
    %v546 = vadd.f32 %v449, %v545
    %v547 = vpop.f32.mrb[0].mxu0
    %v548 = vadd.f32 %v453, %v547
    %549 = vdwg.mxu0
    %550 = vmatprep.subr.mxu0 %v45
    %551 = vmatpush1.msra.mxu0 %v44
    %552 = vmatprep.subr.mxu0 %v49
    %553 = vmatpush1.msra.mxu0 %v48
    %554 = vmatprep.subr.mxu0 0.0
    %555 = vmatpush1.msra.mxu0 0.0
    %556 = vmatprep.subr.mxu0 0.0
    %557 = vmatpush1.msra.mxu0 0.0
    %558 = vmatprep.subr.mxu0 0.0
    %559 = vmatpush1.msra.mxu0 0.0
    %560 = vmatprep.subr.mxu0 0.0
    %561 = vmatpush1.msra.mxu0 0.0
    %562 = vmatprep.subr.mxu0 0.0
    %563 = vmatpush1.msra.mxu0 0.0
    %564 = vmatprep.subr.mxu0 0.0
    %565 = vmatpush1.msra.mxu0 0.0
    %566 = vmatprep.subr.mxu0 0.0
    %567 = vmatpush1.msra.mxu0 0.0
    %568 = vmatprep.subr.mxu0 0.0
    %569 = vmatpush1.msra.mxu0 0.0
    %570 = vmatprep.subr.mxu0 0.0
    %571 = vmatpush1.msra.mxu0 0.0
    %572 = vmatprep.subr.mxu0 0.0
    %573 = vmatpush1.msra.mxu0 0.0
    %574 = vmatprep.subr.mxu0 0.0
    %575 = vmatpush1.msra.mxu0 0.0
    %576 = vmatprep.subr.mxu0 0.0
    %577 = vmatpush1.msra.mxu0 0.0
    %578 = vmatprep.subr.mxu0 0.0
    %579 = vmatpush1.msra.mxu0 0.0
    %580 = vmatprep.subr.mxu0 0.0
    %581 = vmatpush1.msra.mxu0 0.0
    %582 = vmatprep.subr.mxu0 0.0
    %583 = vmatpush1.msra.mxu0 0.0
    %584 = vmatprep.subr.mxu0 0.0
    %585 = vmatpush1.msra.mxu0 0.0
    %586 = vmatprep.subr.mxu0 0.0
    %587 = vmatpush1.msra.mxu0 0.0
    %588 = vmatprep.subr.mxu0 0.0
    %589 = vmatpush1.msra.mxu0 0.0
    %590 = vmatprep.subr.mxu0 0.0
    %591 = vmatpush1.msra.mxu0 0.0
    %592 = vmatprep.subr.mxu0 0.0
    %593 = vmatpush1.msra.mxu0 0.0
    %594 = vmatprep.subr.mxu0 0.0
    %595 = vmatpush1.msra.mxu0 0.0
    %596 = vmatprep.subr.mxu0 0.0
    %597 = vmatpush1.msra.mxu0 0.0
    %598 = vmatprep.subr.mxu0 0.0
    %599 = vmatpush1.msra.mxu0 0.0
    %600 = vmatprep.subr.mxu0 0.0
    %601 = vmatpush1.msra.mxu0 0.0
    %602 = vmatprep.subr.mxu0 0.0
    %603 = vmatpush1.msra.mxu0 0.0
    %604 = vmatprep.subr.mxu0 0.0
    %605 = vmatpush1.msra.mxu0 0.0
    %606 = vmatprep.subr.mxu0 0.0
    %607 = vmatpush1.msra.mxu0 0.0
    %608 = vmatprep.subr.mxu0 0.0
    %609 = vmatpush1.msra.mxu0 0.0
    %610 = vmatprep.subr.mxu0 0.0
    %611 = vmatpush1.msra.mxu0 0.0
    %612 = vmatprep.subr.mxu0 0.0
    %613 = vmatpush1.msra.mxu0 0.0
    %614 = vmatprep.mubr.f32.mxu0 0.0
    %615 = vmatmul.mubr.f32.gmra.mrb[0].mxu0 %v468
    %v616 = vpop.f32.mrb[0].mxu0
    %v617 = vadd.f32 %v457, %v616
    %v618 = vpop.f32.mrb[0].mxu0
    %v619 = vadd.f32 %v461, %v618
    %620 = vmatprep.mubr.f32.mxu0 0.0
    %621 = vmatmul.mubr.f32.gmra.mrb[0].mxu0 %v471
    %v622 = vpop.f32.mrb[0].mxu0
    %v623 = vadd.f32 %v457, %v622
    %v624 = vpop.f32.mrb[0].mxu0
    %v625 = vadd.f32 %v461, %v624
    %626 = vdwg.mxu0
    %627 = vmatprep.subr.mxu0 %v51
    %628 = vmatpush1.msra.mxu0 %v50
    %629 = vmatprep.subr.mxu0 %v55
    %630 = vmatpush1.msra.mxu0 %v54
    %631 = vmatprep.subr.mxu0 %v59
    %632 = vmatpush1.msra.mxu0 %v58
    %633 = vmatprep.subr.mxu0 %v63
    %634 = vmatpush1.msra.mxu0 %v62
    %635 = vmatprep.subr.mxu0 %v67
    %636 = vmatpush1.msra.mxu0 %v66
    %637 = vmatprep.subr.mxu0 %v71
    %638 = vmatpush1.msra.mxu0 %v70
    %639 = vmatprep.subr.mxu0 %v75
    %640 = vmatpush1.msra.mxu0 %v74
    %641 = vmatprep.subr.mxu0 %v79
    %642 = vmatpush1.msra.mxu0 %v78
    %643 = vmatprep.subr.mxu0 %v83
    %644 = vmatpush1.msra.mxu0 %v82
    %645 = vmatprep.subr.mxu0 %v87
    %646 = vmatpush1.msra.mxu0 %v86
    %647 = vmatprep.subr.mxu0 %v91
    %648 = vmatpush1.msra.mxu0 %v90
    %649 = vmatprep.subr.mxu0 %v95
    %650 = vmatpush1.msra.mxu0 %v94
    %651 = vmatprep.subr.mxu0 %v99
    %652 = vmatpush1.msra.mxu0 %v98
    %653 = vmatprep.subr.mxu0 %v103
    %654 = vmatpush1.msra.mxu0 %v102
    %655 = vmatprep.subr.mxu0 %v107
    %656 = vmatpush1.msra.mxu0 %v106
    %657 = vmatprep.subr.mxu0 %v111
    %658 = vmatpush1.msra.mxu0 %v110
    %659 = vmatprep.subr.mxu0 0.0
    %660 = vmatpush1.msra.mxu0 0.0
    %661 = vmatprep.subr.mxu0 0.0
    %662 = vmatpush1.msra.mxu0 0.0
    %663 = vmatprep.subr.mxu0 0.0
    %664 = vmatpush1.msra.mxu0 0.0
    %665 = vmatprep.subr.mxu0 0.0
    %666 = vmatpush1.msra.mxu0 0.0
    %667 = vmatprep.subr.mxu0 0.0
    %668 = vmatpush1.msra.mxu0 0.0
    %669 = vmatprep.subr.mxu0 0.0
    %670 = vmatpush1.msra.mxu0 0.0
    %671 = vmatprep.subr.mxu0 0.0
    %672 = vmatpush1.msra.mxu0 0.0
    %673 = vmatprep.subr.mxu0 0.0
    %674 = vmatpush1.msra.mxu0 0.0
    %675 = vmatprep.subr.mxu0 0.0
    %676 = vmatpush1.msra.mxu0 0.0
    %677 = vmatprep.subr.mxu0 0.0
    %678 = vmatpush1.msra.mxu0 0.0
    %679 = vmatprep.subr.mxu0 0.0
    %680 = vmatpush1.msra.mxu0 0.0
    %681 = vmatprep.subr.mxu0 0.0
    %682 = vmatpush1.msra.mxu0 0.0
    %683 = vmatprep.subr.mxu0 0.0
    %684 = vmatpush1.msra.mxu0 0.0
    %685 = vmatprep.subr.mxu0 0.0
    %686 = vmatpush1.msra.mxu0 0.0
    %687 = vmatprep.subr.mxu0 0.0
    %688 = vmatpush1.msra.mxu0 0.0
    %689 = vmatprep.subr.mxu0 0.0
    %690 = vmatpush1.msra.mxu0 0.0
    %691 = vmatprep.mubr.f32.mxu0 0.0
    %692 = vmatmul.mubr.f32.gmra.mrb[0].mxu0 0.0
    %v693 = vpop.f32.mrb[0].mxu0
    %v694 = vadd.f32 0.0, %v693
    %v695 = vpop.f32.mrb[0].mxu0
    %v696 = vadd.f32 0.0, %v695
    %697 = vdwg.mxu0
    %698 = vmatprep.subr.mxu0 %v53
    %699 = vmatpush1.msra.mxu0 %v52
    %700 = vmatprep.subr.mxu0 %v57
    %701 = vmatpush1.msra.mxu0 %v56
    %702 = vmatprep.subr.mxu0 %v61
    %703 = vmatpush1.msra.mxu0 %v60
    %704 = vmatprep.subr.mxu0 %v65
    %705 = vmatpush1.msra.mxu0 %v64
    %706 = vmatprep.subr.mxu0 %v69
    %707 = vmatpush1.msra.mxu0 %v68
    %708 = vmatprep.subr.mxu0 %v73
    %709 = vmatpush1.msra.mxu0 %v72
    %710 = vmatprep.subr.mxu0 %v77
    %711 = vmatpush1.msra.mxu0 %v76
    %712 = vmatprep.subr.mxu0 %v81
    %713 = vmatpush1.msra.mxu0 %v80
    %714 = vmatprep.subr.mxu0 %v85
    %715 = vmatpush1.msra.mxu0 %v84
    %716 = vmatprep.subr.mxu0 %v89
    %717 = vmatpush1.msra.mxu0 %v88
    %718 = vmatprep.subr.mxu0 %v93
    %719 = vmatpush1.msra.mxu0 %v92
    %720 = vmatprep.subr.mxu0 %v97
    %721 = vmatpush1.msra.mxu0 %v96
    %722 = vmatprep.subr.mxu0 %v101
    %723 = vmatpush1.msra.mxu0 %v100
    %724 = vmatprep.subr.mxu0 %v105
    %725 = vmatpush1.msra.mxu0 %v104
    %726 = vmatprep.subr.mxu0 %v109
    %727 = vmatpush1.msra.mxu0 %v108
    %728 = vmatprep.subr.mxu0 %v113
    %729 = vmatpush1.msra.mxu0 %v112
    %730 = vmatprep.subr.mxu0 0.0
    %731 = vmatpush1.msra.mxu0 0.0
    %732 = vmatprep.subr.mxu0 0.0
    %733 = vmatpush1.msra.mxu0 0.0
    %734 = vmatprep.subr.mxu0 0.0
    %735 = vmatpush1.msra.mxu0 0.0
    %736 = vmatprep.subr.mxu0 0.0
    %737 = vmatpush1.msra.mxu0 0.0
    %738 = vmatprep.subr.mxu0 0.0
    %739 = vmatpush1.msra.mxu0 0.0
    %740 = vmatprep.subr.mxu0 0.0
    %741 = vmatpush1.msra.mxu0 0.0
    %742 = vmatprep.subr.mxu0 0.0
    %743 = vmatpush1.msra.mxu0 0.0
    %744 = vmatprep.subr.mxu0 0.0
    %745 = vmatpush1.msra.mxu0 0.0
    %746 = vmatprep.subr.mxu0 0.0
    %747 = vmatpush1.msra.mxu0 0.0
    %748 = vmatprep.subr.mxu0 0.0
    %749 = vmatpush1.msra.mxu0 0.0
    %750 = vmatprep.subr.mxu0 0.0
    %751 = vmatpush1.msra.mxu0 0.0
    %752 = vmatprep.subr.mxu0 0.0
    %753 = vmatpush1.msra.mxu0 0.0
    %754 = vmatprep.subr.mxu0 0.0
    %755 = vmatpush1.msra.mxu0 0.0
    %756 = vmatprep.subr.mxu0 0.0
    %757 = vmatpush1.msra.mxu0 0.0
    %758 = vmatprep.subr.mxu0 0.0
    %759 = vmatpush1.msra.mxu0 0.0
    %760 = vmatprep.subr.mxu0 0.0
    %761 = vmatpush1.msra.mxu0 0.0
    %762 = vmatprep.mubr.f32.mxu0 0.0
    %763 = vmatmul.mubr.f32.gmra.mrb[0].mxu0 0.0
    %v764 = vpop.f32.mrb[0].mxu0
    %v765 = vadd.f32 0.0, %v764
    %v766 = vpop.f32.mrb[0].mxu0
    %v767 = vadd.f32 0.0, %v766
    %768 = vdwg.mxu0
    %v769 = vadd.f32 %v540, %v694
    %v770 = vadd.f32 %v542, %v696
    %v771 = vadd.f32 %v617, %v765
    %v772 = vadd.f32 %v619, %v767
    %v773 = vmul.f32 %v435, %v769
    %v774 = vmul.f32 %v436, %v770
    %v775 = vmul.f32 %v437, %v771
    %v776 = vmul.f32 %v438, %v772
    %v777 = vtanh.pop %v773
    %v778 = vtanh.pop %v774
    %v779 = vtanh.pop %v775
    %v780 = vtanh.pop %v776
    %v781 = vmul.f32 %v435, %v777
    %v782 = vmul.f32 %v436, %v778
    %v783 = vmul.f32 %v437, %v779
    %v784 = vmul.f32 %v438, %v780
    %v785 = vadd.f32 %v781, %v439
    %v786 = vadd.f32 %v782, %v440
    %v787 = vadd.f32 %v783, %v441
    %v788 = vadd.f32 %v784, %v442
    %v789 = vmul.f32 %v786, 0.0
    %v790 = vmul.f32 %v785, %v787
    %v791 = vadd.f32 %v789, %v790
    %v792 = vtanh.pop %v791
    %v793 = vmul.f32 %v788, %v792
    %v794 = vtanh.pop %v793
    %795 = vmatprep.subr.mxu0 %v115
    %796 = vmatpush1.msra.mxu0 %v114
    %797 = vmatprep.subr.mxu0 %v119
    %798 = vmatpush1.msra.mxu0 %v118
    %799 = vmatprep.subr.mxu0 %v123
    %800 = vmatpush1.msra.mxu0 %v122
    %801 = vmatprep.subr.mxu0 %v127
    %802 = vmatpush1.msra.mxu0 %v126
    %803 = vmatprep.subr.mxu0 %v131
    %804 = vmatpush1.msra.mxu0 %v130
    %805 = vmatprep.subr.mxu0 %v135
    %806 = vmatpush1.msra.mxu0 %v134
    %807 = vmatprep.subr.mxu0 %v139
    %808 = vmatpush1.msra.mxu0 %v138
    %809 = vmatprep.subr.mxu0 %v143
    %810 = vmatpush1.msra.mxu0 %v142
    %811 = vmatprep.subr.mxu0 %v147
    %812 = vmatpush1.msra.mxu0 %v146
    %813 = vmatprep.subr.mxu0 %v151
    %814 = vmatpush1.msra.mxu0 %v150
    %815 = vmatprep.subr.mxu0 %v155
    %816 = vmatpush1.msra.mxu0 %v154
    %817 = vmatprep.subr.mxu0 %v159
    %818 = vmatpush1.msra.mxu0 %v158
    %819 = vmatprep.subr.mxu0 %v163
    %820 = vmatpush1.msra.mxu0 %v162
    %821 = vmatprep.subr.mxu0 %v167
    %822 = vmatpush1.msra.mxu0 %v166
    %823 = vmatprep.subr.mxu0 %v171
    %824 = vmatpush1.msra.mxu0 %v170
    %825 = vmatprep.subr.mxu0 %v175
    %826 = vmatpush1.msra.mxu0 %v174
    %827 = vmatprep.subr.mxu0 %v179
    %828 = vmatpush1.msra.mxu0 %v178
    %829 = vmatprep.subr.mxu0 %v183
    %830 = vmatpush1.msra.mxu0 %v182
    %831 = vmatprep.subr.mxu0 %v187
    %832 = vmatpush1.msra.mxu0 %v186
    %833 = vmatprep.subr.mxu0 %v191
    %834 = vmatpush1.msra.mxu0 %v190
    %835 = vmatprep.subr.mxu0 %v195
    %836 = vmatpush1.msra.mxu0 %v194
    %837 = vmatprep.subr.mxu0 %v199
    %838 = vmatpush1.msra.mxu0 %v198
    %839 = vmatprep.subr.mxu0 %v203
    %840 = vmatpush1.msra.mxu0 %v202
    %841 = vmatprep.subr.mxu0 %v207
    %842 = vmatpush1.msra.mxu0 %v206
    %843 = vmatprep.subr.mxu0 %v211
    %844 = vmatpush1.msra.mxu0 %v210
    %845 = vmatprep.subr.mxu0 %v215
    %846 = vmatpush1.msra.mxu0 %v214
    %847 = vmatprep.subr.mxu0 %v219
    %848 = vmatpush1.msra.mxu0 %v218
    %849 = vmatprep.subr.mxu0 %v223
    %850 = vmatpush1.msra.mxu0 %v222
    %851 = vmatprep.subr.mxu0 %v227
    %852 = vmatpush1.msra.mxu0 %v226
    %853 = vmatprep.subr.mxu0 %v231
    %854 = vmatpush1.msra.mxu0 %v230
    %855 = vmatprep.subr.mxu0 %v235
    %856 = vmatpush1.msra.mxu0 %v234
    %857 = vmatprep.subr.mxu0 %v239
    %858 = vmatpush1.msra.mxu0 %v238
    %859 = vmatprep.mubr.f32.mxu0 0.0
    %860 = vmatmul.mubr.f32.gmra.mrb[0].mxu0 %v794
    %v861 = vpop.f32.mrb[0].mxu0
    %v862 = vadd.f32 %v378, %v861
    %v863 = vpop.f32.mrb[0].mxu0
    %v864 = vadd.f32 %v382, %v863
    %865 = vdwg.mxu0
    %866 = vmatprep.subr.mxu0 %v117
    %867 = vmatpush1.msra.mxu0 %v116
    %868 = vmatprep.subr.mxu0 %v121
    %869 = vmatpush1.msra.mxu0 %v120
    %870 = vmatprep.subr.mxu0 %v125
    %871 = vmatpush1.msra.mxu0 %v124
    %872 = vmatprep.subr.mxu0 %v129
    %873 = vmatpush1.msra.mxu0 %v128
    %874 = vmatprep.subr.mxu0 %v133
    %875 = vmatpush1.msra.mxu0 %v132
    %876 = vmatprep.subr.mxu0 %v137
    %877 = vmatpush1.msra.mxu0 %v136
    %878 = vmatprep.subr.mxu0 %v141
    %879 = vmatpush1.msra.mxu0 %v140
    %880 = vmatprep.subr.mxu0 %v145
    %881 = vmatpush1.msra.mxu0 %v144
    %882 = vmatprep.subr.mxu0 %v149
    %883 = vmatpush1.msra.mxu0 %v148
    %884 = vmatprep.subr.mxu0 %v153
    %885 = vmatpush1.msra.mxu0 %v152
    %886 = vmatprep.subr.mxu0 %v157
    %887 = vmatpush1.msra.mxu0 %v156
    %888 = vmatprep.subr.mxu0 %v161
    %889 = vmatpush1.msra.mxu0 %v160
    %890 = vmatprep.subr.mxu0 %v165
    %891 = vmatpush1.msra.mxu0 %v164
    %892 = vmatprep.subr.mxu0 %v169
    %893 = vmatpush1.msra.mxu0 %v168
    %894 = vmatprep.subr.mxu0 %v173
    %895 = vmatpush1.msra.mxu0 %v172
    %896 = vmatprep.subr.mxu0 %v177
    %897 = vmatpush1.msra.mxu0 %v176
    %898 = vmatprep.subr.mxu0 %v181
    %899 = vmatpush1.msra.mxu0 %v180
    %900 = vmatprep.subr.mxu0 %v185
    %901 = vmatpush1.msra.mxu0 %v184
    %902 = vmatprep.subr.mxu0 %v189
    %903 = vmatpush1.msra.mxu0 %v188
    %904 = vmatprep.subr.mxu0 %v193
    %905 = vmatpush1.msra.mxu0 %v192
    %906 = vmatprep.subr.mxu0 %v197
    %907 = vmatpush1.msra.mxu0 %v196
    %908 = vmatprep.subr.mxu0 %v201
    %909 = vmatpush1.msra.mxu0 %v200
    %910 = vmatprep.subr.mxu0 %v205
    %911 = vmatpush1.msra.mxu0 %v204
    %912 = vmatprep.subr.mxu0 %v209
    %913 = vmatpush1.msra.mxu0 %v208
    %914 = vmatprep.subr.mxu0 %v213
    %915 = vmatpush1.msra.mxu0 %v212
    %916 = vmatprep.subr.mxu0 %v217
    %917 = vmatpush1.msra.mxu0 %v216
    %918 = vmatprep.subr.mxu0 %v221
    %919 = vmatpush1.msra.mxu0 %v220
    %920 = vmatprep.subr.mxu0 %v225
    %921 = vmatpush1.msra.mxu0 %v224
    %922 = vmatprep.subr.mxu0 %v229
    %923 = vmatpush1.msra.mxu0 %v228
    %924 = vmatprep.subr.mxu0 %v233
    %925 = vmatpush1.msra.mxu0 %v232
    %926 = vmatprep.subr.mxu0 %v237
    %927 = vmatpush1.msra.mxu0 %v236
    %928 = vmatprep.subr.mxu0 %v241
    %929 = vmatpush1.msra.mxu0 %v240
    %930 = vmatprep.mubr.f32.mxu0 0.0
    %931 = vmatmul.mubr.f32.gmra.mrb[0].mxu0 %v794
    %v932 = vpop.f32.mrb[0].mxu0
    %v933 = vadd.f32 %v386, %v932
    %v934 = vpop.f32.mrb[0].mxu0
    %v935 = vadd.f32 %v390, %v934
    %936 = vdwg.mxu0
    %v937 = vmul.f32 %v435, %v862
    %v938 = vmul.f32 %v436, %v864
    %v939 = vmul.f32 %v437, %v933
    %v940 = vmul.f32 %v438, %v935
    %v941 = vtanh.pop %v937
    %v942 = vtanh.pop %v938
    %v943 = vtanh.pop %v939
    %v944 = vtanh.pop %v940
    %v945 = vmul.f32 %v435, %v941
    %v946 = vmul.f32 %v436, %v942
    %v947 = vmul.f32 %v437, %v943
    %v948 = vmul.f32 %v438, %v944
    %v949 = vadd.f32 %v945, %v439
    %v950 = vadd.f32 %v946, %v440
    %v951 = vadd.f32 %v947, %v441
    %v952 = vadd.f32 %v948, %v442
    %v953 = vmul.f32 %v950, 0.0
    %v954 = vmul.f32 %v949, %v951
    %v955 = vadd.f32 %v953, %v954
    %v956 = vtanh.pop %v955
    %v957 = vmul.f32 %v952, %v956
    %v958 = vtanh.pop %v957
    %959 = vmatprep.subr.mxu0 %v243
    %960 = vmatpush1.msra.mxu0 %v242
    %961 = vmatprep.subr.mxu0 %v247
    %962 = vmatpush1.msra.mxu0 %v246
    %963 = vmatprep.subr.mxu0 %v251
    %964 = vmatpush1.msra.mxu0 %v250
    %965 = vmatprep.subr.mxu0 %v255
    %966 = vmatpush1.msra.mxu0 %v254
    %967 = vmatprep.subr.mxu0 %v259
    %968 = vmatpush1.msra.mxu0 %v258
    %969 = vmatprep.subr.mxu0 %v263
    %970 = vmatpush1.msra.mxu0 %v262
    %971 = vmatprep.subr.mxu0 %v267
    %972 = vmatpush1.msra.mxu0 %v266
    %973 = vmatprep.subr.mxu0 %v271
    %974 = vmatpush1.msra.mxu0 %v270
    %975 = vmatprep.subr.mxu0 %v275
    %976 = vmatpush1.msra.mxu0 %v274
    %977 = vmatprep.subr.mxu0 %v279
    %978 = vmatpush1.msra.mxu0 %v278
    %979 = vmatprep.subr.mxu0 %v283
    %980 = vmatpush1.msra.mxu0 %v282
    %981 = vmatprep.subr.mxu0 %v287
    %982 = vmatpush1.msra.mxu0 %v286
    %983 = vmatprep.subr.mxu0 %v291
    %984 = vmatpush1.msra.mxu0 %v290
    %985 = vmatprep.subr.mxu0 %v295
    %986 = vmatpush1.msra.mxu0 %v294
    %987 = vmatprep.subr.mxu0 %v299
    %988 = vmatpush1.msra.mxu0 %v298
    %989 = vmatprep.subr.mxu0 %v303
    %990 = vmatpush1.msra.mxu0 %v302
    %991 = vmatprep.subr.mxu0 %v307
    %992 = vmatpush1.msra.mxu0 %v306
    %993 = vmatprep.subr.mxu0 %v311
    %994 = vmatpush1.msra.mxu0 %v310
    %995 = vmatprep.subr.mxu0 %v315
    %996 = vmatpush1.msra.mxu0 %v314
    %997 = vmatprep.subr.mxu0 %v319
    %998 = vmatpush1.msra.mxu0 %v318
    %999 = vmatprep.subr.mxu0 %v323
    %1000 = vmatpush1.msra.mxu0 %v322
    %1001 = vmatprep.subr.mxu0 %v327
    %1002 = vmatpush1.msra.mxu0 %v326
    %1003 = vmatprep.subr.mxu0 %v331
    %1004 = vmatpush1.msra.mxu0 %v330
    %1005 = vmatprep.subr.mxu0 %v335
    %1006 = vmatpush1.msra.mxu0 %v334
    %1007 = vmatprep.subr.mxu0 %v339
    %1008 = vmatpush1.msra.mxu0 %v338
    %1009 = vmatprep.subr.mxu0 %v343
    %1010 = vmatpush1.msra.mxu0 %v342
    %1011 = vmatprep.subr.mxu0 %v347
    %1012 = vmatpush1.msra.mxu0 %v346
    %1013 = vmatprep.subr.mxu0 %v351
    %1014 = vmatpush1.msra.mxu0 %v350
    %1015 = vmatprep.subr.mxu0 %v355
    %1016 = vmatpush1.msra.mxu0 %v354
    %1017 = vmatprep.subr.mxu0 %v359
    %1018 = vmatpush1.msra.mxu0 %v358
    %1019 = vmatprep.subr.mxu0 %v363
    %1020 = vmatpush1.msra.mxu0 %v362
    %1021 = vmatprep.subr.mxu0 %v367
    %1022 = vmatpush1.msra.mxu0 %v366
    %1023 = vmatprep.mubr.f32.mxu0 0.0
    %1024 = vmatmul.mubr.f32.gmra.mrb[0].mxu0 %v958
    %v1025 = vpop.f32.mrb[0].mxu0
    %v1026 = vadd.f32 %v401, %v1025
    %v1027 = vpop.f32.mrb[0].mxu0
    %v1028 = vadd.f32 %v405, %v1027
    %1029 = vdwg.mxu0
    %1030 = vmatprep.subr.mxu0 %v245
    %1031 = vmatpush1.msra.mxu0 %v244
    %1032 = vmatprep.subr.mxu0 %v249
    %1033 = vmatpush1.msra.mxu0 %v248
    %1034 = vmatprep.subr.mxu0 %v253
    %1035 = vmatpush1.msra.mxu0 %v252
    %1036 = vmatprep.subr.mxu0 %v257
    %1037 = vmatpush1.msra.mxu0 %v256
    %1038 = vmatprep.subr.mxu0 %v261
    %1039 = vmatpush1.msra.mxu0 %v260
    %1040 = vmatprep.subr.mxu0 %v265
    %1041 = vmatpush1.msra.mxu0 %v264
    %1042 = vmatprep.subr.mxu0 %v269
    %1043 = vmatpush1.msra.mxu0 %v268
    %1044 = vmatprep.subr.mxu0 %v273
    %1045 = vmatpush1.msra.mxu0 %v272
    %1046 = vmatprep.subr.mxu0 %v277
    %1047 = vmatpush1.msra.mxu0 %v276
    %1048 = vmatprep.subr.mxu0 %v281
    %1049 = vmatpush1.msra.mxu0 %v280
    %1050 = vmatprep.subr.mxu0 %v285
    %1051 = vmatpush1.msra.mxu0 %v284
    %1052 = vmatprep.subr.mxu0 %v289
    %1053 = vmatpush1.msra.mxu0 %v288
    %1054 = vmatprep.subr.mxu0 %v293
    %1055 = vmatpush1.msra.mxu0 %v292
    %1056 = vmatprep.subr.mxu0 %v297
    %1057 = vmatpush1.msra.mxu0 %v296
    %1058 = vmatprep.subr.mxu0 %v301
    %1059 = vmatpush1.msra.mxu0 %v300
    %1060 = vmatprep.subr.mxu0 %v305
    %1061 = vmatpush1.msra.mxu0 %v304
    %1062 = vmatprep.subr.mxu0 %v309
    %1063 = vmatpush1.msra.mxu0 %v308
    %1064 = vmatprep.subr.mxu0 %v313
    %1065 = vmatpush1.msra.mxu0 %v312
    %1066 = vmatprep.subr.mxu0 %v317
    %1067 = vmatpush1.msra.mxu0 %v316
    %1068 = vmatprep.subr.mxu0 %v321
    %1069 = vmatpush1.msra.mxu0 %v320
    %1070 = vmatprep.subr.mxu0 %v325
    %1071 = vmatpush1.msra.mxu0 %v324
    %1072 = vmatprep.subr.mxu0 %v329
    %1073 = vmatpush1.msra.mxu0 %v328
    %1074 = vmatprep.subr.mxu0 %v333
    %1075 = vmatpush1.msra.mxu0 %v332
    %1076 = vmatprep.subr.mxu0 %v337
    %1077 = vmatpush1.msra.mxu0 %v336
    %1078 = vmatprep.subr.mxu0 %v341
    %1079 = vmatpush1.msra.mxu0 %v340
    %1080 = vmatprep.subr.mxu0 %v345
    %1081 = vmatpush1.msra.mxu0 %v344
    %1082 = vmatprep.subr.mxu0 %v349
    %1083 = vmatpush1.msra.mxu0 %v348
    %1084 = vmatprep.subr.mxu0 %v353
    %1085 = vmatpush1.msra.mxu0 %v352
    %1086 = vmatprep.subr.mxu0 %v357
    %1087 = vmatpush1.msra.mxu0 %v356
    %1088 = vmatprep.subr.mxu0 %v361
    %1089 = vmatpush1.msra.mxu0 %v360
    %1090 = vmatprep.subr.mxu0 %v365
    %1091 = vmatpush1.msra.mxu0 %v364
    %1092 = vmatprep.subr.mxu0 %v369
    %1093 = vmatpush1.msra.mxu0 %v368
    %1094 = vmatprep.mubr.f32.mxu0 0.0
    %1095 = vmatmul.mubr.f32.gmra.mrb[0].mxu0 %v958
    %v1096 = vpop.f32.mrb[0].mxu0
    %v1097 = vadd.f32 %v409, %v1096
    %v1098 = vpop.f32.mrb[0].mxu0
    %v1099 = vadd.f32 %v413, %v1098
    %1100 = vdwg.mxu0
    %v1101 = vmul.f32 %v435, %v1026
    %v1102 = vmul.f32 %v436, %v1028
    %v1103 = vmul.f32 %v437, %v1097
    %v1104 = vmul.f32 %v438, %v1099
    %v1105 = vtanh.pop %v1101
    %v1106 = vtanh.pop %v1102
    %v1107 = vtanh.pop %v1103
    %v1108 = vtanh.pop %v1104
    %v1109 = vmul.f32 %v435, %v1105
    %v1110 = vmul.f32 %v436, %v1106
    %v1111 = vmul.f32 %v437, %v1107
    %v1112 = vmul.f32 %v438, %v1108
    %v1113 = vadd.f32 %v1109, %v439
    %v1114 = vadd.f32 %v1110, %v440
    %v1115 = vadd.f32 %v1111, %v441
    %v1116 = vadd.f32 %v1112, %v442
    %v1117 = vmul.f32 %v1114, 0.0
    %v1118 = vmul.f32 %v1113, %v1115
    %v1119 = vadd.f32 %v1117, %v1118
    %v1120 = vtanh.pop %v1119
    %v1121 = vmul.f32 %v1116, %v1120
    %v1122 = vld [vmem:[%s2] sm:$0xff]
    %v1123 = vld [vmem:[%s2 + $0x8] sm:$0xff]
    %1124 = vmatprep.subr.mxu0 %v51
    %1125 = vmatpush1.msra.mxu0 %v50
    %1126 = vmatprep.subr.mxu0 %v55
    %1127 = vmatpush1.msra.mxu0 %v54
    %1128 = vmatprep.subr.mxu0 %v59
    %1129 = vmatpush1.msra.mxu0 %v58
    %1130 = vmatprep.subr.mxu0 %v63
    %1131 = vmatpush1.msra.mxu0 %v62
    %1132 = vmatprep.subr.mxu0 %v67
    %1133 = vmatpush1.msra.mxu0 %v66
    %1134 = vmatprep.subr.mxu0 %v71
    %1135 = vmatpush1.msra.mxu0 %v70
    %1136 = vmatprep.subr.mxu0 %v75
    %1137 = vmatpush1.msra.mxu0 %v74
    %1138 = vmatprep.subr.mxu0 %v79
    %1139 = vmatpush1.msra.mxu0 %v78
    %1140 = vmatprep.subr.mxu0 %v83
    %1141 = vmatpush1.msra.mxu0 %v82
    %1142 = vmatprep.subr.mxu0 %v87
    %1143 = vmatpush1.msra.mxu0 %v86
    %1144 = vmatprep.subr.mxu0 %v91
    %1145 = vmatpush1.msra.mxu0 %v90
    %1146 = vmatprep.subr.mxu0 %v95
    %1147 = vmatpush1.msra.mxu0 %v94
    %1148 = vmatprep.subr.mxu0 %v99
    %1149 = vmatpush1.msra.mxu0 %v98
    %1150 = vmatprep.subr.mxu0 %v103
    %1151 = vmatpush1.msra.mxu0 %v102
    %1152 = vmatprep.subr.mxu0 %v107
    %1153 = vmatpush1.msra.mxu0 %v106
    %1154 = vmatprep.subr.mxu0 %v111
    %1155 = vmatpush1.msra.mxu0 %v110
    %1156 = vmatprep.subr.mxu0 0.0
    %1157 = vmatpush1.msra.mxu0 0.0
    %1158 = vmatprep.subr.mxu0 0.0
    %1159 = vmatpush1.msra.mxu0 0.0
    %1160 = vmatprep.subr.mxu0 0.0
    %1161 = vmatpush1.msra.mxu0 0.0
    %1162 = vmatprep.subr.mxu0 0.0
    %1163 = vmatpush1.msra.mxu0 0.0
    %1164 = vmatprep.subr.mxu0 0.0
    %1165 = vmatpush1.msra.mxu0 0.0
    %1166 = vmatprep.subr.mxu0 0.0
    %1167 = vmatpush1.msra.mxu0 0.0
    %1168 = vmatprep.subr.mxu0 0.0
    %1169 = vmatpush1.msra.mxu0 0.0
    %1170 = vmatprep.subr.mxu0 0.0
    %1171 = vmatpush1.msra.mxu0 0.0
    %1172 = vmatprep.subr.mxu0 0.0
    %1173 = vmatpush1.msra.mxu0 0.0
    %1174 = vmatprep.subr.mxu0 0.0
    %1175 = vmatpush1.msra.mxu0 0.0
    %1176 = vmatprep.subr.mxu0 0.0
    %1177 = vmatpush1.msra.mxu0 0.0
    %1178 = vmatprep.subr.mxu0 0.0
    %1179 = vmatpush1.msra.mxu0 0.0
    %1180 = vmatprep.subr.mxu0 0.0
    %1181 = vmatpush1.msra.mxu0 0.0
    %1182 = vmatprep.subr.mxu0 0.0
    %1183 = vmatpush1.msra.mxu0 0.0
    %1184 = vmatprep.subr.mxu0 0.0
    %1185 = vmatpush1.msra.mxu0 0.0
    %1186 = vmatprep.subr.mxu0 0.0
    %1187 = vmatpush1.msra.mxu0 0.0
    %1188 = vmatprep.mubr.f32.mxu0 0.0
    %1189 = vmatmul.mubr.f32.gmra.mrb[0].mxu0 %v793
    %v1190 = vpop.f32.mrb[0].mxu0
    %v1191 = vadd.f32 0.0, %v1190
    %v1192 = vpop.f32.mrb[0].mxu0
    %v1193 = vadd.f32 0.0, %v1192
    %1194 = vdwg.mxu0
    %1195 = vmatprep.subr.mxu0 %v53
    %1196 = vmatpush1.msra.mxu0 %v52
    %1197 = vmatprep.subr.mxu0 %v57
    %1198 = vmatpush1.msra.mxu0 %v56
    %1199 = vmatprep.subr.mxu0 %v61
    %1200 = vmatpush1.msra.mxu0 %v60
    %1201 = vmatprep.subr.mxu0 %v65
    %1202 = vmatpush1.msra.mxu0 %v64
    %1203 = vmatprep.subr.mxu0 %v69
    %1204 = vmatpush1.msra.mxu0 %v68
    %1205 = vmatprep.subr.mxu0 %v73
    %1206 = vmatpush1.msra.mxu0 %v72
    %1207 = vmatprep.subr.mxu0 %v77
    %1208 = vmatpush1.msra.mxu0 %v76
    %1209 = vmatprep.subr.mxu0 %v81
    %1210 = vmatpush1.msra.mxu0 %v80
    %1211 = vmatprep.subr.mxu0 %v85
    %1212 = vmatpush1.msra.mxu0 %v84
    %1213 = vmatprep.subr.mxu0 %v89
    %1214 = vmatpush1.msra.mxu0 %v88
    %1215 = vmatprep.subr.mxu0 %v93
    %1216 = vmatpush1.msra.mxu0 %v92
    %1217 = vmatprep.subr.mxu0 %v97
    %1218 = vmatpush1.msra.mxu0 %v96
    %1219 = vmatprep.subr.mxu0 %v101
    %1220 = vmatpush1.msra.mxu0 %v100
    %1221 = vmatprep.subr.mxu0 %v105
    %1222 = vmatpush1.msra.mxu0 %v104
    %1223 = vmatprep.subr.mxu0 %v109
    %1224 = vmatpush1.msra.mxu0 %v108
    %1225 = vmatprep.subr.mxu0 %v113
    %1226 = vmatpush1.msra.mxu0 %v112
    %1227 = vmatprep.subr.mxu0 0.0
    %1228 = vmatpush1.msra.mxu0 0.0
    %1229 = vmatprep.subr.mxu0 0.0
    %1230 = vmatpush1.msra.mxu0 0.0
    %1231 = vmatprep.subr.mxu0 0.0
    %1232 = vmatpush1.msra.mxu0 0.0
    %1233 = vmatprep.subr.mxu0 0.0
    %1234 = vmatpush1.msra.mxu0 0.0
    %1235 = vmatprep.subr.mxu0 0.0
    %1236 = vmatpush1.msra.mxu0 0.0
    %1237 = vmatprep.subr.mxu0 0.0
    %1238 = vmatpush1.msra.mxu0 0.0
    %1239 = vmatprep.subr.mxu0 0.0
    %1240 = vmatpush1.msra.mxu0 0.0
    %1241 = vmatprep.subr.mxu0 0.0
    %1242 = vmatpush1.msra.mxu0 0.0
    %1243 = vmatprep.subr.mxu0 0.0
    %1244 = vmatpush1.msra.mxu0 0.0
    %1245 = vmatprep.subr.mxu0 0.0
    %1246 = vmatpush1.msra.mxu0 0.0
    %1247 = vmatprep.subr.mxu0 0.0
    %1248 = vmatpush1.msra.mxu0 0.0
    %1249 = vmatprep.subr.mxu0 0.0
    %1250 = vmatpush1.msra.mxu0 0.0
    %1251 = vmatprep.subr.mxu0 0.0
    %1252 = vmatpush1.msra.mxu0 0.0
    %1253 = vmatprep.subr.mxu0 0.0
    %1254 = vmatpush1.msra.mxu0 0.0
    %1255 = vmatprep.subr.mxu0 0.0
    %1256 = vmatpush1.msra.mxu0 0.0
    %1257 = vmatprep.subr.mxu0 0.0
    %1258 = vmatpush1.msra.mxu0 0.0
    %1259 = vmatprep.mubr.f32.mxu0 0.0
    %1260 = vmatmul.mubr.f32.gmra.mrb[0].mxu0 %v793
    %v1261 = vpop.f32.mrb[0].mxu0
    %v1262 = vadd.f32 0.0, %v1261
    %v1263 = vpop.f32.mrb[0].mxu0
    %v1264 = vadd.f32 0.0, %v1263
    %1265 = vdwg.mxu0
    %v1270 = vrot.slane %v1191, 6
    %v1271 = vrot.slane %v1193, 6
    %v1272 = vrot.slane %v1262, 6
    %v1273 = vrot.slane %v1264, 6
    %v1278 = vadd.f32 %v540, %v1270
    %v1279 = vadd.f32 %v542, %v1271
    %v1280 = vadd.f32 %v617, %v1272
    %v1281 = vadd.f32 %v619, %v1273
    %v1282 = vmul.f32 %v435, %v1278
    %v1283 = vmul.f32 %v436, %v1279
    %v1284 = vmul.f32 %v437, %v1280
    %v1285 = vmul.f32 %v438, %v1281
    %v1286 = vtanh.pop %v1282
    %v1287 = vtanh.pop %v1283
    %v1288 = vtanh.pop %v1284
    %v1289 = vtanh.pop %v1285
    %v1290 = vmul.f32 %v435, %v1286
    %v1291 = vmul.f32 %v436, %v1287
    %v1292 = vmul.f32 %v437, %v1288
    %v1293 = vmul.f32 %v438, %v1289
    %v1294 = vadd.f32 %v1290, %v439
    %v1295 = vadd.f32 %v1291, %v440
    %v1296 = vadd.f32 %v1292, %v441
    %v1297 = vadd.f32 %v1293, %v442
    %v1299 = vrot.slane %v791, 6
    %v1301 = vmul.f32 %v1295, %v1299
    %v1302 = vmul.f32 %v1294, %v1296
    %v1303 = vadd.f32 %v1301, %v1302
    %v1304 = vtanh.pop %v1303
    %v1305 = vmul.f32 %v1297, %v1304
    %v1306 = vtanh.pop %v1305
    %v1308 = vrot.slane %v957, 6
    %v1310 = vrot.slane %v1306, 2
    %v1311 = vrot.slane %v1308, 2
    %1314 = vmatprep.subr.mxu0 %v115
    %1315 = vmatpush1.msra.mxu0 %v114
    %1316 = vmatprep.subr.mxu0 %v119
    %1317 = vmatpush1.msra.mxu0 %v118
    %1318 = vmatprep.subr.mxu0 %v123
    %1319 = vmatpush1.msra.mxu0 %v122
    %1320 = vmatprep.subr.mxu0 %v127
    %1321 = vmatpush1.msra.mxu0 %v126
    %1322 = vmatprep.subr.mxu0 %v131
    %1323 = vmatpush1.msra.mxu0 %v130
    %1324 = vmatprep.subr.mxu0 %v135
    %1325 = vmatpush1.msra.mxu0 %v134
    %1326 = vmatprep.subr.mxu0 %v139
    %1327 = vmatpush1.msra.mxu0 %v138
    %1328 = vmatprep.subr.mxu0 %v143
    %1329 = vmatpush1.msra.mxu0 %v142
    %1330 = vmatprep.subr.mxu0 %v147
    %1331 = vmatpush1.msra.mxu0 %v146
    %1332 = vmatprep.subr.mxu0 %v151
    %1333 = vmatpush1.msra.mxu0 %v150
    %1334 = vmatprep.subr.mxu0 %v155
    %1335 = vmatpush1.msra.mxu0 %v154
    %1336 = vmatprep.subr.mxu0 %v159
    %1337 = vmatpush1.msra.mxu0 %v158
    %1338 = vmatprep.subr.mxu0 %v163
    %1339 = vmatpush1.msra.mxu0 %v162
    %1340 = vmatprep.subr.mxu0 %v167
    %1341 = vmatpush1.msra.mxu0 %v166
    %1342 = vmatprep.subr.mxu0 %v171
    %1343 = vmatpush1.msra.mxu0 %v170
    %1344 = vmatprep.subr.mxu0 %v175
    %1345 = vmatpush1.msra.mxu0 %v174
    %1346 = vmatprep.subr.mxu0 %v179
    %1347 = vmatpush1.msra.mxu0 %v178
    %1348 = vmatprep.subr.mxu0 %v183
    %1349 = vmatpush1.msra.mxu0 %v182
    %1350 = vmatprep.subr.mxu0 %v187
    %1351 = vmatpush1.msra.mxu0 %v186
    %1352 = vmatprep.subr.mxu0 %v191
    %1353 = vmatpush1.msra.mxu0 %v190
    %1354 = vmatprep.subr.mxu0 %v195
    %1355 = vmatpush1.msra.mxu0 %v194
    %1356 = vmatprep.subr.mxu0 %v199
    %1357 = vmatpush1.msra.mxu0 %v198
    %1358 = vmatprep.subr.mxu0 %v203
    %1359 = vmatpush1.msra.mxu0 %v202
    %1360 = vmatprep.subr.mxu0 %v207
    %1361 = vmatpush1.msra.mxu0 %v206
    %1362 = vmatprep.subr.mxu0 %v211
    %1363 = vmatpush1.msra.mxu0 %v210
    %1364 = vmatprep.subr.mxu0 %v215
    %1365 = vmatpush1.msra.mxu0 %v214
    %1366 = vmatprep.subr.mxu0 %v219
    %1367 = vmatpush1.msra.mxu0 %v218
    %1368 = vmatprep.subr.mxu0 %v223
    %1369 = vmatpush1.msra.mxu0 %v222
    %1370 = vmatprep.subr.mxu0 %v227
    %1371 = vmatpush1.msra.mxu0 %v226
    %1372 = vmatprep.subr.mxu0 %v231
    %1373 = vmatpush1.msra.mxu0 %v230
    %1374 = vmatprep.subr.mxu0 %v235
    %1375 = vmatpush1.msra.mxu0 %v234
    %1376 = vmatprep.subr.mxu0 %v239
    %1377 = vmatpush1.msra.mxu0 %v238
    %1378 = vmatprep.mubr.f32.mxu0 %v1311
    %1379 = vmatmul.mubr.f32.gmra.mrb[0].mxu0 %v1310
    %v1380 = vpop.f32.mrb[0].mxu0
    %v1381 = vadd.f32 %v378, %v1380
    %v1382 = vpop.f32.mrb[0].mxu0
    %v1383 = vadd.f32 %v382, %v1382
    %1384 = vdwg.mxu0
    %1385 = vmatprep.subr.mxu0 %v117
    %1386 = vmatpush1.msra.mxu0 %v116
    %1387 = vmatprep.subr.mxu0 %v121
    %1388 = vmatpush1.msra.mxu0 %v120
    %1389 = vmatprep.subr.mxu0 %v125
    %1390 = vmatpush1.msra.mxu0 %v124
    %1391 = vmatprep.subr.mxu0 %v129
    %1392 = vmatpush1.msra.mxu0 %v128
    %1393 = vmatprep.subr.mxu0 %v133
    %1394 = vmatpush1.msra.mxu0 %v132
    %1395 = vmatprep.subr.mxu0 %v137
    %1396 = vmatpush1.msra.mxu0 %v136
    %1397 = vmatprep.subr.mxu0 %v141
    %1398 = vmatpush1.msra.mxu0 %v140
    %1399 = vmatprep.subr.mxu0 %v145
    %1400 = vmatpush1.msra.mxu0 %v144
    %1401 = vmatprep.subr.mxu0 %v149
    %1402 = vmatpush1.msra.mxu0 %v148
    %1403 = vmatprep.subr.mxu0 %v153
    %1404 = vmatpush1.msra.mxu0 %v152
    %1405 = vmatprep.subr.mxu0 %v157
    %1406 = vmatpush1.msra.mxu0 %v156
    %1407 = vmatprep.subr.mxu0 %v161
    %1408 = vmatpush1.msra.mxu0 %v160
    %1409 = vmatprep.subr.mxu0 %v165
    %1410 = vmatpush1.msra.mxu0 %v164
    %1411 = vmatprep.subr.mxu0 %v169
    %1412 = vmatpush1.msra.mxu0 %v168
    %1413 = vmatprep.subr.mxu0 %v173
    %1414 = vmatpush1.msra.mxu0 %v172
    %1415 = vmatprep.subr.mxu0 %v177
    %1416 = vmatpush1.msra.mxu0 %v176
    %1417 = vmatprep.subr.mxu0 %v181
    %1418 = vmatpush1.msra.mxu0 %v180
    %1419 = vmatprep.subr.mxu0 %v185
    %1420 = vmatpush1.msra.mxu0 %v184
    %1421 = vmatprep.subr.mxu0 %v189
    %1422 = vmatpush1.msra.mxu0 %v188
    %1423 = vmatprep.subr.mxu0 %v193
    %1424 = vmatpush1.msra.mxu0 %v192
    %1425 = vmatprep.subr.mxu0 %v197
    %1426 = vmatpush1.msra.mxu0 %v196
    %1427 = vmatprep.subr.mxu0 %v201
    %1428 = vmatpush1.msra.mxu0 %v200
    %1429 = vmatprep.subr.mxu0 %v205
    %1430 = vmatpush1.msra.mxu0 %v204
    %1431 = vmatprep.subr.mxu0 %v209
    %1432 = vmatpush1.msra.mxu0 %v208
    %1433 = vmatprep.subr.mxu0 %v213
    %1434 = vmatpush1.msra.mxu0 %v212
    %1435 = vmatprep.subr.mxu0 %v217
    %1436 = vmatpush1.msra.mxu0 %v216
    %1437 = vmatprep.subr.mxu0 %v221
    %1438 = vmatpush1.msra.mxu0 %v220
    %1439 = vmatprep.subr.mxu0 %v225
    %1440 = vmatpush1.msra.mxu0 %v224
    %1441 = vmatprep.subr.mxu0 %v229
    %1442 = vmatpush1.msra.mxu0 %v228
    %1443 = vmatprep.subr.mxu0 %v233
    %1444 = vmatpush1.msra.mxu0 %v232
    %1445 = vmatprep.subr.mxu0 %v237
    %1446 = vmatpush1.msra.mxu0 %v236
    %1447 = vmatprep.subr.mxu0 %v241
    %1448 = vmatpush1.msra.mxu0 %v240
    %1449 = vmatprep.mubr.f32.mxu0 %v1311
    %1450 = vmatmul.mubr.f32.gmra.mrb[0].mxu0 %v1310
    %v1451 = vpop.f32.mrb[0].mxu0
    %v1452 = vadd.f32 %v386, %v1451
    %v1453 = vpop.f32.mrb[0].mxu0
    %v1454 = vadd.f32 %v390, %v1453
    %1455 = vdwg.mxu0
    %v1456 = vmul.f32 %v435, %v1381
    %v1457 = vmul.f32 %v436, %v1383
    %v1458 = vmul.f32 %v437, %v1452
    %v1459 = vmul.f32 %v438, %v1454
    %v1460 = vtanh.pop %v1456
    %v1461 = vtanh.pop %v1457
    %v1462 = vtanh.pop %v1458
    %v1463 = vtanh.pop %v1459
    %v1464 = vmul.f32 %v435, %v1460
    %v1465 = vmul.f32 %v436, %v1461
    %v1466 = vmul.f32 %v437, %v1462
    %v1467 = vmul.f32 %v438, %v1463
    %v1468 = vadd.f32 %v1464, %v439
    %v1469 = vadd.f32 %v1465, %v440
    %v1470 = vadd.f32 %v1466, %v441
    %v1471 = vadd.f32 %v1467, %v442
    %v1472 = vmul.f32 %v1469, %v955
    %v1473 = vmul.f32 %v1468, %v1470
    %v1474 = vadd.f32 %v1472, %v1473
    %v1475 = vtanh.pop %v1474
    %v1476 = vmul.f32 %v1471, %v1475
    %v1477 = vtanh.pop %v1476
    %1478 = vmatprep.subr.mxu0 %v243
    %1479 = vmatpush1.msra.mxu0 %v242
    %1480 = vmatprep.subr.mxu0 %v247
    %1481 = vmatpush1.msra.mxu0 %v246
    %1482 = vmatprep.subr.mxu0 %v251
    %1483 = vmatpush1.msra.mxu0 %v250
    %1484 = vmatprep.subr.mxu0 %v255
    %1485 = vmatpush1.msra.mxu0 %v254
    %1486 = vmatprep.subr.mxu0 %v259
    %1487 = vmatpush1.msra.mxu0 %v258
    %1488 = vmatprep.subr.mxu0 %v263
    %1489 = vmatpush1.msra.mxu0 %v262
    %1490 = vmatprep.subr.mxu0 %v267
    %1491 = vmatpush1.msra.mxu0 %v266
    %1492 = vmatprep.subr.mxu0 %v271
    %1493 = vmatpush1.msra.mxu0 %v270
    %1494 = vmatprep.subr.mxu0 %v275
    %1495 = vmatpush1.msra.mxu0 %v274
    %1496 = vmatprep.subr.mxu0 %v279
    %1497 = vmatpush1.msra.mxu0 %v278
    %1498 = vmatprep.subr.mxu0 %v283
    %1499 = vmatpush1.msra.mxu0 %v282
    %1500 = vmatprep.subr.mxu0 %v287
    %1501 = vmatpush1.msra.mxu0 %v286
    %1502 = vmatprep.subr.mxu0 %v291
    %1503 = vmatpush1.msra.mxu0 %v290
    %1504 = vmatprep.subr.mxu0 %v295
    %1505 = vmatpush1.msra.mxu0 %v294
    %1506 = vmatprep.subr.mxu0 %v299
    %1507 = vmatpush1.msra.mxu0 %v298
    %1508 = vmatprep.subr.mxu0 %v303
    %1509 = vmatpush1.msra.mxu0 %v302
    %1510 = vmatprep.subr.mxu0 %v307
    %1511 = vmatpush1.msra.mxu0 %v306
    %1512 = vmatprep.subr.mxu0 %v311
    %1513 = vmatpush1.msra.mxu0 %v310
    %1514 = vmatprep.subr.mxu0 %v315
    %1515 = vmatpush1.msra.mxu0 %v314
    %1516 = vmatprep.subr.mxu0 %v319
    %1517 = vmatpush1.msra.mxu0 %v318
    %1518 = vmatprep.subr.mxu0 %v323
    %1519 = vmatpush1.msra.mxu0 %v322
    %1520 = vmatprep.subr.mxu0 %v327
    %1521 = vmatpush1.msra.mxu0 %v326
    %1522 = vmatprep.subr.mxu0 %v331
    %1523 = vmatpush1.msra.mxu0 %v330
    %1524 = vmatprep.subr.mxu0 %v335
    %1525 = vmatpush1.msra.mxu0 %v334
    %1526 = vmatprep.subr.mxu0 %v339
    %1527 = vmatpush1.msra.mxu0 %v338
    %1528 = vmatprep.subr.mxu0 %v343
    %1529 = vmatpush1.msra.mxu0 %v342
    %1530 = vmatprep.subr.mxu0 %v347
    %1531 = vmatpush1.msra.mxu0 %v346
    %1532 = vmatprep.subr.mxu0 %v351
    %1533 = vmatpush1.msra.mxu0 %v350
    %1534 = vmatprep.subr.mxu0 %v355
    %1535 = vmatpush1.msra.mxu0 %v354
    %1536 = vmatprep.subr.mxu0 %v359
    %1537 = vmatpush1.msra.mxu0 %v358
    %1538 = vmatprep.subr.mxu0 %v363
    %1539 = vmatpush1.msra.mxu0 %v362
    %1540 = vmatprep.subr.mxu0 %v367
    %1541 = vmatpush1.msra.mxu0 %v366
    %1542 = vmatprep.mubr.f32.mxu0 %v1121
    %1543 = vmatmul.mubr.f32.gmra.mrb[0].mxu0 %v1477
    %v1544 = vpop.f32.mrb[0].mxu0
    %v1545 = vadd.f32 %v401, %v1544
    %v1546 = vpop.f32.mrb[0].mxu0
    %v1547 = vadd.f32 %v405, %v1546
    %1548 = vdwg.mxu0
    %1549 = vmatprep.subr.mxu0 %v245
    %1550 = vmatpush1.msra.mxu0 %v244
    %1551 = vmatprep.subr.mxu0 %v249
    %1552 = vmatpush1.msra.mxu0 %v248
    %1553 = vmatprep.subr.mxu0 %v253
    %1554 = vmatpush1.msra.mxu0 %v252
    %1555 = vmatprep.subr.mxu0 %v257
    %1556 = vmatpush1.msra.mxu0 %v256
    %1557 = vmatprep.subr.mxu0 %v261
    %1558 = vmatpush1.msra.mxu0 %v260
    %1559 = vmatprep.subr.mxu0 %v265
    %1560 = vmatpush1.msra.mxu0 %v264
    %1561 = vmatprep.subr.mxu0 %v269
    %1562 = vmatpush1.msra.mxu0 %v268
    %1563 = vmatprep.subr.mxu0 %v273
    %1564 = vmatpush1.msra.mxu0 %v272
    %1565 = vmatprep.subr.mxu0 %v277
    %1566 = vmatpush1.msra.mxu0 %v276
    %1567 = vmatprep.subr.mxu0 %v281
    %1568 = vmatpush1.msra.mxu0 %v280
    %1569 = vmatprep.subr.mxu0 %v285
    %1570 = vmatpush1.msra.mxu0 %v284
    %1571 = vmatprep.subr.mxu0 %v289
    %1572 = vmatpush1.msra.mxu0 %v288
    %1573 = vmatprep.subr.mxu0 %v293
    %1574 = vmatpush1.msra.mxu0 %v292
    %1575 = vmatprep.subr.mxu0 %v297
    %1576 = vmatpush1.msra.mxu0 %v296
    %1577 = vmatprep.subr.mxu0 %v301
    %1578 = vmatpush1.msra.mxu0 %v300
    %1579 = vmatprep.subr.mxu0 %v305
    %1580 = vmatpush1.msra.mxu0 %v304
    %1581 = vmatprep.subr.mxu0 %v309
    %1582 = vmatpush1.msra.mxu0 %v308
    %1583 = vmatprep.subr.mxu0 %v313
    %1584 = vmatpush1.msra.mxu0 %v312
    %1585 = vmatprep.subr.mxu0 %v317
    %1586 = vmatpush1.msra.mxu0 %v316
    %1587 = vmatprep.subr.mxu0 %v321
    %1588 = vmatpush1.msra.mxu0 %v320
    %1589 = vmatprep.subr.mxu0 %v325
    %1590 = vmatpush1.msra.mxu0 %v324
    %1591 = vmatprep.subr.mxu0 %v329
    %1592 = vmatpush1.msra.mxu0 %v328
    %1593 = vmatprep.subr.mxu0 %v333
    %1594 = vmatpush1.msra.mxu0 %v332
    %1595 = vmatprep.subr.mxu0 %v337
    %1596 = vmatpush1.msra.mxu0 %v336
    %1597 = vmatprep.subr.mxu0 %v341
    %1598 = vmatpush1.msra.mxu0 %v340
    %1599 = vmatprep.subr.mxu0 %v345
    %1600 = vmatpush1.msra.mxu0 %v344
    %1601 = vmatprep.subr.mxu0 %v349
    %1602 = vmatpush1.msra.mxu0 %v348
    %1603 = vmatprep.subr.mxu0 %v353
    %1604 = vmatpush1.msra.mxu0 %v352
    %1605 = vmatprep.subr.mxu0 %v357
    %1606 = vmatpush1.msra.mxu0 %v356
    %1607 = vmatprep.subr.mxu0 %v361
    %1608 = vmatpush1.msra.mxu0 %v360
    %1609 = vmatprep.subr.mxu0 %v365
    %1610 = vmatpush1.msra.mxu0 %v364
    %1611 = vmatprep.subr.mxu0 %v369
    %1612 = vmatpush1.msra.mxu0 %v368
    %1613 = vmatprep.mubr.f32.mxu0 %v1121
    %1614 = vmatmul.mubr.f32.gmra.mrb[0].mxu0 %v1477
    %v1615 = vpop.f32.mrb[0].mxu0
    %v1616 = vadd.f32 %v409, %v1615
    %v1617 = vpop.f32.mrb[0].mxu0
    %v1618 = vadd.f32 %v413, %v1617
    %1619 = vdwg.mxu0
    %v1620 = vmul.f32 %v435, %v1545
    %v1621 = vmul.f32 %v436, %v1547
    %v1622 = vmul.f32 %v437, %v1616
    %v1623 = vmul.f32 %v438, %v1618
    %v1624 = vtanh.pop %v1620
    %v1625 = vtanh.pop %v1621
    %v1626 = vtanh.pop %v1622
    %v1627 = vtanh.pop %v1623
    %v1628 = vmul.f32 %v435, %v1624
    %v1629 = vmul.f32 %v436, %v1625
    %v1630 = vmul.f32 %v437, %v1626
    %v1631 = vmul.f32 %v438, %v1627
    %v1632 = vadd.f32 %v1628, %v439
    %v1633 = vadd.f32 %v1629, %v440
    %v1634 = vadd.f32 %v1630, %v441
    %v1635 = vadd.f32 %v1631, %v442
    %v1636 = vmul.f32 %v1633, %v1119
    %v1637 = vmul.f32 %v1632, %v1634
    %v1638 = vadd.f32 %v1636, %v1637
    %v1639 = vtanh.pop %v1638
    %v1640 = vmul.f32 %v1635, %v1639
    %v1641 = vld [vmem:[%s2 + $0x10] sm:$0xff]
    %v1642 = vld [vmem:[%s2 + $0x18] sm:$0xff]
    %v1644 = vsel %vm466, %v1640, 0
    %1646 = vmatprep.subr.mxu0 0.0
    %1647 = vmatpush1.msra.mxu0 %v1641
    %1648 = vmatprep.subr.mxu0 0.0
    %1649 = vmatpush1.msra.mxu0 %v1642
    %1650 = vmatprep.subr.mxu0 0.0
    %1651 = vmatpush1.msra.mxu0 0.0
    %1652 = vmatprep.subr.mxu0 0.0
    %1653 = vmatpush1.msra.mxu0 0.0
    %1654 = vmatprep.subr.mxu0 0.0
    %1655 = vmatpush1.msra.mxu0 0.0
    %1656 = vmatprep.subr.mxu0 0.0
    %1657 = vmatpush1.msra.mxu0 0.0
    %1658 = vmatprep.subr.mxu0 0.0
    %1659 = vmatpush1.msra.mxu0 0.0
    %1660 = vmatprep.subr.mxu0 0.0
    %1661 = vmatpush1.msra.mxu0 0.0
    %1662 = vmatprep.subr.mxu0 0.0
    %1663 = vmatpush1.msra.mxu0 0.0
    %1664 = vmatprep.subr.mxu0 0.0
    %1665 = vmatpush1.msra.mxu0 0.0
    %1666 = vmatprep.subr.mxu0 0.0
    %1667 = vmatpush1.msra.mxu0 0.0
    %1668 = vmatprep.subr.mxu0 0.0
    %1669 = vmatpush1.msra.mxu0 0.0
    %1670 = vmatprep.subr.mxu0 0.0
    %1671 = vmatpush1.msra.mxu0 0.0
    %1672 = vmatprep.subr.mxu0 0.0
    %1673 = vmatpush1.msra.mxu0 0.0
    %1674 = vmatprep.subr.mxu0 0.0
    %1675 = vmatpush1.msra.mxu0 0.0
    %1676 = vmatprep.subr.mxu0 0.0
    %1677 = vmatpush1.msra.mxu0 0.0
    %1678 = vmatprep.subr.mxu0 0.0
    %1679 = vmatpush1.msra.mxu0 0.0
    %1680 = vmatprep.subr.mxu0 0.0
    %1681 = vmatpush1.msra.mxu0 0.0
    %1682 = vmatprep.subr.mxu0 0.0
    %1683 = vmatpush1.msra.mxu0 0.0
    %1684 = vmatprep.subr.mxu0 0.0
    %1685 = vmatpush1.msra.mxu0 0.0
    %1686 = vmatprep.subr.mxu0 0.0
    %1687 = vmatpush1.msra.mxu0 0.0
    %1688 = vmatprep.subr.mxu0 0.0
    %1689 = vmatpush1.msra.mxu0 0.0
    %1690 = vmatprep.subr.mxu0 0.0
    %1691 = vmatpush1.msra.mxu0 0.0
    %1692 = vmatprep.subr.mxu0 0.0
    %1693 = vmatpush1.msra.mxu0 0.0
    %1694 = vmatprep.subr.mxu0 0.0
    %1695 = vmatpush1.msra.mxu0 0.0
    %1696 = vmatprep.subr.mxu0 0.0
    %1697 = vmatpush1.msra.mxu0 0.0
    %1698 = vmatprep.subr.mxu0 0.0
    %1699 = vmatpush1.msra.mxu0 0.0
    %1700 = vmatprep.subr.mxu0 0.0
    %1701 = vmatpush1.msra.mxu0 0.0
    %1702 = vmatprep.subr.mxu0 0.0
    %1703 = vmatpush1.msra.mxu0 0.0
    %1704 = vmatprep.subr.mxu0 0.0
    %1705 = vmatpush1.msra.mxu0 0.0
    %1706 = vmatprep.subr.mxu0 0.0
    %1707 = vmatpush1.msra.mxu0 0.0
    %1708 = vmatprep.subr.mxu0 0.0
    %1709 = vmatpush1.msra.mxu0 0.0
    %1710 = vmatprep.mubr.f32.mxu0 0.0
    %1711 = vmatmul.mubr.f32.gmra.mrb[0].mxu0 %v1644
    %v1712 = vpop.f32.mrb[0].mxu0
    %v1713 = vadd.f32 0.0, %v1712
    %v1714 = vpop.f32.mrb[0].mxu0
    %1715 = vdwg.mxu0
    %v1717 = vsel %vm466, %v1121, 0
    %1719 = vmatprep.subr.mxu0 0.0
    %1720 = vmatpush1.msra.mxu0 %v1122
    %1721 = vmatprep.subr.mxu0 0.0
    %1722 = vmatpush1.msra.mxu0 %v1123
    %1723 = vmatprep.subr.mxu0 0.0
    %1724 = vmatpush1.msra.mxu0 0.0
    %1725 = vmatprep.subr.mxu0 0.0
    %1726 = vmatpush1.msra.mxu0 0.0
    %1727 = vmatprep.subr.mxu0 0.0
    %1728 = vmatpush1.msra.mxu0 0.0
    %1729 = vmatprep.subr.mxu0 0.0
    %1730 = vmatpush1.msra.mxu0 0.0
    %1731 = vmatprep.subr.mxu0 0.0
    %1732 = vmatpush1.msra.mxu0 0.0
    %1733 = vmatprep.subr.mxu0 0.0
    %1734 = vmatpush1.msra.mxu0 0.0
    %1735 = vmatprep.subr.mxu0 0.0
    %1736 = vmatpush1.msra.mxu0 0.0
    %1737 = vmatprep.subr.mxu0 0.0
    %1738 = vmatpush1.msra.mxu0 0.0
    %1739 = vmatprep.subr.mxu0 0.0
    %1740 = vmatpush1.msra.mxu0 0.0
    %1741 = vmatprep.subr.mxu0 0.0
    %1742 = vmatpush1.msra.mxu0 0.0
    %1743 = vmatprep.subr.mxu0 0.0
    %1744 = vmatpush1.msra.mxu0 0.0
    %1745 = vmatprep.subr.mxu0 0.0
    %1746 = vmatpush1.msra.mxu0 0.0
    %1747 = vmatprep.subr.mxu0 0.0
    %1748 = vmatpush1.msra.mxu0 0.0
    %1749 = vmatprep.subr.mxu0 0.0
    %1750 = vmatpush1.msra.mxu0 0.0
    %1751 = vmatprep.subr.mxu0 0.0
    %1752 = vmatpush1.msra.mxu0 0.0
    %1753 = vmatprep.subr.mxu0 0.0
    %1754 = vmatpush1.msra.mxu0 0.0
    %1755 = vmatprep.subr.mxu0 0.0
    %1756 = vmatpush1.msra.mxu0 0.0
    %1757 = vmatprep.subr.mxu0 0.0
    %1758 = vmatpush1.msra.mxu0 0.0
    %1759 = vmatprep.subr.mxu0 0.0
    %1760 = vmatpush1.msra.mxu0 0.0
    %1761 = vmatprep.subr.mxu0 0.0
    %1762 = vmatpush1.msra.mxu0 0.0
    %1763 = vmatprep.subr.mxu0 0.0
    %1764 = vmatpush1.msra.mxu0 0.0
    %1765 = vmatprep.subr.mxu0 0.0
    %1766 = vmatpush1.msra.mxu0 0.0
    %1767 = vmatprep.subr.mxu0 0.0
    %1768 = vmatpush1.msra.mxu0 0.0
    %1769 = vmatprep.subr.mxu0 0.0
    %1770 = vmatpush1.msra.mxu0 0.0
    %1771 = vmatprep.subr.mxu0 0.0
    %1772 = vmatpush1.msra.mxu0 0.0
    %1773 = vmatprep.subr.mxu0 0.0
    %1774 = vmatpush1.msra.mxu0 0.0
    %1775 = vmatprep.subr.mxu0 0.0
    %1776 = vmatpush1.msra.mxu0 0.0
    %1777 = vmatprep.subr.mxu0 0.0
    %1778 = vmatpush1.msra.mxu0 0.0
    %1779 = vmatprep.subr.mxu0 0.0
    %1780 = vmatpush1.msra.mxu0 0.0
    %1781 = vmatprep.subr.mxu0 0.0
    %1782 = vmatpush1.msra.mxu0 0.0
    %1783 = vmatprep.mubr.f32.mxu0 0.0
    %1784 = vmatmul.mubr.f32.gmra.mrb[0].mxu0 %v1717
    %v1785 = vpop.f32.mrb[0].mxu0
    %v1786 = vadd.f32 %v1713, %v1785
    %v1787 = vpop.f32.mrb[0].mxu0
    %1788 = vdwg.mxu0
    %v1790 = vrot.slane %v1305, 2
    %1792 = vmatprep.subr.mxu0 %v51
    %1793 = vmatpush1.msra.mxu0 %v50
    %1794 = vmatprep.subr.mxu0 %v55
    %1795 = vmatpush1.msra.mxu0 %v54
    %1796 = vmatprep.subr.mxu0 %v59
    %1797 = vmatpush1.msra.mxu0 %v58
    %1798 = vmatprep.subr.mxu0 %v63
    %1799 = vmatpush1.msra.mxu0 %v62
    %1800 = vmatprep.subr.mxu0 %v67
    %1801 = vmatpush1.msra.mxu0 %v66
    %1802 = vmatprep.subr.mxu0 %v71
    %1803 = vmatpush1.msra.mxu0 %v70
    %1804 = vmatprep.subr.mxu0 %v75
    %1805 = vmatpush1.msra.mxu0 %v74
    %1806 = vmatprep.subr.mxu0 %v79
    %1807 = vmatpush1.msra.mxu0 %v78
    %1808 = vmatprep.subr.mxu0 %v83
    %1809 = vmatpush1.msra.mxu0 %v82
    %1810 = vmatprep.subr.mxu0 %v87
    %1811 = vmatpush1.msra.mxu0 %v86
    %1812 = vmatprep.subr.mxu0 %v91
    %1813 = vmatpush1.msra.mxu0 %v90
    %1814 = vmatprep.subr.mxu0 %v95
    %1815 = vmatpush1.msra.mxu0 %v94
    %1816 = vmatprep.subr.mxu0 %v99
    %1817 = vmatpush1.msra.mxu0 %v98
    %1818 = vmatprep.subr.mxu0 %v103
    %1819 = vmatpush1.msra.mxu0 %v102
    %1820 = vmatprep.subr.mxu0 %v107
    %1821 = vmatpush1.msra.mxu0 %v106
    %1822 = vmatprep.subr.mxu0 %v111
    %1823 = vmatpush1.msra.mxu0 %v110
    %1824 = vmatprep.subr.mxu0 0.0
    %1825 = vmatpush1.msra.mxu0 0.0
    %1826 = vmatprep.subr.mxu0 0.0
    %1827 = vmatpush1.msra.mxu0 0.0
    %1828 = vmatprep.subr.mxu0 0.0
    %1829 = vmatpush1.msra.mxu0 0.0
    %1830 = vmatprep.subr.mxu0 0.0
    %1831 = vmatpush1.msra.mxu0 0.0
    %1832 = vmatprep.subr.mxu0 0.0
    %1833 = vmatpush1.msra.mxu0 0.0
    %1834 = vmatprep.subr.mxu0 0.0
    %1835 = vmatpush1.msra.mxu0 0.0
    %1836 = vmatprep.subr.mxu0 0.0
    %1837 = vmatpush1.msra.mxu0 0.0
    %1838 = vmatprep.subr.mxu0 0.0
    %1839 = vmatpush1.msra.mxu0 0.0
    %1840 = vmatprep.subr.mxu0 0.0
    %1841 = vmatpush1.msra.mxu0 0.0
    %1842 = vmatprep.subr.mxu0 0.0
    %1843 = vmatpush1.msra.mxu0 0.0
    %1844 = vmatprep.subr.mxu0 0.0
    %1845 = vmatpush1.msra.mxu0 0.0
    %1846 = vmatprep.subr.mxu0 0.0
    %1847 = vmatpush1.msra.mxu0 0.0
    %1848 = vmatprep.subr.mxu0 0.0
    %1849 = vmatpush1.msra.mxu0 0.0
    %1850 = vmatprep.subr.mxu0 0.0
    %1851 = vmatpush1.msra.mxu0 0.0
    %1852 = vmatprep.subr.mxu0 0.0
    %1853 = vmatpush1.msra.mxu0 0.0
    %1854 = vmatprep.subr.mxu0 0.0
    %1855 = vmatpush1.msra.mxu0 0.0
    %1856 = vmatprep.mubr.f32.mxu0 0.0
    %1857 = vmatmul.mubr.f32.gmra.mrb[0].mxu0 %v1790
    %v1858 = vpop.f32.mrb[0].mxu0
    %v1859 = vadd.f32 0.0, %v1858
    %v1860 = vpop.f32.mrb[0].mxu0
    %v1861 = vadd.f32 0.0, %v1860
    %1862 = vdwg.mxu0
    %1863 = vmatprep.subr.mxu0 %v53
    %1864 = vmatpush1.msra.mxu0 %v52
    %1865 = vmatprep.subr.mxu0 %v57
    %1866 = vmatpush1.msra.mxu0 %v56
    %1867 = vmatprep.subr.mxu0 %v61
    %1868 = vmatpush1.msra.mxu0 %v60
    %1869 = vmatprep.subr.mxu0 %v65
    %1870 = vmatpush1.msra.mxu0 %v64
    %1871 = vmatprep.subr.mxu0 %v69
    %1872 = vmatpush1.msra.mxu0 %v68
    %1873 = vmatprep.subr.mxu0 %v73
    %1874 = vmatpush1.msra.mxu0 %v72
    %1875 = vmatprep.subr.mxu0 %v77
    %1876 = vmatpush1.msra.mxu0 %v76
    %1877 = vmatprep.subr.mxu0 %v81
    %1878 = vmatpush1.msra.mxu0 %v80
    %1879 = vmatprep.subr.mxu0 %v85
    %1880 = vmatpush1.msra.mxu0 %v84
    %1881 = vmatprep.subr.mxu0 %v89
    %1882 = vmatpush1.msra.mxu0 %v88
    %1883 = vmatprep.subr.mxu0 %v93
    %1884 = vmatpush1.msra.mxu0 %v92
    %1885 = vmatprep.subr.mxu0 %v97
    %1886 = vmatpush1.msra.mxu0 %v96
    %1887 = vmatprep.subr.mxu0 %v101
    %1888 = vmatpush1.msra.mxu0 %v100
    %1889 = vmatprep.subr.mxu0 %v105
    %1890 = vmatpush1.msra.mxu0 %v104
    %1891 = vmatprep.subr.mxu0 %v109
    %1892 = vmatpush1.msra.mxu0 %v108
    %1893 = vmatprep.subr.mxu0 %v113
    %1894 = vmatpush1.msra.mxu0 %v112
    %1895 = vmatprep.subr.mxu0 0.0
    %1896 = vmatpush1.msra.mxu0 0.0
    %1897 = vmatprep.subr.mxu0 0.0
    %1898 = vmatpush1.msra.mxu0 0.0
    %1899 = vmatprep.subr.mxu0 0.0
    %1900 = vmatpush1.msra.mxu0 0.0
    %1901 = vmatprep.subr.mxu0 0.0
    %1902 = vmatpush1.msra.mxu0 0.0
    %1903 = vmatprep.subr.mxu0 0.0
    %1904 = vmatpush1.msra.mxu0 0.0
    %1905 = vmatprep.subr.mxu0 0.0
    %1906 = vmatpush1.msra.mxu0 0.0
    %1907 = vmatprep.subr.mxu0 0.0
    %1908 = vmatpush1.msra.mxu0 0.0
    %1909 = vmatprep.subr.mxu0 0.0
    %1910 = vmatpush1.msra.mxu0 0.0
    %1911 = vmatprep.subr.mxu0 0.0
    %1912 = vmatpush1.msra.mxu0 0.0
    %1913 = vmatprep.subr.mxu0 0.0
    %1914 = vmatpush1.msra.mxu0 0.0
    %1915 = vmatprep.subr.mxu0 0.0
    %1916 = vmatpush1.msra.mxu0 0.0
    %1917 = vmatprep.subr.mxu0 0.0
    %1918 = vmatpush1.msra.mxu0 0.0
    %1919 = vmatprep.subr.mxu0 0.0
    %1920 = vmatpush1.msra.mxu0 0.0
    %1921 = vmatprep.subr.mxu0 0.0
    %1922 = vmatpush1.msra.mxu0 0.0
    %1923 = vmatprep.subr.mxu0 0.0
    %1924 = vmatpush1.msra.mxu0 0.0
    %1925 = vmatprep.subr.mxu0 0.0
    %1926 = vmatpush1.msra.mxu0 0.0
    %1927 = vmatprep.mubr.f32.mxu0 0.0
    %1928 = vmatmul.mubr.f32.gmra.mrb[0].mxu0 %v1790
    %v1929 = vpop.f32.mrb[0].mxu0
    %v1930 = vadd.f32 0.0, %v1929
    %v1931 = vpop.f32.mrb[0].mxu0
    %v1932 = vadd.f32 0.0, %v1931
    %1933 = vdwg.mxu0
    %v1938 = vrot.slane %v1859, 4
    %v1939 = vrot.slane %v1861, 4
    %v1940 = vrot.slane %v1930, 4
    %v1941 = vrot.slane %v1932, 4
    %v1946 = vadd.f32 %v540, %v1938
    %v1947 = vadd.f32 %v542, %v1939
    %v1948 = vadd.f32 %v617, %v1940
    %v1949 = vadd.f32 %v619, %v1941
    %v1950 = vmul.f32 %v435, %v1946
    %v1951 = vmul.f32 %v436, %v1947
    %v1952 = vmul.f32 %v437, %v1948
    %v1953 = vmul.f32 %v438, %v1949
    %v1954 = vtanh.pop %v1950
    %v1955 = vtanh.pop %v1951
    %v1956 = vtanh.pop %v1952
    %v1957 = vtanh.pop %v1953
    %v1958 = vmul.f32 %v435, %v1954
    %v1959 = vmul.f32 %v436, %v1955
    %v1960 = vmul.f32 %v437, %v1956
    %v1961 = vmul.f32 %v438, %v1957
    %v1962 = vadd.f32 %v1958, %v439
    %v1963 = vadd.f32 %v1959, %v440
    %v1964 = vadd.f32 %v1960, %v441
    %v1965 = vadd.f32 %v1961, %v442
    %v1967 = vrot.slane %v1303, 6
    %v1969 = vmul.f32 %v1963, %v1967
    %v1970 = vmul.f32 %v1962, %v1964
    %v1971 = vadd.f32 %v1969, %v1970
    %v1972 = vtanh.pop %v1971
    %v1973 = vmul.f32 %v1965, %v1972
    %v1974 = vtanh.pop %v1973
    %v1976 = vrot.slane %v1476, 4
    %v1978 = vrot.slane %v1974, 4
    %v1979 = vrot.slane %v1976, 4
    %1982 = vmatprep.subr.mxu0 %v115
    %1983 = vmatpush1.msra.mxu0 %v114
    %1984 = vmatprep.subr.mxu0 %v119
    %1985 = vmatpush1.msra.mxu0 %v118
    %1986 = vmatprep.subr.mxu0 %v123
    %1987 = vmatpush1.msra.mxu0 %v122
    %1988 = vmatprep.subr.mxu0 %v127
    %1989 = vmatpush1.msra.mxu0 %v126
    %1990 = vmatprep.subr.mxu0 %v131
    %1991 = vmatpush1.msra.mxu0 %v130
    %1992 = vmatprep.subr.mxu0 %v135
    %1993 = vmatpush1.msra.mxu0 %v134
    %1994 = vmatprep.subr.mxu0 %v139
    %1995 = vmatpush1.msra.mxu0 %v138
    %1996 = vmatprep.subr.mxu0 %v143
    %1997 = vmatpush1.msra.mxu0 %v142
    %1998 = vmatprep.subr.mxu0 %v147
    %1999 = vmatpush1.msra.mxu0 %v146
    %2000 = vmatprep.subr.mxu0 %v151
    %2001 = vmatpush1.msra.mxu0 %v150
    %2002 = vmatprep.subr.mxu0 %v155
    %2003 = vmatpush1.msra.mxu0 %v154
    %2004 = vmatprep.subr.mxu0 %v159
    %2005 = vmatpush1.msra.mxu0 %v158
    %2006 = vmatprep.subr.mxu0 %v163
    %2007 = vmatpush1.msra.mxu0 %v162
    %2008 = vmatprep.subr.mxu0 %v167
    %2009 = vmatpush1.msra.mxu0 %v166
    %2010 = vmatprep.subr.mxu0 %v171
    %2011 = vmatpush1.msra.mxu0 %v170
    %2012 = vmatprep.subr.mxu0 %v175
    %2013 = vmatpush1.msra.mxu0 %v174
    %2014 = vmatprep.subr.mxu0 %v179
    %2015 = vmatpush1.msra.mxu0 %v178
    %2016 = vmatprep.subr.mxu0 %v183
    %2017 = vmatpush1.msra.mxu0 %v182
    %2018 = vmatprep.subr.mxu0 %v187
    %2019 = vmatpush1.msra.mxu0 %v186
    %2020 = vmatprep.subr.mxu0 %v191
    %2021 = vmatpush1.msra.mxu0 %v190
    %2022 = vmatprep.subr.mxu0 %v195
    %2023 = vmatpush1.msra.mxu0 %v194
    %2024 = vmatprep.subr.mxu0 %v199
    %2025 = vmatpush1.msra.mxu0 %v198
    %2026 = vmatprep.subr.mxu0 %v203
    %2027 = vmatpush1.msra.mxu0 %v202
    %2028 = vmatprep.subr.mxu0 %v207
    %2029 = vmatpush1.msra.mxu0 %v206
    %2030 = vmatprep.subr.mxu0 %v211
    %2031 = vmatpush1.msra.mxu0 %v210
    %2032 = vmatprep.subr.mxu0 %v215
    %2033 = vmatpush1.msra.mxu0 %v214
    %2034 = vmatprep.subr.mxu0 %v219
    %2035 = vmatpush1.msra.mxu0 %v218
    %2036 = vmatprep.subr.mxu0 %v223
    %2037 = vmatpush1.msra.mxu0 %v222
    %2038 = vmatprep.subr.mxu0 %v227
    %2039 = vmatpush1.msra.mxu0 %v226
    %2040 = vmatprep.subr.mxu0 %v231
    %2041 = vmatpush1.msra.mxu0 %v230
    %2042 = vmatprep.subr.mxu0 %v235
    %2043 = vmatpush1.msra.mxu0 %v234
    %2044 = vmatprep.subr.mxu0 %v239
    %2045 = vmatpush1.msra.mxu0 %v238
    %2046 = vmatprep.mubr.f32.mxu0 %v1979
    %2047 = vmatmul.mubr.f32.gmra.mrb[0].mxu0 %v1978
    %v2048 = vpop.f32.mrb[0].mxu0
    %v2049 = vadd.f32 %v378, %v2048
    %v2050 = vpop.f32.mrb[0].mxu0
    %v2051 = vadd.f32 %v382, %v2050
    %2052 = vdwg.mxu0
    %2053 = vmatprep.subr.mxu0 %v117
    %2054 = vmatpush1.msra.mxu0 %v116
    %2055 = vmatprep.subr.mxu0 %v121
    %2056 = vmatpush1.msra.mxu0 %v120
    %2057 = vmatprep.subr.mxu0 %v125
    %2058 = vmatpush1.msra.mxu0 %v124
    %2059 = vmatprep.subr.mxu0 %v129
    %2060 = vmatpush1.msra.mxu0 %v128
    %2061 = vmatprep.subr.mxu0 %v133
    %2062 = vmatpush1.msra.mxu0 %v132
    %2063 = vmatprep.subr.mxu0 %v137
    %2064 = vmatpush1.msra.mxu0 %v136
    %2065 = vmatprep.subr.mxu0 %v141
    %2066 = vmatpush1.msra.mxu0 %v140
    %2067 = vmatprep.subr.mxu0 %v145
    %2068 = vmatpush1.msra.mxu0 %v144
    %2069 = vmatprep.subr.mxu0 %v149
    %2070 = vmatpush1.msra.mxu0 %v148
    %2071 = vmatprep.subr.mxu0 %v153
    %2072 = vmatpush1.msra.mxu0 %v152
    %2073 = vmatprep.subr.mxu0 %v157
    %2074 = vmatpush1.msra.mxu0 %v156
    %2075 = vmatprep.subr.mxu0 %v161
    %2076 = vmatpush1.msra.mxu0 %v160
    %2077 = vmatprep.subr.mxu0 %v165
    %2078 = vmatpush1.msra.mxu0 %v164
    %2079 = vmatprep.subr.mxu0 %v169
    %2080 = vmatpush1.msra.mxu0 %v168
    %2081 = vmatprep.subr.mxu0 %v173
    %2082 = vmatpush1.msra.mxu0 %v172
    %2083 = vmatprep.subr.mxu0 %v177
    %2084 = vmatpush1.msra.mxu0 %v176
    %2085 = vmatprep.subr.mxu0 %v181
    %2086 = vmatpush1.msra.mxu0 %v180
    %2087 = vmatprep.subr.mxu0 %v185
    %2088 = vmatpush1.msra.mxu0 %v184
    %2089 = vmatprep.subr.mxu0 %v189
    %2090 = vmatpush1.msra.mxu0 %v188
    %2091 = vmatprep.subr.mxu0 %v193
    %2092 = vmatpush1.msra.mxu0 %v192
    %2093 = vmatprep.subr.mxu0 %v197
    %2094 = vmatpush1.msra.mxu0 %v196
    %2095 = vmatprep.subr.mxu0 %v201
    %2096 = vmatpush1.msra.mxu0 %v200
    %2097 = vmatprep.subr.mxu0 %v205
    %2098 = vmatpush1.msra.mxu0 %v204
    %2099 = vmatprep.subr.mxu0 %v209
    %2100 = vmatpush1.msra.mxu0 %v208
    %2101 = vmatprep.subr.mxu0 %v213
    %2102 = vmatpush1.msra.mxu0 %v212
    %2103 = vmatprep.subr.mxu0 %v217
    %2104 = vmatpush1.msra.mxu0 %v216
    %2105 = vmatprep.subr.mxu0 %v221
    %2106 = vmatpush1.msra.mxu0 %v220
    %2107 = vmatprep.subr.mxu0 %v225
    %2108 = vmatpush1.msra.mxu0 %v224
    %2109 = vmatprep.subr.mxu0 %v229
    %2110 = vmatpush1.msra.mxu0 %v228
    %2111 = vmatprep.subr.mxu0 %v233
    %2112 = vmatpush1.msra.mxu0 %v232
    %2113 = vmatprep.subr.mxu0 %v237
    %2114 = vmatpush1.msra.mxu0 %v236
    %2115 = vmatprep.subr.mxu0 %v241
    %2116 = vmatpush1.msra.mxu0 %v240
    %2117 = vmatprep.mubr.f32.mxu0 %v1979
    %2118 = vmatmul.mubr.f32.gmra.mrb[0].mxu0 %v1978
    %v2119 = vpop.f32.mrb[0].mxu0
    %v2120 = vadd.f32 %v386, %v2119
    %v2121 = vpop.f32.mrb[0].mxu0
    %v2122 = vadd.f32 %v390, %v2121
    %2123 = vdwg.mxu0
    %v2124 = vmul.f32 %v435, %v2049
    %v2125 = vmul.f32 %v436, %v2051
    %v2126 = vmul.f32 %v437, %v2120
    %v2127 = vmul.f32 %v438, %v2122
    %v2128 = vtanh.pop %v2124
    %v2129 = vtanh.pop %v2125
    %v2130 = vtanh.pop %v2126
    %v2131 = vtanh.pop %v2127
    %v2132 = vmul.f32 %v435, %v2128
    %v2133 = vmul.f32 %v436, %v2129
    %v2134 = vmul.f32 %v437, %v2130
    %v2135 = vmul.f32 %v438, %v2131
    %v2136 = vadd.f32 %v2132, %v439
    %v2137 = vadd.f32 %v2133, %v440
    %v2138 = vadd.f32 %v2134, %v441
    %v2139 = vadd.f32 %v2135, %v442
    %v2140 = vmul.f32 %v2137, %v1474
    %v2141 = vmul.f32 %v2136, %v2138
    %v2142 = vadd.f32 %v2140, %v2141
    %v2143 = vtanh.pop %v2142
    %v2144 = vmul.f32 %v2139, %v2143
    %v2145 = vtanh.pop %v2144
    %2146 = vmatprep.subr.mxu0 %v243
    %2147 = vmatpush1.msra.mxu0 %v242
    %2148 = vmatprep.subr.mxu0 %v247
    %2149 = vmatpush1.msra.mxu0 %v246
    %2150 = vmatprep.subr.mxu0 %v251
    %2151 = vmatpush1.msra.mxu0 %v250
    %2152 = vmatprep.subr.mxu0 %v255
    %2153 = vmatpush1.msra.mxu0 %v254
    %2154 = vmatprep.subr.mxu0 %v259
    %2155 = vmatpush1.msra.mxu0 %v258
    %2156 = vmatprep.subr.mxu0 %v263
    %2157 = vmatpush1.msra.mxu0 %v262
    %2158 = vmatprep.subr.mxu0 %v267
    %2159 = vmatpush1.msra.mxu0 %v266
    %2160 = vmatprep.subr.mxu0 %v271
    %2161 = vmatpush1.msra.mxu0 %v270
    %2162 = vmatprep.subr.mxu0 %v275
    %2163 = vmatpush1.msra.mxu0 %v274
    %2164 = vmatprep.subr.mxu0 %v279
    %2165 = vmatpush1.msra.mxu0 %v278
    %2166 = vmatprep.subr.mxu0 %v283
    %2167 = vmatpush1.msra.mxu0 %v282
    %2168 = vmatprep.subr.mxu0 %v287
    %2169 = vmatpush1.msra.mxu0 %v286
    %2170 = vmatprep.subr.mxu0 %v291
    %2171 = vmatpush1.msra.mxu0 %v290
    %2172 = vmatprep.subr.mxu0 %v295
    %2173 = vmatpush1.msra.mxu0 %v294
    %2174 = vmatprep.subr.mxu0 %v299
    %2175 = vmatpush1.msra.mxu0 %v298
    %2176 = vmatprep.subr.mxu0 %v303
    %2177 = vmatpush1.msra.mxu0 %v302
    %2178 = vmatprep.subr.mxu0 %v307
    %2179 = vmatpush1.msra.mxu0 %v306
    %2180 = vmatprep.subr.mxu0 %v311
    %2181 = vmatpush1.msra.mxu0 %v310
    %2182 = vmatprep.subr.mxu0 %v315
    %2183 = vmatpush1.msra.mxu0 %v314
    %2184 = vmatprep.subr.mxu0 %v319
    %2185 = vmatpush1.msra.mxu0 %v318
    %2186 = vmatprep.subr.mxu0 %v323
    %2187 = vmatpush1.msra.mxu0 %v322
    %2188 = vmatprep.subr.mxu0 %v327
    %2189 = vmatpush1.msra.mxu0 %v326
    %2190 = vmatprep.subr.mxu0 %v331
    %2191 = vmatpush1.msra.mxu0 %v330
    %2192 = vmatprep.subr.mxu0 %v335
    %2193 = vmatpush1.msra.mxu0 %v334
    %2194 = vmatprep.subr.mxu0 %v339
    %2195 = vmatpush1.msra.mxu0 %v338
    %2196 = vmatprep.subr.mxu0 %v343
    %2197 = vmatpush1.msra.mxu0 %v342
    %2198 = vmatprep.subr.mxu0 %v347
    %2199 = vmatpush1.msra.mxu0 %v346
    %2200 = vmatprep.subr.mxu0 %v351
    %2201 = vmatpush1.msra.mxu0 %v350
    %2202 = vmatprep.subr.mxu0 %v355
    %2203 = vmatpush1.msra.mxu0 %v354
    %2204 = vmatprep.subr.mxu0 %v359
    %2205 = vmatpush1.msra.mxu0 %v358
    %2206 = vmatprep.subr.mxu0 %v363
    %2207 = vmatpush1.msra.mxu0 %v362
    %2208 = vmatprep.subr.mxu0 %v367
    %2209 = vmatpush1.msra.mxu0 %v366
    %2210 = vmatprep.mubr.f32.mxu0 %v1640
    %2211 = vmatmul.mubr.f32.gmra.mrb[0].mxu0 %v2145
    %v2212 = vpop.f32.mrb[0].mxu0
    %v2213 = vadd.f32 %v401, %v2212
    %v2214 = vpop.f32.mrb[0].mxu0
    %v2215 = vadd.f32 %v405, %v2214
    %2216 = vdwg.mxu0
    %2217 = vmatprep.subr.mxu0 %v245
    %2218 = vmatpush1.msra.mxu0 %v244
    %2219 = vmatprep.subr.mxu0 %v249
    %2220 = vmatpush1.msra.mxu0 %v248
    %2221 = vmatprep.subr.mxu0 %v253
    %2222 = vmatpush1.msra.mxu0 %v252
    %2223 = vmatprep.subr.mxu0 %v257
    %2224 = vmatpush1.msra.mxu0 %v256
    %2225 = vmatprep.subr.mxu0 %v261
    %2226 = vmatpush1.msra.mxu0 %v260
    %2227 = vmatprep.subr.mxu0 %v265
    %2228 = vmatpush1.msra.mxu0 %v264
    %2229 = vmatprep.subr.mxu0 %v269
    %2230 = vmatpush1.msra.mxu0 %v268
    %2231 = vmatprep.subr.mxu0 %v273
    %2232 = vmatpush1.msra.mxu0 %v272
    %2233 = vmatprep.subr.mxu0 %v277
    %2234 = vmatpush1.msra.mxu0 %v276
    %2235 = vmatprep.subr.mxu0 %v281
    %2236 = vmatpush1.msra.mxu0 %v280
    %2237 = vmatprep.subr.mxu0 %v285
    %2238 = vmatpush1.msra.mxu0 %v284
    %2239 = vmatprep.subr.mxu0 %v289
    %2240 = vmatpush1.msra.mxu0 %v288
    %2241 = vmatprep.subr.mxu0 %v293
    %2242 = vmatpush1.msra.mxu0 %v292
    %2243 = vmatprep.subr.mxu0 %v297
    %2244 = vmatpush1.msra.mxu0 %v296
    %2245 = vmatprep.subr.mxu0 %v301
    %2246 = vmatpush1.msra.mxu0 %v300
    %2247 = vmatprep.subr.mxu0 %v305
    %2248 = vmatpush1.msra.mxu0 %v304
    %2249 = vmatprep.subr.mxu0 %v309
    %2250 = vmatpush1.msra.mxu0 %v308
    %2251 = vmatprep.subr.mxu0 %v313
    %2252 = vmatpush1.msra.mxu0 %v312
    %2253 = vmatprep.subr.mxu0 %v317
    %2254 = vmatpush1.msra.mxu0 %v316
    %2255 = vmatprep.subr.mxu0 %v321
    %2256 = vmatpush1.msra.mxu0 %v320
    %2257 = vmatprep.subr.mxu0 %v325
    %2258 = vmatpush1.msra.mxu0 %v324
    %2259 = vmatprep.subr.mxu0 %v329
    %2260 = vmatpush1.msra.mxu0 %v328
    %2261 = vmatprep.subr.mxu0 %v333
    %2262 = vmatpush1.msra.mxu0 %v332
    %2263 = vmatprep.subr.mxu0 %v337
    %2264 = vmatpush1.msra.mxu0 %v336
    %2265 = vmatprep.subr.mxu0 %v341
    %2266 = vmatpush1.msra.mxu0 %v340
    %2267 = vmatprep.subr.mxu0 %v345
    %2268 = vmatpush1.msra.mxu0 %v344
    %2269 = vmatprep.subr.mxu0 %v349
    %2270 = vmatpush1.msra.mxu0 %v348
    %2271 = vmatprep.subr.mxu0 %v353
    %2272 = vmatpush1.msra.mxu0 %v352
    %2273 = vmatprep.subr.mxu0 %v357
    %2274 = vmatpush1.msra.mxu0 %v356
    %2275 = vmatprep.subr.mxu0 %v361
    %2276 = vmatpush1.msra.mxu0 %v360
    %2277 = vmatprep.subr.mxu0 %v365
    %2278 = vmatpush1.msra.mxu0 %v364
    %2279 = vmatprep.subr.mxu0 %v369
    %2280 = vmatpush1.msra.mxu0 %v368
    %2281 = vmatprep.mubr.f32.mxu0 %v1640
    %2282 = vmatmul.mubr.f32.gmra.mrb[0].mxu0 %v2145
    %v2283 = vpop.f32.mrb[0].mxu0
    %v2284 = vadd.f32 %v409, %v2283
    %v2285 = vpop.f32.mrb[0].mxu0
    %v2286 = vadd.f32 %v413, %v2285
    %2287 = vdwg.mxu0
    %v2288 = vmul.f32 %v435, %v2213
    %v2289 = vmul.f32 %v436, %v2215
    %v2290 = vmul.f32 %v437, %v2284
    %v2291 = vmul.f32 %v438, %v2286
    %v2292 = vtanh.pop %v2288
    %v2293 = vtanh.pop %v2289
    %v2294 = vtanh.pop %v2290
    %v2295 = vtanh.pop %v2291
    %v2296 = vmul.f32 %v435, %v2292
    %v2297 = vmul.f32 %v436, %v2293
    %v2298 = vmul.f32 %v437, %v2294
    %v2299 = vmul.f32 %v438, %v2295
    %v2300 = vadd.f32 %v2296, %v439
    %v2301 = vadd.f32 %v2297, %v440
    %v2302 = vadd.f32 %v2298, %v441
    %v2303 = vadd.f32 %v2299, %v442
    %v2304 = vmul.f32 %v2301, %v1638
    %v2305 = vmul.f32 %v2300, %v2302
    %v2306 = vadd.f32 %v2304, %v2305
    %v2307 = vtanh.pop %v2306
    %v2308 = vmul.f32 %v2303, %v2307
    %v2309 = vld [vmem:[%s2 + $0x20] sm:$0xff]
    %v2310 = vld [vmem:[%s2 + $0x28] sm:$0xff]
    %v2312 = vsel %vm466, %v2308, 0
    %2314 = vmatprep.subr.mxu0 0.0
    %2315 = vmatpush1.msra.mxu0 %v2309
    %2316 = vmatprep.subr.mxu0 0.0
    %2317 = vmatpush1.msra.mxu0 %v2310
    %2318 = vmatprep.subr.mxu0 0.0
    %2319 = vmatpush1.msra.mxu0 0.0
    %2320 = vmatprep.subr.mxu0 0.0
    %2321 = vmatpush1.msra.mxu0 0.0
    %2322 = vmatprep.subr.mxu0 0.0
    %2323 = vmatpush1.msra.mxu0 0.0
    %2324 = vmatprep.subr.mxu0 0.0
    %2325 = vmatpush1.msra.mxu0 0.0
    %2326 = vmatprep.subr.mxu0 0.0
    %2327 = vmatpush1.msra.mxu0 0.0
    %2328 = vmatprep.subr.mxu0 0.0
    %2329 = vmatpush1.msra.mxu0 0.0
    %2330 = vmatprep.subr.mxu0 0.0
    %2331 = vmatpush1.msra.mxu0 0.0
    %2332 = vmatprep.subr.mxu0 0.0
    %2333 = vmatpush1.msra.mxu0 0.0
    %2334 = vmatprep.subr.mxu0 0.0
    %2335 = vmatpush1.msra.mxu0 0.0
    %2336 = vmatprep.subr.mxu0 0.0
    %2337 = vmatpush1.msra.mxu0 0.0
    %2338 = vmatprep.subr.mxu0 0.0
    %2339 = vmatpush1.msra.mxu0 0.0
    %2340 = vmatprep.subr.mxu0 0.0
    %2341 = vmatpush1.msra.mxu0 0.0
    %2342 = vmatprep.subr.mxu0 0.0
    %2343 = vmatpush1.msra.mxu0 0.0
    %2344 = vmatprep.subr.mxu0 0.0
    %2345 = vmatpush1.msra.mxu0 0.0
    %2346 = vmatprep.subr.mxu0 0.0
    %2347 = vmatpush1.msra.mxu0 0.0
    %2348 = vmatprep.subr.mxu0 0.0
    %2349 = vmatpush1.msra.mxu0 0.0
    %2350 = vmatprep.subr.mxu0 0.0
    %2351 = vmatpush1.msra.mxu0 0.0
    %2352 = vmatprep.subr.mxu0 0.0
    %2353 = vmatpush1.msra.mxu0 0.0
    %2354 = vmatprep.subr.mxu0 0.0
    %2355 = vmatpush1.msra.mxu0 0.0
    %2356 = vmatprep.subr.mxu0 0.0
    %2357 = vmatpush1.msra.mxu0 0.0
    %2358 = vmatprep.subr.mxu0 0.0
    %2359 = vmatpush1.msra.mxu0 0.0
    %2360 = vmatprep.subr.mxu0 0.0
    %2361 = vmatpush1.msra.mxu0 0.0
    %2362 = vmatprep.subr.mxu0 0.0
    %2363 = vmatpush1.msra.mxu0 0.0
    %2364 = vmatprep.subr.mxu0 0.0
    %2365 = vmatpush1.msra.mxu0 0.0
    %2366 = vmatprep.subr.mxu0 0.0
    %2367 = vmatpush1.msra.mxu0 0.0
    %2368 = vmatprep.subr.mxu0 0.0
    %2369 = vmatpush1.msra.mxu0 0.0
    %2370 = vmatprep.subr.mxu0 0.0
    %2371 = vmatpush1.msra.mxu0 0.0
    %2372 = vmatprep.subr.mxu0 0.0
    %2373 = vmatpush1.msra.mxu0 0.0
    %2374 = vmatprep.subr.mxu0 0.0
    %2375 = vmatpush1.msra.mxu0 0.0
    %2376 = vmatprep.subr.mxu0 0.0
    %2377 = vmatpush1.msra.mxu0 0.0
    %2378 = vmatprep.mubr.f32.mxu0 0.0
    %2379 = vmatmul.mubr.f32.gmra.mrb[0].mxu0 %v2312
    %v2380 = vpop.f32.mrb[0].mxu0
    %v2381 = vadd.f32 0.0, %v2380
    %v2382 = vpop.f32.mrb[0].mxu0
    %2383 = vdwg.mxu0
    %v2384 = vadd.f32 %v1786, %v2381
    %v2386 = vrot.slane %v1973, 4
    %2388 = vmatprep.subr.mxu0 %v51
    %2389 = vmatpush1.msra.mxu0 %v50
    %2390 = vmatprep.subr.mxu0 %v55
    %2391 = vmatpush1.msra.mxu0 %v54
    %2392 = vmatprep.subr.mxu0 %v59
    %2393 = vmatpush1.msra.mxu0 %v58
    %2394 = vmatprep.subr.mxu0 %v63
    %2395 = vmatpush1.msra.mxu0 %v62
    %2396 = vmatprep.subr.mxu0 %v67
    %2397 = vmatpush1.msra.mxu0 %v66
    %2398 = vmatprep.subr.mxu0 %v71
    %2399 = vmatpush1.msra.mxu0 %v70
    %2400 = vmatprep.subr.mxu0 %v75
    %2401 = vmatpush1.msra.mxu0 %v74
    %2402 = vmatprep.subr.mxu0 %v79
    %2403 = vmatpush1.msra.mxu0 %v78
    %2404 = vmatprep.subr.mxu0 %v83
    %2405 = vmatpush1.msra.mxu0 %v82
    %2406 = vmatprep.subr.mxu0 %v87
    %2407 = vmatpush1.msra.mxu0 %v86
    %2408 = vmatprep.subr.mxu0 %v91
    %2409 = vmatpush1.msra.mxu0 %v90
    %2410 = vmatprep.subr.mxu0 %v95
    %2411 = vmatpush1.msra.mxu0 %v94
    %2412 = vmatprep.subr.mxu0 %v99
    %2413 = vmatpush1.msra.mxu0 %v98
    %2414 = vmatprep.subr.mxu0 %v103
    %2415 = vmatpush1.msra.mxu0 %v102
    %2416 = vmatprep.subr.mxu0 %v107
    %2417 = vmatpush1.msra.mxu0 %v106
    %2418 = vmatprep.subr.mxu0 %v111
    %2419 = vmatpush1.msra.mxu0 %v110
    %2420 = vmatprep.subr.mxu0 0.0
    %2421 = vmatpush1.msra.mxu0 0.0
    %2422 = vmatprep.subr.mxu0 0.0
    %2423 = vmatpush1.msra.mxu0 0.0
    %2424 = vmatprep.subr.mxu0 0.0
    %2425 = vmatpush1.msra.mxu0 0.0
    %2426 = vmatprep.subr.mxu0 0.0
    %2427 = vmatpush1.msra.mxu0 0.0
    %2428 = vmatprep.subr.mxu0 0.0
    %2429 = vmatpush1.msra.mxu0 0.0
    %2430 = vmatprep.subr.mxu0 0.0
    %2431 = vmatpush1.msra.mxu0 0.0
    %2432 = vmatprep.subr.mxu0 0.0
    %2433 = vmatpush1.msra.mxu0 0.0
    %2434 = vmatprep.subr.mxu0 0.0
    %2435 = vmatpush1.msra.mxu0 0.0
    %2436 = vmatprep.subr.mxu0 0.0
    %2437 = vmatpush1.msra.mxu0 0.0
    %2438 = vmatprep.subr.mxu0 0.0
    %2439 = vmatpush1.msra.mxu0 0.0
    %2440 = vmatprep.subr.mxu0 0.0
    %2441 = vmatpush1.msra.mxu0 0.0
    %2442 = vmatprep.subr.mxu0 0.0
    %2443 = vmatpush1.msra.mxu0 0.0
    %2444 = vmatprep.subr.mxu0 0.0
    %2445 = vmatpush1.msra.mxu0 0.0
    %2446 = vmatprep.subr.mxu0 0.0
    %2447 = vmatpush1.msra.mxu0 0.0
    %2448 = vmatprep.subr.mxu0 0.0
    %2449 = vmatpush1.msra.mxu0 0.0
    %2450 = vmatprep.subr.mxu0 0.0
    %2451 = vmatpush1.msra.mxu0 0.0
    %2452 = vmatprep.mubr.f32.mxu0 0.0
    %2453 = vmatmul.mubr.f32.gmra.mrb[0].mxu0 %v2386
    %v2454 = vpop.f32.mrb[0].mxu0
    %v2455 = vadd.f32 0.0, %v2454
    %v2456 = vpop.f32.mrb[0].mxu0
    %v2457 = vadd.f32 0.0, %v2456
    %2458 = vdwg.mxu0
    %2459 = vmatprep.subr.mxu0 %v53
    %2460 = vmatpush1.msra.mxu0 %v52
    %2461 = vmatprep.subr.mxu0 %v57
    %2462 = vmatpush1.msra.mxu0 %v56
    %2463 = vmatprep.subr.mxu0 %v61
    %2464 = vmatpush1.msra.mxu0 %v60
    %2465 = vmatprep.subr.mxu0 %v65
    %2466 = vmatpush1.msra.mxu0 %v64
    %2467 = vmatprep.subr.mxu0 %v69
    %2468 = vmatpush1.msra.mxu0 %v68
    %2469 = vmatprep.subr.mxu0 %v73
    %2470 = vmatpush1.msra.mxu0 %v72
    %2471 = vmatprep.subr.mxu0 %v77
    %2472 = vmatpush1.msra.mxu0 %v76
    %2473 = vmatprep.subr.mxu0 %v81
    %2474 = vmatpush1.msra.mxu0 %v80
    %2475 = vmatprep.subr.mxu0 %v85
    %2476 = vmatpush1.msra.mxu0 %v84
    %2477 = vmatprep.subr.mxu0 %v89
    %2478 = vmatpush1.msra.mxu0 %v88
    %2479 = vmatprep.subr.mxu0 %v93
    %2480 = vmatpush1.msra.mxu0 %v92
    %2481 = vmatprep.subr.mxu0 %v97
    %2482 = vmatpush1.msra.mxu0 %v96
    %2483 = vmatprep.subr.mxu0 %v101
    %2484 = vmatpush1.msra.mxu0 %v100
    %2485 = vmatprep.subr.mxu0 %v105
    %2486 = vmatpush1.msra.mxu0 %v104
    %2487 = vmatprep.subr.mxu0 %v109
    %2488 = vmatpush1.msra.mxu0 %v108
    %2489 = vmatprep.subr.mxu0 %v113
    %2490 = vmatpush1.msra.mxu0 %v112
    %2491 = vmatprep.subr.mxu0 0.0
    %2492 = vmatpush1.msra.mxu0 0.0
    %2493 = vmatprep.subr.mxu0 0.0
    %2494 = vmatpush1.msra.mxu0 0.0
    %2495 = vmatprep.subr.mxu0 0.0
    %2496 = vmatpush1.msra.mxu0 0.0
    %2497 = vmatprep.subr.mxu0 0.0
    %2498 = vmatpush1.msra.mxu0 0.0
    %2499 = vmatprep.subr.mxu0 0.0
    %2500 = vmatpush1.msra.mxu0 0.0
    %2501 = vmatprep.subr.mxu0 0.0
    %2502 = vmatpush1.msra.mxu0 0.0
    %2503 = vmatprep.subr.mxu0 0.0
    %2504 = vmatpush1.msra.mxu0 0.0
    %2505 = vmatprep.subr.mxu0 0.0
    %2506 = vmatpush1.msra.mxu0 0.0
    %2507 = vmatprep.subr.mxu0 0.0
    %2508 = vmatpush1.msra.mxu0 0.0
    %2509 = vmatprep.subr.mxu0 0.0
    %2510 = vmatpush1.msra.mxu0 0.0
    %2511 = vmatprep.subr.mxu0 0.0
    %2512 = vmatpush1.msra.mxu0 0.0
    %2513 = vmatprep.subr.mxu0 0.0
    %2514 = vmatpush1.msra.mxu0 0.0
    %2515 = vmatprep.subr.mxu0 0.0
    %2516 = vmatpush1.msra.mxu0 0.0
    %2517 = vmatprep.subr.mxu0 0.0
    %2518 = vmatpush1.msra.mxu0 0.0
    %2519 = vmatprep.subr.mxu0 0.0
    %2520 = vmatpush1.msra.mxu0 0.0
    %2521 = vmatprep.subr.mxu0 0.0
    %2522 = vmatpush1.msra.mxu0 0.0
    %2523 = vmatprep.mubr.f32.mxu0 0.0
    %2524 = vmatmul.mubr.f32.gmra.mrb[0].mxu0 %v2386
    %v2525 = vpop.f32.mrb[0].mxu0
    %v2526 = vadd.f32 0.0, %v2525
    %v2527 = vpop.f32.mrb[0].mxu0
    %v2528 = vadd.f32 0.0, %v2527
    %2529 = vdwg.mxu0
    %v2534 = vrot.slane %v2455, 2
    %v2535 = vrot.slane %v2457, 2
    %v2536 = vrot.slane %v2526, 2
    %v2537 = vrot.slane %v2528, 2
    %v2542 = vadd.f32 %v540, %v2534
    %v2543 = vadd.f32 %v542, %v2535
    %v2544 = vadd.f32 %v617, %v2536
    %v2545 = vadd.f32 %v619, %v2537
    %v2546 = vmul.f32 %v435, %v2542
    %v2547 = vmul.f32 %v436, %v2543
    %v2548 = vmul.f32 %v437, %v2544
    %v2549 = vmul.f32 %v438, %v2545
    %v2550 = vtanh.pop %v2546
    %v2551 = vtanh.pop %v2547
    %v2552 = vtanh.pop %v2548
    %v2553 = vtanh.pop %v2549
    %v2554 = vmul.f32 %v435, %v2550
    %v2555 = vmul.f32 %v436, %v2551
    %v2556 = vmul.f32 %v437, %v2552
    %v2557 = vmul.f32 %v438, %v2553
    %v2558 = vadd.f32 %v2554, %v439
    %v2559 = vadd.f32 %v2555, %v440
    %v2560 = vadd.f32 %v2556, %v441
    %v2561 = vadd.f32 %v2557, %v442
    %v2563 = vrot.slane %v1971, 6
    %v2565 = vmul.f32 %v2559, %v2563
    %v2566 = vmul.f32 %v2558, %v2560
    %v2567 = vadd.f32 %v2565, %v2566
    %v2568 = vtanh.pop %v2567
    %v2569 = vmul.f32 %v2561, %v2568
    %v2570 = vtanh.pop %v2569
    %v2572 = vrot.slane %v2144, 2
    %v2574 = vrot.slane %v2570, 6
    %v2575 = vrot.slane %v2572, 6
    %2578 = vmatprep.subr.mxu0 %v115
    %2579 = vmatpush1.msra.mxu0 %v114
    %2580 = vmatprep.subr.mxu0 %v119
    %2581 = vmatpush1.msra.mxu0 %v118
    %2582 = vmatprep.subr.mxu0 %v123
    %2583 = vmatpush1.msra.mxu0 %v122
    %2584 = vmatprep.subr.mxu0 %v127
    %2585 = vmatpush1.msra.mxu0 %v126
    %2586 = vmatprep.subr.mxu0 %v131
    %2587 = vmatpush1.msra.mxu0 %v130
    %2588 = vmatprep.subr.mxu0 %v135
    %2589 = vmatpush1.msra.mxu0 %v134
    %2590 = vmatprep.subr.mxu0 %v139
    %2591 = vmatpush1.msra.mxu0 %v138
    %2592 = vmatprep.subr.mxu0 %v143
    %2593 = vmatpush1.msra.mxu0 %v142
    %2594 = vmatprep.subr.mxu0 %v147
    %2595 = vmatpush1.msra.mxu0 %v146
    %2596 = vmatprep.subr.mxu0 %v151
    %2597 = vmatpush1.msra.mxu0 %v150
    %2598 = vmatprep.subr.mxu0 %v155
    %2599 = vmatpush1.msra.mxu0 %v154
    %2600 = vmatprep.subr.mxu0 %v159
    %2601 = vmatpush1.msra.mxu0 %v158
    %2602 = vmatprep.subr.mxu0 %v163
    %2603 = vmatpush1.msra.mxu0 %v162
    %2604 = vmatprep.subr.mxu0 %v167
    %2605 = vmatpush1.msra.mxu0 %v166
    %2606 = vmatprep.subr.mxu0 %v171
    %2607 = vmatpush1.msra.mxu0 %v170
    %2608 = vmatprep.subr.mxu0 %v175
    %2609 = vmatpush1.msra.mxu0 %v174
    %2610 = vmatprep.subr.mxu0 %v179
    %2611 = vmatpush1.msra.mxu0 %v178
    %2612 = vmatprep.subr.mxu0 %v183
    %2613 = vmatpush1.msra.mxu0 %v182
    %2614 = vmatprep.subr.mxu0 %v187
    %2615 = vmatpush1.msra.mxu0 %v186
    %2616 = vmatprep.subr.mxu0 %v191
    %2617 = vmatpush1.msra.mxu0 %v190
    %2618 = vmatprep.subr.mxu0 %v195
    %2619 = vmatpush1.msra.mxu0 %v194
    %2620 = vmatprep.subr.mxu0 %v199
    %2621 = vmatpush1.msra.mxu0 %v198
    %2622 = vmatprep.subr.mxu0 %v203
    %2623 = vmatpush1.msra.mxu0 %v202
    %2624 = vmatprep.subr.mxu0 %v207
    %2625 = vmatpush1.msra.mxu0 %v206
    %2626 = vmatprep.subr.mxu0 %v211
    %2627 = vmatpush1.msra.mxu0 %v210
    %2628 = vmatprep.subr.mxu0 %v215
    %2629 = vmatpush1.msra.mxu0 %v214
    %2630 = vmatprep.subr.mxu0 %v219
    %2631 = vmatpush1.msra.mxu0 %v218
    %2632 = vmatprep.subr.mxu0 %v223
    %2633 = vmatpush1.msra.mxu0 %v222
    %2634 = vmatprep.subr.mxu0 %v227
    %2635 = vmatpush1.msra.mxu0 %v226
    %2636 = vmatprep.subr.mxu0 %v231
    %2637 = vmatpush1.msra.mxu0 %v230
    %2638 = vmatprep.subr.mxu0 %v235
    %2639 = vmatpush1.msra.mxu0 %v234
    %2640 = vmatprep.subr.mxu0 %v239
    %2641 = vmatpush1.msra.mxu0 %v238
    %2642 = vmatprep.mubr.f32.mxu0 %v2575
    %2643 = vmatmul.mubr.f32.gmra.mrb[0].mxu0 %v2574
    %v2644 = vpop.f32.mrb[0].mxu0
    %v2645 = vadd.f32 %v378, %v2644
    %v2646 = vpop.f32.mrb[0].mxu0
    %v2647 = vadd.f32 %v382, %v2646
    %2648 = vdwg.mxu0
    %2649 = vmatprep.subr.mxu0 %v117
    %2650 = vmatpush1.msra.mxu0 %v116
    %2651 = vmatprep.subr.mxu0 %v121
    %2652 = vmatpush1.msra.mxu0 %v120
    %2653 = vmatprep.subr.mxu0 %v125
    %2654 = vmatpush1.msra.mxu0 %v124
    %2655 = vmatprep.subr.mxu0 %v129
    %2656 = vmatpush1.msra.mxu0 %v128
    %2657 = vmatprep.subr.mxu0 %v133
    %2658 = vmatpush1.msra.mxu0 %v132
    %2659 = vmatprep.subr.mxu0 %v137
    %2660 = vmatpush1.msra.mxu0 %v136
    %2661 = vmatprep.subr.mxu0 %v141
    %2662 = vmatpush1.msra.mxu0 %v140
    %2663 = vmatprep.subr.mxu0 %v145
    %2664 = vmatpush1.msra.mxu0 %v144
    %2665 = vmatprep.subr.mxu0 %v149
    %2666 = vmatpush1.msra.mxu0 %v148
    %2667 = vmatprep.subr.mxu0 %v153
    %2668 = vmatpush1.msra.mxu0 %v152
    %2669 = vmatprep.subr.mxu0 %v157
    %2670 = vmatpush1.msra.mxu0 %v156
    %2671 = vmatprep.subr.mxu0 %v161
    %2672 = vmatpush1.msra.mxu0 %v160
    %2673 = vmatprep.subr.mxu0 %v165
    %2674 = vmatpush1.msra.mxu0 %v164
    %2675 = vmatprep.subr.mxu0 %v169
    %2676 = vmatpush1.msra.mxu0 %v168
    %2677 = vmatprep.subr.mxu0 %v173
    %2678 = vmatpush1.msra.mxu0 %v172
    %2679 = vmatprep.subr.mxu0 %v177
    %2680 = vmatpush1.msra.mxu0 %v176
    %2681 = vmatprep.subr.mxu0 %v181
    %2682 = vmatpush1.msra.mxu0 %v180
    %2683 = vmatprep.subr.mxu0 %v185
    %2684 = vmatpush1.msra.mxu0 %v184
    %2685 = vmatprep.subr.mxu0 %v189
    %2686 = vmatpush1.msra.mxu0 %v188
    %2687 = vmatprep.subr.mxu0 %v193
    %2688 = vmatpush1.msra.mxu0 %v192
    %2689 = vmatprep.subr.mxu0 %v197
    %2690 = vmatpush1.msra.mxu0 %v196
    %2691 = vmatprep.subr.mxu0 %v201
    %2692 = vmatpush1.msra.mxu0 %v200
    %2693 = vmatprep.subr.mxu0 %v205
    %2694 = vmatpush1.msra.mxu0 %v204
    %2695 = vmatprep.subr.mxu0 %v209
    %2696 = vmatpush1.msra.mxu0 %v208
    %2697 = vmatprep.subr.mxu0 %v213
    %2698 = vmatpush1.msra.mxu0 %v212
    %2699 = vmatprep.subr.mxu0 %v217
    %2700 = vmatpush1.msra.mxu0 %v216
    %2701 = vmatprep.subr.mxu0 %v221
    %2702 = vmatpush1.msra.mxu0 %v220
    %2703 = vmatprep.subr.mxu0 %v225
    %2704 = vmatpush1.msra.mxu0 %v224
    %2705 = vmatprep.subr.mxu0 %v229
    %2706 = vmatpush1.msra.mxu0 %v228
    %2707 = vmatprep.subr.mxu0 %v233
    %2708 = vmatpush1.msra.mxu0 %v232
    %2709 = vmatprep.subr.mxu0 %v237
    %2710 = vmatpush1.msra.mxu0 %v236
    %2711 = vmatprep.subr.mxu0 %v241
    %2712 = vmatpush1.msra.mxu0 %v240
    %2713 = vmatprep.mubr.f32.mxu0 %v2575
    %2714 = vmatmul.mubr.f32.gmra.mrb[0].mxu0 %v2574
    %v2715 = vpop.f32.mrb[0].mxu0
    %v2716 = vadd.f32 %v386, %v2715
    %v2717 = vpop.f32.mrb[0].mxu0
    %v2718 = vadd.f32 %v390, %v2717
    %2719 = vdwg.mxu0
    %v2720 = vmul.f32 %v435, %v2645
    %v2721 = vmul.f32 %v436, %v2647
    %v2722 = vmul.f32 %v437, %v2716
    %v2723 = vmul.f32 %v438, %v2718
    %v2724 = vtanh.pop %v2720
    %v2725 = vtanh.pop %v2721
    %v2726 = vtanh.pop %v2722
    %v2727 = vtanh.pop %v2723
    %v2728 = vmul.f32 %v435, %v2724
    %v2729 = vmul.f32 %v436, %v2725
    %v2730 = vmul.f32 %v437, %v2726
    %v2731 = vmul.f32 %v438, %v2727
    %v2732 = vadd.f32 %v2728, %v439
    %v2733 = vadd.f32 %v2729, %v440
    %v2734 = vadd.f32 %v2730, %v441
    %v2735 = vadd.f32 %v2731, %v442
    %v2736 = vmul.f32 %v2733, %v2142
    %v2737 = vmul.f32 %v2732, %v2734
    %v2738 = vadd.f32 %v2736, %v2737
    %v2739 = vtanh.pop %v2738
    %v2740 = vmul.f32 %v2735, %v2739
    %v2741 = vtanh.pop %v2740
    %2742 = vmatprep.subr.mxu0 %v243
    %2743 = vmatpush1.msra.mxu0 %v242
    %2744 = vmatprep.subr.mxu0 %v247
    %2745 = vmatpush1.msra.mxu0 %v246
    %2746 = vmatprep.subr.mxu0 %v251
    %2747 = vmatpush1.msra.mxu0 %v250
    %2748 = vmatprep.subr.mxu0 %v255
    %2749 = vmatpush1.msra.mxu0 %v254
    %2750 = vmatprep.subr.mxu0 %v259
    %2751 = vmatpush1.msra.mxu0 %v258
    %2752 = vmatprep.subr.mxu0 %v263
    %2753 = vmatpush1.msra.mxu0 %v262
    %2754 = vmatprep.subr.mxu0 %v267
    %2755 = vmatpush1.msra.mxu0 %v266
    %2756 = vmatprep.subr.mxu0 %v271
    %2757 = vmatpush1.msra.mxu0 %v270
    %2758 = vmatprep.subr.mxu0 %v275
    %2759 = vmatpush1.msra.mxu0 %v274
    %2760 = vmatprep.subr.mxu0 %v279
    %2761 = vmatpush1.msra.mxu0 %v278
    %2762 = vmatprep.subr.mxu0 %v283
    %2763 = vmatpush1.msra.mxu0 %v282
    %2764 = vmatprep.subr.mxu0 %v287
    %2765 = vmatpush1.msra.mxu0 %v286
    %2766 = vmatprep.subr.mxu0 %v291
    %2767 = vmatpush1.msra.mxu0 %v290
    %2768 = vmatprep.subr.mxu0 %v295
    %2769 = vmatpush1.msra.mxu0 %v294
    %2770 = vmatprep.subr.mxu0 %v299
    %2771 = vmatpush1.msra.mxu0 %v298
    %2772 = vmatprep.subr.mxu0 %v303
    %2773 = vmatpush1.msra.mxu0 %v302
    %2774 = vmatprep.subr.mxu0 %v307
    %2775 = vmatpush1.msra.mxu0 %v306
    %2776 = vmatprep.subr.mxu0 %v311
    %2777 = vmatpush1.msra.mxu0 %v310
    %2778 = vmatprep.subr.mxu0 %v315
    %2779 = vmatpush1.msra.mxu0 %v314
    %2780 = vmatprep.subr.mxu0 %v319
    %2781 = vmatpush1.msra.mxu0 %v318
    %2782 = vmatprep.subr.mxu0 %v323
    %2783 = vmatpush1.msra.mxu0 %v322
    %2784 = vmatprep.subr.mxu0 %v327
    %2785 = vmatpush1.msra.mxu0 %v326
    %2786 = vmatprep.subr.mxu0 %v331
    %2787 = vmatpush1.msra.mxu0 %v330
    %2788 = vmatprep.subr.mxu0 %v335
    %2789 = vmatpush1.msra.mxu0 %v334
    %2790 = vmatprep.subr.mxu0 %v339
    %2791 = vmatpush1.msra.mxu0 %v338
    %2792 = vmatprep.subr.mxu0 %v343
    %2793 = vmatpush1.msra.mxu0 %v342
    %2794 = vmatprep.subr.mxu0 %v347
    %2795 = vmatpush1.msra.mxu0 %v346
    %2796 = vmatprep.subr.mxu0 %v351
    %2797 = vmatpush1.msra.mxu0 %v350
    %2798 = vmatprep.subr.mxu0 %v355
    %2799 = vmatpush1.msra.mxu0 %v354
    %2800 = vmatprep.subr.mxu0 %v359
    %2801 = vmatpush1.msra.mxu0 %v358
    %2802 = vmatprep.subr.mxu0 %v363
    %2803 = vmatpush1.msra.mxu0 %v362
    %2804 = vmatprep.subr.mxu0 %v367
    %2805 = vmatpush1.msra.mxu0 %v366
    %2806 = vmatprep.mubr.f32.mxu0 %v2308
    %2807 = vmatmul.mubr.f32.gmra.mrb[0].mxu0 %v2741
    %v2808 = vpop.f32.mrb[0].mxu0
    %v2809 = vadd.f32 %v401, %v2808
    %v2810 = vpop.f32.mrb[0].mxu0
    %v2811 = vadd.f32 %v405, %v2810
    %2812 = vdwg.mxu0
    %2813 = vmatprep.subr.mxu0 %v245
    %2814 = vmatpush1.msra.mxu0 %v244
    %2815 = vmatprep.subr.mxu0 %v249
    %2816 = vmatpush1.msra.mxu0 %v248
    %2817 = vmatprep.subr.mxu0 %v253
    %2818 = vmatpush1.msra.mxu0 %v252
    %2819 = vmatprep.subr.mxu0 %v257
    %2820 = vmatpush1.msra.mxu0 %v256
    %2821 = vmatprep.subr.mxu0 %v261
    %2822 = vmatpush1.msra.mxu0 %v260
    %2823 = vmatprep.subr.mxu0 %v265
    %2824 = vmatpush1.msra.mxu0 %v264
    %2825 = vmatprep.subr.mxu0 %v269
    %2826 = vmatpush1.msra.mxu0 %v268
    %2827 = vmatprep.subr.mxu0 %v273
    %2828 = vmatpush1.msra.mxu0 %v272
    %2829 = vmatprep.subr.mxu0 %v277
    %2830 = vmatpush1.msra.mxu0 %v276
    %2831 = vmatprep.subr.mxu0 %v281
    %2832 = vmatpush1.msra.mxu0 %v280
    %2833 = vmatprep.subr.mxu0 %v285
    %2834 = vmatpush1.msra.mxu0 %v284
    %2835 = vmatprep.subr.mxu0 %v289
    %2836 = vmatpush1.msra.mxu0 %v288
    %2837 = vmatprep.subr.mxu0 %v293
    %2838 = vmatpush1.msra.mxu0 %v292
    %2839 = vmatprep.subr.mxu0 %v297
    %2840 = vmatpush1.msra.mxu0 %v296
    %2841 = vmatprep.subr.mxu0 %v301
    %2842 = vmatpush1.msra.mxu0 %v300
    %2843 = vmatprep.subr.mxu0 %v305
    %2844 = vmatpush1.msra.mxu0 %v304
    %2845 = vmatprep.subr.mxu0 %v309
    %2846 = vmatpush1.msra.mxu0 %v308
    %2847 = vmatprep.subr.mxu0 %v313
    %2848 = vmatpush1.msra.mxu0 %v312
    %2849 = vmatprep.subr.mxu0 %v317
    %2850 = vmatpush1.msra.mxu0 %v316
    %2851 = vmatprep.subr.mxu0 %v321
    %2852 = vmatpush1.msra.mxu0 %v320
    %2853 = vmatprep.subr.mxu0 %v325
    %2854 = vmatpush1.msra.mxu0 %v324
    %2855 = vmatprep.subr.mxu0 %v329
    %2856 = vmatpush1.msra.mxu0 %v328
    %2857 = vmatprep.subr.mxu0 %v333
    %2858 = vmatpush1.msra.mxu0 %v332
    %2859 = vmatprep.subr.mxu0 %v337
    %2860 = vmatpush1.msra.mxu0 %v336
    %2861 = vmatprep.subr.mxu0 %v341
    %2862 = vmatpush1.msra.mxu0 %v340
    %2863 = vmatprep.subr.mxu0 %v345
    %2864 = vmatpush1.msra.mxu0 %v344
    %2865 = vmatprep.subr.mxu0 %v349
    %2866 = vmatpush1.msra.mxu0 %v348
    %2867 = vmatprep.subr.mxu0 %v353
    %2868 = vmatpush1.msra.mxu0 %v352
    %2869 = vmatprep.subr.mxu0 %v357
    %2870 = vmatpush1.msra.mxu0 %v356
    %2871 = vmatprep.subr.mxu0 %v361
    %2872 = vmatpush1.msra.mxu0 %v360
    %2873 = vmatprep.subr.mxu0 %v365
    %2874 = vmatpush1.msra.mxu0 %v364
    %2875 = vmatprep.subr.mxu0 %v369
    %2876 = vmatpush1.msra.mxu0 %v368
    %2877 = vmatprep.mubr.f32.mxu0 %v2308
    %2878 = vmatmul.mubr.f32.gmra.mrb[0].mxu0 %v2741
    %v2879 = vpop.f32.mrb[0].mxu0
    %v2880 = vadd.f32 %v409, %v2879
    %v2881 = vpop.f32.mrb[0].mxu0
    %v2882 = vadd.f32 %v413, %v2881
    %2883 = vdwg.mxu0
    %v2884 = vmul.f32 %v435, %v2809
    %v2885 = vmul.f32 %v436, %v2811
    %v2886 = vmul.f32 %v437, %v2880
    %v2887 = vmul.f32 %v438, %v2882
    %v2888 = vtanh.pop %v2884
    %v2889 = vtanh.pop %v2885
    %v2890 = vtanh.pop %v2886
    %v2891 = vtanh.pop %v2887
    %v2892 = vmul.f32 %v435, %v2888
    %v2893 = vmul.f32 %v436, %v2889
    %v2894 = vmul.f32 %v437, %v2890
    %v2895 = vmul.f32 %v438, %v2891
    %v2896 = vadd.f32 %v2892, %v439
    %v2897 = vadd.f32 %v2893, %v440
    %v2898 = vadd.f32 %v2894, %v441
    %v2899 = vadd.f32 %v2895, %v442
    %v2900 = vmul.f32 %v2897, %v2306
    %v2901 = vmul.f32 %v2896, %v2898
    %v2902 = vadd.f32 %v2900, %v2901
    %v2903 = vtanh.pop %v2902
    %v2904 = vmul.f32 %v2899, %v2903
    %v2905 = vld [vmem:[%s2 + $0x30] sm:$0xff]
    %v2906 = vld [vmem:[%s2 + $0x38] sm:$0xff]
    %v2908 = vsel %vm466, %v2904, 0
    %2910 = vmatprep.subr.mxu0 0.0
    %2911 = vmatpush1.msra.mxu0 %v2905
    %2912 = vmatprep.subr.mxu0 0.0
    %2913 = vmatpush1.msra.mxu0 %v2906
    %2914 = vmatprep.subr.mxu0 0.0
    %2915 = vmatpush1.msra.mxu0 0.0
    %2916 = vmatprep.subr.mxu0 0.0
    %2917 = vmatpush1.msra.mxu0 0.0
    %2918 = vmatprep.subr.mxu0 0.0
    %2919 = vmatpush1.msra.mxu0 0.0
    %2920 = vmatprep.subr.mxu0 0.0
    %2921 = vmatpush1.msra.mxu0 0.0
    %2922 = vmatprep.subr.mxu0 0.0
    %2923 = vmatpush1.msra.mxu0 0.0
    %2924 = vmatprep.subr.mxu0 0.0
    %2925 = vmatpush1.msra.mxu0 0.0
    %2926 = vmatprep.subr.mxu0 0.0
    %2927 = vmatpush1.msra.mxu0 0.0
    %2928 = vmatprep.subr.mxu0 0.0
    %2929 = vmatpush1.msra.mxu0 0.0
    %2930 = vmatprep.subr.mxu0 0.0
    %2931 = vmatpush1.msra.mxu0 0.0
    %2932 = vmatprep.subr.mxu0 0.0
    %2933 = vmatpush1.msra.mxu0 0.0
    %2934 = vmatprep.subr.mxu0 0.0
    %2935 = vmatpush1.msra.mxu0 0.0
    %2936 = vmatprep.subr.mxu0 0.0
    %2937 = vmatpush1.msra.mxu0 0.0
    %2938 = vmatprep.subr.mxu0 0.0
    %2939 = vmatpush1.msra.mxu0 0.0
    %2940 = vmatprep.subr.mxu0 0.0
    %2941 = vmatpush1.msra.mxu0 0.0
    %2942 = vmatprep.subr.mxu0 0.0
    %2943 = vmatpush1.msra.mxu0 0.0
    %2944 = vmatprep.subr.mxu0 0.0
    %2945 = vmatpush1.msra.mxu0 0.0
    %2946 = vmatprep.subr.mxu0 0.0
    %2947 = vmatpush1.msra.mxu0 0.0
    %2948 = vmatprep.subr.mxu0 0.0
    %2949 = vmatpush1.msra.mxu0 0.0
    %2950 = vmatprep.subr.mxu0 0.0
    %2951 = vmatpush1.msra.mxu0 0.0
    %2952 = vmatprep.subr.mxu0 0.0
    %2953 = vmatpush1.msra.mxu0 0.0
    %2954 = vmatprep.subr.mxu0 0.0
    %2955 = vmatpush1.msra.mxu0 0.0
    %2956 = vmatprep.subr.mxu0 0.0
    %2957 = vmatpush1.msra.mxu0 0.0
    %2958 = vmatprep.subr.mxu0 0.0
    %2959 = vmatpush1.msra.mxu0 0.0
    %2960 = vmatprep.subr.mxu0 0.0
    %2961 = vmatpush1.msra.mxu0 0.0
    %2962 = vmatprep.subr.mxu0 0.0
    %2963 = vmatpush1.msra.mxu0 0.0
    %2964 = vmatprep.subr.mxu0 0.0
    %2965 = vmatpush1.msra.mxu0 0.0
    %2966 = vmatprep.subr.mxu0 0.0
    %2967 = vmatpush1.msra.mxu0 0.0
    %2968 = vmatprep.subr.mxu0 0.0
    %2969 = vmatpush1.msra.mxu0 0.0
    %2970 = vmatprep.subr.mxu0 0.0
    %2971 = vmatpush1.msra.mxu0 0.0
    %2972 = vmatprep.subr.mxu0 0.0
    %2973 = vmatpush1.msra.mxu0 0.0
    %2974 = vmatprep.mubr.f32.mxu0 0.0
    %2975 = vmatmul.mubr.f32.gmra.mrb[0].mxu0 %v2908
    %v2976 = vpop.f32.mrb[0].mxu0
    %v2977 = vadd.f32 0.0, %v2976
    %v2978 = vpop.f32.mrb[0].mxu0
    %2979 = vdwg.mxu0
    %v2980 = vadd.f32 %v2384, %v2977
    %v2982 = vrot.slane %v2569, 6
    %2984 = vmatprep.subr.mxu0 %v51
    %2985 = vmatpush1.msra.mxu0 %v50
    %2986 = vmatprep.subr.mxu0 %v55
    %2987 = vmatpush1.msra.mxu0 %v54
    %2988 = vmatprep.subr.mxu0 %v59
    %2989 = vmatpush1.msra.mxu0 %v58
    %2990 = vmatprep.subr.mxu0 %v63
    %2991 = vmatpush1.msra.mxu0 %v62
    %2992 = vmatprep.subr.mxu0 %v67
    %2993 = vmatpush1.msra.mxu0 %v66
    %2994 = vmatprep.subr.mxu0 %v71
    %2995 = vmatpush1.msra.mxu0 %v70
    %2996 = vmatprep.subr.mxu0 %v75
    %2997 = vmatpush1.msra.mxu0 %v74
    %2998 = vmatprep.subr.mxu0 %v79
    %2999 = vmatpush1.msra.mxu0 %v78
    %3000 = vmatprep.subr.mxu0 %v83
    %3001 = vmatpush1.msra.mxu0 %v82
    %3002 = vmatprep.subr.mxu0 %v87
    %3003 = vmatpush1.msra.mxu0 %v86
    %3004 = vmatprep.subr.mxu0 %v91
    %3005 = vmatpush1.msra.mxu0 %v90
    %3006 = vmatprep.subr.mxu0 %v95
    %3007 = vmatpush1.msra.mxu0 %v94
    %3008 = vmatprep.subr.mxu0 %v99
    %3009 = vmatpush1.msra.mxu0 %v98
    %3010 = vmatprep.subr.mxu0 %v103
    %3011 = vmatpush1.msra.mxu0 %v102
    %3012 = vmatprep.subr.mxu0 %v107
    %3013 = vmatpush1.msra.mxu0 %v106
    %3014 = vmatprep.subr.mxu0 %v111
    %3015 = vmatpush1.msra.mxu0 %v110
    %3016 = vmatprep.subr.mxu0 0.0
    %3017 = vmatpush1.msra.mxu0 0.0
    %3018 = vmatprep.subr.mxu0 0.0
    %3019 = vmatpush1.msra.mxu0 0.0
    %3020 = vmatprep.subr.mxu0 0.0
    %3021 = vmatpush1.msra.mxu0 0.0
    %3022 = vmatprep.subr.mxu0 0.0
    %3023 = vmatpush1.msra.mxu0 0.0
    %3024 = vmatprep.subr.mxu0 0.0
    %3025 = vmatpush1.msra.mxu0 0.0
    %3026 = vmatprep.subr.mxu0 0.0
    %3027 = vmatpush1.msra.mxu0 0.0
    %3028 = vmatprep.subr.mxu0 0.0
    %3029 = vmatpush1.msra.mxu0 0.0
    %3030 = vmatprep.subr.mxu0 0.0
    %3031 = vmatpush1.msra.mxu0 0.0
    %3032 = vmatprep.subr.mxu0 0.0
    %3033 = vmatpush1.msra.mxu0 0.0
    %3034 = vmatprep.subr.mxu0 0.0
    %3035 = vmatpush1.msra.mxu0 0.0
    %3036 = vmatprep.subr.mxu0 0.0
    %3037 = vmatpush1.msra.mxu0 0.0
    %3038 = vmatprep.subr.mxu0 0.0
    %3039 = vmatpush1.msra.mxu0 0.0
    %3040 = vmatprep.subr.mxu0 0.0
    %3041 = vmatpush1.msra.mxu0 0.0
    %3042 = vmatprep.subr.mxu0 0.0
    %3043 = vmatpush1.msra.mxu0 0.0
    %3044 = vmatprep.subr.mxu0 0.0
    %3045 = vmatpush1.msra.mxu0 0.0
    %3046 = vmatprep.subr.mxu0 0.0
    %3047 = vmatpush1.msra.mxu0 0.0
    %3048 = vmatprep.mubr.f32.mxu0 0.0
    %3049 = vmatmul.mubr.f32.gmra.mrb[0].mxu0 %v2982
    %v3050 = vpop.f32.mrb[0].mxu0
    %v3051 = vadd.f32 0.0, %v3050
    %v3052 = vpop.f32.mrb[0].mxu0
    %v3053 = vadd.f32 0.0, %v3052
    %3054 = vdwg.mxu0
    %3055 = vmatprep.subr.mxu0 %v53
    %3056 = vmatpush1.msra.mxu0 %v52
    %3057 = vmatprep.subr.mxu0 %v57
    %3058 = vmatpush1.msra.mxu0 %v56
    %3059 = vmatprep.subr.mxu0 %v61
    %3060 = vmatpush1.msra.mxu0 %v60
    %3061 = vmatprep.subr.mxu0 %v65
    %3062 = vmatpush1.msra.mxu0 %v64
    %3063 = vmatprep.subr.mxu0 %v69
    %3064 = vmatpush1.msra.mxu0 %v68
    %3065 = vmatprep.subr.mxu0 %v73
    %3066 = vmatpush1.msra.mxu0 %v72
    %3067 = vmatprep.subr.mxu0 %v77
    %3068 = vmatpush1.msra.mxu0 %v76
    %3069 = vmatprep.subr.mxu0 %v81
    %3070 = vmatpush1.msra.mxu0 %v80
    %3071 = vmatprep.subr.mxu0 %v85
    %3072 = vmatpush1.msra.mxu0 %v84
    %3073 = vmatprep.subr.mxu0 %v89
    %3074 = vmatpush1.msra.mxu0 %v88
    %3075 = vmatprep.subr.mxu0 %v93
    %3076 = vmatpush1.msra.mxu0 %v92
    %3077 = vmatprep.subr.mxu0 %v97
    %3078 = vmatpush1.msra.mxu0 %v96
    %3079 = vmatprep.subr.mxu0 %v101
    %3080 = vmatpush1.msra.mxu0 %v100
    %3081 = vmatprep.subr.mxu0 %v105
    %3082 = vmatpush1.msra.mxu0 %v104
    %3083 = vmatprep.subr.mxu0 %v109
    %3084 = vmatpush1.msra.mxu0 %v108
    %3085 = vmatprep.subr.mxu0 %v113
    %3086 = vmatpush1.msra.mxu0 %v112
    %3087 = vmatprep.subr.mxu0 0.0
    %3088 = vmatpush1.msra.mxu0 0.0
    %3089 = vmatprep.subr.mxu0 0.0
    %3090 = vmatpush1.msra.mxu0 0.0
    %3091 = vmatprep.subr.mxu0 0.0
    %3092 = vmatpush1.msra.mxu0 0.0
    %3093 = vmatprep.subr.mxu0 0.0
    %3094 = vmatpush1.msra.mxu0 0.0
    %3095 = vmatprep.subr.mxu0 0.0
    %3096 = vmatpush1.msra.mxu0 0.0
    %3097 = vmatprep.subr.mxu0 0.0
    %3098 = vmatpush1.msra.mxu0 0.0
    %3099 = vmatprep.subr.mxu0 0.0
    %3100 = vmatpush1.msra.mxu0 0.0
    %3101 = vmatprep.subr.mxu0 0.0
    %3102 = vmatpush1.msra.mxu0 0.0
    %3103 = vmatprep.subr.mxu0 0.0
    %3104 = vmatpush1.msra.mxu0 0.0
    %3105 = vmatprep.subr.mxu0 0.0
    %3106 = vmatpush1.msra.mxu0 0.0
    %3107 = vmatprep.subr.mxu0 0.0
    %3108 = vmatpush1.msra.mxu0 0.0
    %3109 = vmatprep.subr.mxu0 0.0
    %3110 = vmatpush1.msra.mxu0 0.0
    %3111 = vmatprep.subr.mxu0 0.0
    %3112 = vmatpush1.msra.mxu0 0.0
    %3113 = vmatprep.subr.mxu0 0.0
    %3114 = vmatpush1.msra.mxu0 0.0
    %3115 = vmatprep.subr.mxu0 0.0
    %3116 = vmatpush1.msra.mxu0 0.0
    %3117 = vmatprep.subr.mxu0 0.0
    %3118 = vmatpush1.msra.mxu0 0.0
    %3119 = vmatprep.mubr.f32.mxu0 0.0
    %3120 = vmatmul.mubr.f32.gmra.mrb[0].mxu0 %v2982
    %v3121 = vpop.f32.mrb[0].mxu0
    %v3122 = vadd.f32 0.0, %v3121
    %v3123 = vpop.f32.mrb[0].mxu0
    %v3124 = vadd.f32 0.0, %v3123
    %3125 = vdwg.mxu0
    %v3126 = vadd.f32 %v546, %v3051
    %v3127 = vadd.f32 %v548, %v3053
    %v3128 = vadd.f32 %v623, %v3122
    %v3129 = vadd.f32 %v625, %v3124
    %v3130 = vmul.f32 %v435, %v3126
    %v3131 = vmul.f32 %v436, %v3127
    %v3132 = vmul.f32 %v437, %v3128
    %v3133 = vmul.f32 %v438, %v3129
    %v3134 = vtanh.pop %v3130
    %v3135 = vtanh.pop %v3131
    %v3136 = vtanh.pop %v3132
    %v3137 = vtanh.pop %v3133
    %v3138 = vmul.f32 %v435, %v3134
    %v3139 = vmul.f32 %v436, %v3135
    %v3140 = vmul.f32 %v437, %v3136
    %v3141 = vmul.f32 %v438, %v3137
    %v3142 = vadd.f32 %v3138, %v439
    %v3143 = vadd.f32 %v3139, %v440
    %v3144 = vadd.f32 %v3140, %v441
    %v3145 = vadd.f32 %v3141, %v442
    %v3147 = vrot.slane %v2567, 6
    %v3149 = vmul.f32 %v3143, %v3147
    %v3150 = vmul.f32 %v3142, %v3144
    %v3151 = vadd.f32 %v3149, %v3150
    %v3152 = vtanh.pop %v3151
    %v3153 = vmul.f32 %v3145, %v3152
    %v3154 = vtanh.pop %v3153
    %3155 = vmatprep.subr.mxu0 %v115
    %3156 = vmatpush1.msra.mxu0 %v114
    %3157 = vmatprep.subr.mxu0 %v119
    %3158 = vmatpush1.msra.mxu0 %v118
    %3159 = vmatprep.subr.mxu0 %v123
    %3160 = vmatpush1.msra.mxu0 %v122
    %3161 = vmatprep.subr.mxu0 %v127
    %3162 = vmatpush1.msra.mxu0 %v126
    %3163 = vmatprep.subr.mxu0 %v131
    %3164 = vmatpush1.msra.mxu0 %v130
    %3165 = vmatprep.subr.mxu0 %v135
    %3166 = vmatpush1.msra.mxu0 %v134
    %3167 = vmatprep.subr.mxu0 %v139
    %3168 = vmatpush1.msra.mxu0 %v138
    %3169 = vmatprep.subr.mxu0 %v143
    %3170 = vmatpush1.msra.mxu0 %v142
    %3171 = vmatprep.subr.mxu0 %v147
    %3172 = vmatpush1.msra.mxu0 %v146
    %3173 = vmatprep.subr.mxu0 %v151
    %3174 = vmatpush1.msra.mxu0 %v150
    %3175 = vmatprep.subr.mxu0 %v155
    %3176 = vmatpush1.msra.mxu0 %v154
    %3177 = vmatprep.subr.mxu0 %v159
    %3178 = vmatpush1.msra.mxu0 %v158
    %3179 = vmatprep.subr.mxu0 %v163
    %3180 = vmatpush1.msra.mxu0 %v162
    %3181 = vmatprep.subr.mxu0 %v167
    %3182 = vmatpush1.msra.mxu0 %v166
    %3183 = vmatprep.subr.mxu0 %v171
    %3184 = vmatpush1.msra.mxu0 %v170
    %3185 = vmatprep.subr.mxu0 %v175
    %3186 = vmatpush1.msra.mxu0 %v174
    %3187 = vmatprep.subr.mxu0 %v179
    %3188 = vmatpush1.msra.mxu0 %v178
    %3189 = vmatprep.subr.mxu0 %v183
    %3190 = vmatpush1.msra.mxu0 %v182
    %3191 = vmatprep.subr.mxu0 %v187
    %3192 = vmatpush1.msra.mxu0 %v186
    %3193 = vmatprep.subr.mxu0 %v191
    %3194 = vmatpush1.msra.mxu0 %v190
    %3195 = vmatprep.subr.mxu0 %v195
    %3196 = vmatpush1.msra.mxu0 %v194
    %3197 = vmatprep.subr.mxu0 %v199
    %3198 = vmatpush1.msra.mxu0 %v198
    %3199 = vmatprep.subr.mxu0 %v203
    %3200 = vmatpush1.msra.mxu0 %v202
    %3201 = vmatprep.subr.mxu0 %v207
    %3202 = vmatpush1.msra.mxu0 %v206
    %3203 = vmatprep.subr.mxu0 %v211
    %3204 = vmatpush1.msra.mxu0 %v210
    %3205 = vmatprep.subr.mxu0 %v215
    %3206 = vmatpush1.msra.mxu0 %v214
    %3207 = vmatprep.subr.mxu0 %v219
    %3208 = vmatpush1.msra.mxu0 %v218
    %3209 = vmatprep.subr.mxu0 %v223
    %3210 = vmatpush1.msra.mxu0 %v222
    %3211 = vmatprep.subr.mxu0 %v227
    %3212 = vmatpush1.msra.mxu0 %v226
    %3213 = vmatprep.subr.mxu0 %v231
    %3214 = vmatpush1.msra.mxu0 %v230
    %3215 = vmatprep.subr.mxu0 %v235
    %3216 = vmatpush1.msra.mxu0 %v234
    %3217 = vmatprep.subr.mxu0 %v239
    %3218 = vmatpush1.msra.mxu0 %v238
    %3219 = vmatprep.mubr.f32.mxu0 %v2740
    %3220 = vmatmul.mubr.f32.gmra.mrb[0].mxu0 %v3154
    %v3221 = vpop.f32.mrb[0].mxu0
    %v3222 = vadd.f32 %v378, %v3221
    %v3223 = vpop.f32.mrb[0].mxu0
    %v3224 = vadd.f32 %v382, %v3223
    %3225 = vdwg.mxu0
    %3226 = vmatprep.subr.mxu0 %v117
    %3227 = vmatpush1.msra.mxu0 %v116
    %3228 = vmatprep.subr.mxu0 %v121
    %3229 = vmatpush1.msra.mxu0 %v120
    %3230 = vmatprep.subr.mxu0 %v125
    %3231 = vmatpush1.msra.mxu0 %v124
    %3232 = vmatprep.subr.mxu0 %v129
    %3233 = vmatpush1.msra.mxu0 %v128
    %3234 = vmatprep.subr.mxu0 %v133
    %3235 = vmatpush1.msra.mxu0 %v132
    %3236 = vmatprep.subr.mxu0 %v137
    %3237 = vmatpush1.msra.mxu0 %v136
    %3238 = vmatprep.subr.mxu0 %v141
    %3239 = vmatpush1.msra.mxu0 %v140
    %3240 = vmatprep.subr.mxu0 %v145
    %3241 = vmatpush1.msra.mxu0 %v144
    %3242 = vmatprep.subr.mxu0 %v149
    %3243 = vmatpush1.msra.mxu0 %v148
    %3244 = vmatprep.subr.mxu0 %v153
    %3245 = vmatpush1.msra.mxu0 %v152
    %3246 = vmatprep.subr.mxu0 %v157
    %3247 = vmatpush1.msra.mxu0 %v156
    %3248 = vmatprep.subr.mxu0 %v161
    %3249 = vmatpush1.msra.mxu0 %v160
    %3250 = vmatprep.subr.mxu0 %v165
    %3251 = vmatpush1.msra.mxu0 %v164
    %3252 = vmatprep.subr.mxu0 %v169
    %3253 = vmatpush1.msra.mxu0 %v168
    %3254 = vmatprep.subr.mxu0 %v173
    %3255 = vmatpush1.msra.mxu0 %v172
    %3256 = vmatprep.subr.mxu0 %v177
    %3257 = vmatpush1.msra.mxu0 %v176
    %3258 = vmatprep.subr.mxu0 %v181
    %3259 = vmatpush1.msra.mxu0 %v180
    %3260 = vmatprep.subr.mxu0 %v185
    %3261 = vmatpush1.msra.mxu0 %v184
    %3262 = vmatprep.subr.mxu0 %v189
    %3263 = vmatpush1.msra.mxu0 %v188
    %3264 = vmatprep.subr.mxu0 %v193
    %3265 = vmatpush1.msra.mxu0 %v192
    %3266 = vmatprep.subr.mxu0 %v197
    %3267 = vmatpush1.msra.mxu0 %v196
    %3268 = vmatprep.subr.mxu0 %v201
    %3269 = vmatpush1.msra.mxu0 %v200
    %3270 = vmatprep.subr.mxu0 %v205
    %3271 = vmatpush1.msra.mxu0 %v204
    %3272 = vmatprep.subr.mxu0 %v209
    %3273 = vmatpush1.msra.mxu0 %v208
    %3274 = vmatprep.subr.mxu0 %v213
    %3275 = vmatpush1.msra.mxu0 %v212
    %3276 = vmatprep.subr.mxu0 %v217
    %3277 = vmatpush1.msra.mxu0 %v216
    %3278 = vmatprep.subr.mxu0 %v221
    %3279 = vmatpush1.msra.mxu0 %v220
    %3280 = vmatprep.subr.mxu0 %v225
    %3281 = vmatpush1.msra.mxu0 %v224
    %3282 = vmatprep.subr.mxu0 %v229
    %3283 = vmatpush1.msra.mxu0 %v228
    %3284 = vmatprep.subr.mxu0 %v233
    %3285 = vmatpush1.msra.mxu0 %v232
    %3286 = vmatprep.subr.mxu0 %v237
    %3287 = vmatpush1.msra.mxu0 %v236
    %3288 = vmatprep.subr.mxu0 %v241
    %3289 = vmatpush1.msra.mxu0 %v240
    %3290 = vmatprep.mubr.f32.mxu0 %v2740
    %3291 = vmatmul.mubr.f32.gmra.mrb[0].mxu0 %v3154
    %v3292 = vpop.f32.mrb[0].mxu0
    %v3293 = vadd.f32 %v386, %v3292
    %v3294 = vpop.f32.mrb[0].mxu0
    %v3295 = vadd.f32 %v390, %v3294
    %3296 = vdwg.mxu0
    %v3297 = vmul.f32 %v435, %v3222
    %v3298 = vmul.f32 %v436, %v3224
    %v3299 = vmul.f32 %v437, %v3293
    %v3300 = vmul.f32 %v438, %v3295
    %v3301 = vtanh.pop %v3297
    %v3302 = vtanh.pop %v3298
    %v3303 = vtanh.pop %v3299
    %v3304 = vtanh.pop %v3300
    %v3305 = vmul.f32 %v435, %v3301
    %v3306 = vmul.f32 %v436, %v3302
    %v3307 = vmul.f32 %v437, %v3303
    %v3308 = vmul.f32 %v438, %v3304
    %v3309 = vadd.f32 %v3305, %v439
    %v3310 = vadd.f32 %v3306, %v440
    %v3311 = vadd.f32 %v3307, %v441
    %v3312 = vadd.f32 %v3308, %v442
    %v3313 = vmul.f32 %v3310, %v2738
    %v3314 = vmul.f32 %v3309, %v3311
    %v3315 = vadd.f32 %v3313, %v3314
    %v3316 = vtanh.pop %v3315
    %v3317 = vmul.f32 %v3312, %v3316
    %v3318 = vtanh.pop %v3317
    %3319 = vmatprep.subr.mxu0 %v243
    %3320 = vmatpush1.msra.mxu0 %v242
    %3321 = vmatprep.subr.mxu0 %v247
    %3322 = vmatpush1.msra.mxu0 %v246
    %3323 = vmatprep.subr.mxu0 %v251
    %3324 = vmatpush1.msra.mxu0 %v250
    %3325 = vmatprep.subr.mxu0 %v255
    %3326 = vmatpush1.msra.mxu0 %v254
    %3327 = vmatprep.subr.mxu0 %v259
    %3328 = vmatpush1.msra.mxu0 %v258
    %3329 = vmatprep.subr.mxu0 %v263
    %3330 = vmatpush1.msra.mxu0 %v262
    %3331 = vmatprep.subr.mxu0 %v267
    %3332 = vmatpush1.msra.mxu0 %v266
    %3333 = vmatprep.subr.mxu0 %v271
    %3334 = vmatpush1.msra.mxu0 %v270
    %3335 = vmatprep.subr.mxu0 %v275
    %3336 = vmatpush1.msra.mxu0 %v274
    %3337 = vmatprep.subr.mxu0 %v279
    %3338 = vmatpush1.msra.mxu0 %v278
    %3339 = vmatprep.subr.mxu0 %v283
    %3340 = vmatpush1.msra.mxu0 %v282
    %3341 = vmatprep.subr.mxu0 %v287
    %3342 = vmatpush1.msra.mxu0 %v286
    %3343 = vmatprep.subr.mxu0 %v291
    %3344 = vmatpush1.msra.mxu0 %v290
    %3345 = vmatprep.subr.mxu0 %v295
    %3346 = vmatpush1.msra.mxu0 %v294
    %3347 = vmatprep.subr.mxu0 %v299
    %3348 = vmatpush1.msra.mxu0 %v298
    %3349 = vmatprep.subr.mxu0 %v303
    %3350 = vmatpush1.msra.mxu0 %v302
    %3351 = vmatprep.subr.mxu0 %v307
    %3352 = vmatpush1.msra.mxu0 %v306
    %3353 = vmatprep.subr.mxu0 %v311
    %3354 = vmatpush1.msra.mxu0 %v310
    %3355 = vmatprep.subr.mxu0 %v315
    %3356 = vmatpush1.msra.mxu0 %v314
    %3357 = vmatprep.subr.mxu0 %v319
    %3358 = vmatpush1.msra.mxu0 %v318
    %3359 = vmatprep.subr.mxu0 %v323
    %3360 = vmatpush1.msra.mxu0 %v322
    %3361 = vmatprep.subr.mxu0 %v327
    %3362 = vmatpush1.msra.mxu0 %v326
    %3363 = vmatprep.subr.mxu0 %v331
    %3364 = vmatpush1.msra.mxu0 %v330
    %3365 = vmatprep.subr.mxu0 %v335
    %3366 = vmatpush1.msra.mxu0 %v334
    %3367 = vmatprep.subr.mxu0 %v339
    %3368 = vmatpush1.msra.mxu0 %v338
    %3369 = vmatprep.subr.mxu0 %v343
    %3370 = vmatpush1.msra.mxu0 %v342
    %3371 = vmatprep.subr.mxu0 %v347
    %3372 = vmatpush1.msra.mxu0 %v346
    %3373 = vmatprep.subr.mxu0 %v351
    %3374 = vmatpush1.msra.mxu0 %v350
    %3375 = vmatprep.subr.mxu0 %v355
    %3376 = vmatpush1.msra.mxu0 %v354
    %3377 = vmatprep.subr.mxu0 %v359
    %3378 = vmatpush1.msra.mxu0 %v358
    %3379 = vmatprep.subr.mxu0 %v363
    %3380 = vmatpush1.msra.mxu0 %v362
    %3381 = vmatprep.subr.mxu0 %v367
    %3382 = vmatpush1.msra.mxu0 %v366
    %3383 = vmatprep.mubr.f32.mxu0 %v2904
    %3384 = vmatmul.mubr.f32.gmra.mrb[0].mxu0 %v3318
    %v3385 = vpop.f32.mrb[0].mxu0
    %v3386 = vadd.f32 %v401, %v3385
    %v3387 = vpop.f32.mrb[0].mxu0
    %v3388 = vadd.f32 %v405, %v3387
    %3389 = vdwg.mxu0
    %3390 = vmatprep.subr.mxu0 %v245
    %3391 = vmatpush1.msra.mxu0 %v244
    %3392 = vmatprep.subr.mxu0 %v249
    %3393 = vmatpush1.msra.mxu0 %v248
    %3394 = vmatprep.subr.mxu0 %v253
    %3395 = vmatpush1.msra.mxu0 %v252
    %3396 = vmatprep.subr.mxu0 %v257
    %3397 = vmatpush1.msra.mxu0 %v256
    %3398 = vmatprep.subr.mxu0 %v261
    %3399 = vmatpush1.msra.mxu0 %v260
    %3400 = vmatprep.subr.mxu0 %v265
    %3401 = vmatpush1.msra.mxu0 %v264
    %3402 = vmatprep.subr.mxu0 %v269
    %3403 = vmatpush1.msra.mxu0 %v268
    %3404 = vmatprep.subr.mxu0 %v273
    %3405 = vmatpush1.msra.mxu0 %v272
    %3406 = vmatprep.subr.mxu0 %v277
    %3407 = vmatpush1.msra.mxu0 %v276
    %3408 = vmatprep.subr.mxu0 %v281
    %3409 = vmatpush1.msra.mxu0 %v280
    %3410 = vmatprep.subr.mxu0 %v285
    %3411 = vmatpush1.msra.mxu0 %v284
    %3412 = vmatprep.subr.mxu0 %v289
    %3413 = vmatpush1.msra.mxu0 %v288
    %3414 = vmatprep.subr.mxu0 %v293
    %3415 = vmatpush1.msra.mxu0 %v292
    %3416 = vmatprep.subr.mxu0 %v297
    %3417 = vmatpush1.msra.mxu0 %v296
    %3418 = vmatprep.subr.mxu0 %v301
    %3419 = vmatpush1.msra.mxu0 %v300
    %3420 = vmatprep.subr.mxu0 %v305
    %3421 = vmatpush1.msra.mxu0 %v304
    %3422 = vmatprep.subr.mxu0 %v309
    %3423 = vmatpush1.msra.mxu0 %v308
    %3424 = vmatprep.subr.mxu0 %v313
    %3425 = vmatpush1.msra.mxu0 %v312
    %3426 = vmatprep.subr.mxu0 %v317
    %3427 = vmatpush1.msra.mxu0 %v316
    %3428 = vmatprep.subr.mxu0 %v321
    %3429 = vmatpush1.msra.mxu0 %v320
    %3430 = vmatprep.subr.mxu0 %v325
    %3431 = vmatpush1.msra.mxu0 %v324
    %3432 = vmatprep.subr.mxu0 %v329
    %3433 = vmatpush1.msra.mxu0 %v328
    %3434 = vmatprep.subr.mxu0 %v333
    %3435 = vmatpush1.msra.mxu0 %v332
    %3436 = vmatprep.subr.mxu0 %v337
    %3437 = vmatpush1.msra.mxu0 %v336
    %3438 = vmatprep.subr.mxu0 %v341
    %3439 = vmatpush1.msra.mxu0 %v340
    %3440 = vmatprep.subr.mxu0 %v345
    %3441 = vmatpush1.msra.mxu0 %v344
    %3442 = vmatprep.subr.mxu0 %v349
    %3443 = vmatpush1.msra.mxu0 %v348
    %3444 = vmatprep.subr.mxu0 %v353
    %3445 = vmatpush1.msra.mxu0 %v352
    %3446 = vmatprep.subr.mxu0 %v357
    %3447 = vmatpush1.msra.mxu0 %v356
    %3448 = vmatprep.subr.mxu0 %v361
    %3449 = vmatpush1.msra.mxu0 %v360
    %3450 = vmatprep.subr.mxu0 %v365
    %3451 = vmatpush1.msra.mxu0 %v364
    %3452 = vmatprep.subr.mxu0 %v369
    %3453 = vmatpush1.msra.mxu0 %v368
    %3454 = vmatprep.mubr.f32.mxu0 %v2904
    %3455 = vmatmul.mubr.f32.gmra.mrb[0].mxu0 %v3318
    %v3456 = vpop.f32.mrb[0].mxu0
    %v3457 = vadd.f32 %v409, %v3456
    %v3458 = vpop.f32.mrb[0].mxu0
    %v3459 = vadd.f32 %v413, %v3458
    %3460 = vdwg.mxu0
    %v3461 = vmul.f32 %v435, %v3386
    %v3462 = vmul.f32 %v436, %v3388
    %v3463 = vmul.f32 %v437, %v3457
    %v3464 = vmul.f32 %v438, %v3459
    %v3465 = vtanh.pop %v3461
    %v3466 = vtanh.pop %v3462
    %v3467 = vtanh.pop %v3463
    %v3468 = vtanh.pop %v3464
    %v3469 = vmul.f32 %v435, %v3465
    %v3470 = vmul.f32 %v436, %v3466
    %v3471 = vmul.f32 %v437, %v3467
    %v3472 = vmul.f32 %v438, %v3468
    %v3473 = vadd.f32 %v3469, %v439
    %v3474 = vadd.f32 %v3470, %v440
    %v3475 = vadd.f32 %v3471, %v441
    %v3476 = vadd.f32 %v3472, %v442
    %v3477 = vmul.f32 %v3474, %v2902
    %v3478 = vmul.f32 %v3473, %v3475
    %v3479 = vadd.f32 %v3477, %v3478
    %v3480 = vtanh.pop %v3479
    %v3481 = vmul.f32 %v3476, %v3480
    %v3482 = vld [vmem:[%s2 + $0x40] sm:$0xff]
    %v3483 = vld [vmem:[%s2 + $0x48] sm:$0xff]
    %v3485 = vsel %vm466, %v3481, 0
    %3487 = vmatprep.subr.mxu0 0.0
    %3488 = vmatpush1.msra.mxu0 %v3482
    %3489 = vmatprep.subr.mxu0 0.0
    %3490 = vmatpush1.msra.mxu0 %v3483
    %3491 = vmatprep.subr.mxu0 0.0
    %3492 = vmatpush1.msra.mxu0 0.0
    %3493 = vmatprep.subr.mxu0 0.0
    %3494 = vmatpush1.msra.mxu0 0.0
    %3495 = vmatprep.subr.mxu0 0.0
    %3496 = vmatpush1.msra.mxu0 0.0
    %3497 = vmatprep.subr.mxu0 0.0
    %3498 = vmatpush1.msra.mxu0 0.0
    %3499 = vmatprep.subr.mxu0 0.0
    %3500 = vmatpush1.msra.mxu0 0.0
    %3501 = vmatprep.subr.mxu0 0.0
    %3502 = vmatpush1.msra.mxu0 0.0
    %3503 = vmatprep.subr.mxu0 0.0
    %3504 = vmatpush1.msra.mxu0 0.0
    %3505 = vmatprep.subr.mxu0 0.0
    %3506 = vmatpush1.msra.mxu0 0.0
    %3507 = vmatprep.subr.mxu0 0.0
    %3508 = vmatpush1.msra.mxu0 0.0
    %3509 = vmatprep.subr.mxu0 0.0
    %3510 = vmatpush1.msra.mxu0 0.0
    %3511 = vmatprep.subr.mxu0 0.0
    %3512 = vmatpush1.msra.mxu0 0.0
    %3513 = vmatprep.subr.mxu0 0.0
    %3514 = vmatpush1.msra.mxu0 0.0
    %3515 = vmatprep.subr.mxu0 0.0
    %3516 = vmatpush1.msra.mxu0 0.0
    %3517 = vmatprep.subr.mxu0 0.0
    %3518 = vmatpush1.msra.mxu0 0.0
    %3519 = vmatprep.subr.mxu0 0.0
    %3520 = vmatpush1.msra.mxu0 0.0
    %3521 = vmatprep.subr.mxu0 0.0
    %3522 = vmatpush1.msra.mxu0 0.0
    %3523 = vmatprep.subr.mxu0 0.0
    %3524 = vmatpush1.msra.mxu0 0.0
    %3525 = vmatprep.subr.mxu0 0.0
    %3526 = vmatpush1.msra.mxu0 0.0
    %3527 = vmatprep.subr.mxu0 0.0
    %3528 = vmatpush1.msra.mxu0 0.0
    %3529 = vmatprep.subr.mxu0 0.0
    %3530 = vmatpush1.msra.mxu0 0.0
    %3531 = vmatprep.subr.mxu0 0.0
    %3532 = vmatpush1.msra.mxu0 0.0
    %3533 = vmatprep.subr.mxu0 0.0
    %3534 = vmatpush1.msra.mxu0 0.0
    %3535 = vmatprep.subr.mxu0 0.0
    %3536 = vmatpush1.msra.mxu0 0.0
    %3537 = vmatprep.subr.mxu0 0.0
    %3538 = vmatpush1.msra.mxu0 0.0
    %3539 = vmatprep.subr.mxu0 0.0
    %3540 = vmatpush1.msra.mxu0 0.0
    %3541 = vmatprep.subr.mxu0 0.0
    %3542 = vmatpush1.msra.mxu0 0.0
    %3543 = vmatprep.subr.mxu0 0.0
    %3544 = vmatpush1.msra.mxu0 0.0
    %3545 = vmatprep.subr.mxu0 0.0
    %3546 = vmatpush1.msra.mxu0 0.0
    %3547 = vmatprep.subr.mxu0 0.0
    %3548 = vmatpush1.msra.mxu0 0.0
    %3549 = vmatprep.subr.mxu0 0.0
    %3550 = vmatpush1.msra.mxu0 0.0
    %3551 = vmatprep.mubr.f32.mxu0 0.0
    %3552 = vmatmul.mubr.f32.gmra.mrb[0].mxu0 %v3485
    %v3553 = vpop.f32.mrb[0].mxu0
    %v3554 = vadd.f32 0.0, %v3553
    %v3555 = vpop.f32.mrb[0].mxu0
    %3556 = vdwg.mxu0
    %v3557 = vadd.f32 %v2980, %v3554
    %v3558 = vld [vmem:[%s2 + $0x50] sm:$0x1]
    %v3559 = vlaneseq
    %v3560 = vshrl.u32 %v3559, 7
    %v3561 = vsub.s32 0, %v3560
    %v3562 = vrot.slane %v3558, %v3561
    %v3563 = vadd.f32 %v3557, %v3562
    %v3564 = vmax.f32 %v3563, 0.0
    %v3565 = vld [vmem:[%s2 + $0x51] sm:$0x1]
    %v3566 = vlaneseq
    %v3567 = vshrl.u32 %v3566, 7
    %v3568 = vsub.s32 0, %v3567
    %v3569 = vrot.slane %v3565, %v3568
    %v3570 = vmul.f32 %v3564, %v3569
    %vm3571 = vcmask 648192
    %v3572 = vsel %vm3571, %v3570, 0.0
    %3573 = vadd.xlane.f32.xlu0 %v3572
    %v3574 = vpop.xlane.xlu0 %3573
    %v3575 = vld [vmem:[%s2 + $0x52] sm:$0x1]
    %v3576 = vlaneseq
    %v3577 = vshrl.u32 %v3576, 7
    %v3578 = vsub.s32 0, %v3577
    %v3579 = vrot.slane %v3575, %v3578
    %v3580 = vadd.f32 %v3574, %v3579
    %vm3581 = vcmask 1024
    %3582 = vst.msk [vmem:[%s3] sm:$0x3] %vm3581, %v3580
    // Predicated region
    $region22: #{tpu_custom_call.1} parent=1 // pred_check
      _
    $region23: #{tpu_custom_call.1} parent=1 // pred_check_branch
      %3584 = sbr.rel (0) target = $region25
    $region24: #{tpu_custom_call.1} parent=1 // pred_region
      _
    $region25: #{tpu_custom_call.1} parent=1 // pred_fallthru
      _
    // Predicated region
    $region26: #{tpu_custom_call.1} parent=1 // pred_check
      _
    $region27: #{tpu_custom_call.1} parent=1 // pred_check_branch
      %3586 = sbr.rel (0) target = $region29
    $region28: #{tpu_custom_call.1} parent=1 // pred_region
      _
    $region29: #{tpu_custom_call.1} parent=1 // pred_fallthru
      _
    %3587 = vsyncpa [#allocation3], 1
    %3588 = vsyncpa [#allocation5], 1

</llo_original>
